<compile_context>
chip_gen: v7x
topology: tpu7x:2x2x1
jax: 0.10.0
libtpu: 0.0.40
codegen_flags: <defaults>
</compile_context>

<pallas_src>
import math

import jax
import jax.numpy as jnp
from jax.experimental import pallas as pl

# ---- small ViT config (ViT-base scaled down for this synthetic kernel) ------
BATCH        = 2
CHANNELS     = 3
IMG_SIZE     = 16
PATCH_SIZE   = 8
HIDDEN       = 64
NUM_HEADS    = 4
HEAD_DIM     = HIDDEN // NUM_HEADS
INTERMEDIATE = 128
NUM_LAYERS   = 2
NUM_CLASSES  = 3
LN_EPS       = 1e-12                         # HF ViT layer_norm_eps
NUM_PATCHES  = (IMG_SIZE // PATCH_SIZE) ** 2
SEQ          = NUM_PATCHES + 1               # +1 CLS token
ATTN_SCALE   = 1.0 / math.sqrt(HEAD_DIM)
NEG_INF      = -1e30                         # additive cross-batch attention mask


# ---------------------------------------------------------------------------
# In-kernel math helpers (plain jnp/lax: traced once inside the fused kernel)
# ---------------------------------------------------------------------------
def _mm(a, b):
    return jnp.dot(a, b, preferred_element_type=jnp.float32)


def _layer_norm(x, gamma, beta):
    mu = jnp.mean(x, axis=-1, keepdims=True)
    cent = x - mu
    var = jnp.mean(cent * cent, axis=-1, keepdims=True)
    return cent * jax.lax.rsqrt(var + LN_EPS) * gamma + beta


def _erf(x):
    # Abramowitz & Stegun 7.1.26 polynomial, |error| < 1.5e-7.  Avoids relying
    # on an exact-erf lowering inside Mosaic while matching the exact erf-GELU
    # reference far inside the test tolerance (only exp/mul/add/select used).
    a1, a2, a3, a4, a5 = (0.254829592, -0.284496736, 1.421413741,
                          -1.453152027, 1.061405429)
    p = 0.3275911
    ax = jnp.abs(x)
    t = 1.0 / (1.0 + p * ax)
    poly = ((((a5 * t + a4) * t + a3) * t + a2) * t + a1) * t
    y = 1.0 - poly * jnp.exp(-ax * ax)
    return jnp.where(x >= 0.0, y, -y)


def _gelu(x):
    return 0.5 * x * (1.0 + _erf(x * (1.0 / math.sqrt(2.0))))


# ---------------------------------------------------------------------------
# The fused Pallas kernel: entire ViT forward, activations never leave VMEM
# ---------------------------------------------------------------------------
def _vit_fused_kernel(
        x_ref, wp_ref, bp_ref, scat_ref, clspos_ref, bias_ref, sel_ref,
        ln1_g_ref, ln1_b_ref, qkv_w_ref, qkv_b_ref, ao_w_ref, ao_b_ref,
        ln2_g_ref, ln2_b_ref, fc1_w_ref, fc1_b_ref, fc2_w_ref, fc2_b_ref,
        lnf_g_ref, lnf_b_ref, pool_w_ref, pool_b_ref, head_w_ref, head_b_ref,
        o_ref):
    # --- patch embedding + CLS insertion + position embedding ---------------
    emb = _mm(x_ref[...], wp_ref[...]) + bp_ref[...]        # (B*NP, H)
    # constant 0/1 scatter matmul places patch rows at their token rows (CLS
    # rows receive 0) and clspos adds cls_token + position embeddings.
    h = _mm(scat_ref[...], emb) + clspos_ref[...]           # (T, H)
    attn_bias = bias_ref[...]                               # (T, T): 0 / -1e30

    for li in range(NUM_LAYERS):
        # --- self-attention block (pre-LN), all heads & batches in one pass -
        hn = _layer_norm(h, ln1_g_ref[li], ln1_b_ref[li])   # (T, H)
        qkv = _mm(hn, qkv_w_ref[li]) + qkv_b_ref[li]        # (T, 3H) lane-dense
        ao_w = ao_w_ref[li]                                 # (H, H)
        attn = None
        for hd in range(NUM_HEADS):
            lo = hd * HEAD_DIM
            q = qkv[:, lo:lo + HEAD_DIM]                              # (T, Dh)
            k = qkv[:, HIDDEN + lo:HIDDEN + lo + HEAD_DIM]            # (T, Dh)
            v = qkv[:, 2 * HIDDEN + lo:2 * HIDDEN + lo + HEAD_DIM]    # (T, Dh)
            # scores over all tokens; block-diagonal bias keeps softmax
            # strictly per-image (off-batch entries underflow to exp(..)=0).
            s = jax.lax.dot_general(q, k, (((1,), (1,)), ((), ())),
                                    preferred_element_type=jnp.float32)
            s = s * ATTN_SCALE + attn_bias                  # (T, T)
            s = s - jnp.max(s, axis=-1, keepdims=True)
            p = jnp.exp(s)
            p = p / jnp.sum(p, axis=-1, keepdims=True)
            ctx = _mm(p, v)                                 # (T, Dh)
            # head merge folded into the output projection (block matmul).
            part = _mm(ctx, ao_w[lo:lo + HEAD_DIM, :])      # (T, H)
            attn = part if attn is None else attn + part
        h = h + attn + ao_b_ref[li]                         # fused bias+residual

        # --- MLP block (pre-LN) with fused bias / GELU / residual epilogue --
        hn = _layer_norm(h, ln2_g_ref[li], ln2_b_ref[li])
        inter = _gelu(_mm(hn, fc1_w_ref[li]) + fc1_b_ref[li])   # (T, I)
        h = h + _mm(inter, fc2_w_ref[li]) + fc2_b_ref[li]

    # --- final LN, CLS pooling (dense + tanh), classifier head ---------------
    hn = _layer_norm(h, lnf_g_ref[...], lnf_b_ref[...])     # (T, H)
    cls = _mm(sel_ref[...], hn)                             # (B, H): pick CLS rows
    pooled = jnp.tanh(_mm(cls, pool_w_ref[...]) + pool_b_ref[...])
    o_ref[...] = (_mm(pooled, head_w_ref[...]) + head_b_ref[...]).astype(o_ref.dtype)


# ---------------------------------------------------------------------------
# Parameters (deterministic synthetic init; nn.Linear weights stored (in, out))
# ---------------------------------------------------------------------------
def init_params(key):
    def normal(k, shape):
        return 0.02 * jax.random.normal(k, shape, jnp.float32)

    ki = iter(jax.random.split(key, 64))
    p = {
        "cls_token": normal(next(ki), (1, 1, HIDDEN)),
        "pos_embed": normal(next(ki), (1, SEQ, HIDDEN)),
        "patch_w":   normal(next(ki), (HIDDEN, CHANNELS, PATCH_SIZE, PATCH_SIZE)),
        "patch_b":   jnp.zeros((HIDDEN,), jnp.float32),
        "layers":    [],
        "ln_f_g":    jnp.ones((HIDDEN,), jnp.float32),
        "ln_f_b":    jnp.zeros((HIDDEN,), jnp.float32),
        "pool_w":    normal(next(ki), (HIDDEN, HIDDEN)),
        "pool_b":    jnp.zeros((HIDDEN,), jnp.float32),
        "head_w":    normal(next(ki), (HIDDEN, NUM_CLASSES)),
        "head_b":    jnp.zeros((NUM_CLASSES,), jnp.float32),
    }
    for _ in range(NUM_LAYERS):
        p["layers"].append({
            "ln1_g": jnp.ones((HIDDEN,), jnp.float32),
            "ln1_b": jnp.zeros((HIDDEN,), jnp.float32),
            "q_w":  normal(next(ki), (HIDDEN, HIDDEN)),  "q_b":  jnp.zeros((HIDDEN,), jnp.float32),
            "k_w":  normal(next(ki), (HIDDEN, HIDDEN)),  "k_b":  jnp.zeros((HIDDEN,), jnp.float32),
            "v_w":  normal(next(ki), (HIDDEN, HIDDEN)),  "v_b":  jnp.zeros((HIDDEN,), jnp.float32),
            "ao_w": normal(next(ki), (HIDDEN, HIDDEN)),  "ao_b": jnp.zeros((HIDDEN,), jnp.float32),
            "ln2_g": jnp.ones((HIDDEN,), jnp.float32),
            "ln2_b": jnp.zeros((HIDDEN,), jnp.float32),
            "fc1_w": normal(next(ki), (HIDDEN, INTERMEDIATE)),
            "fc1_b": jnp.zeros((INTERMEDIATE,), jnp.float32),
            "fc2_w": normal(next(ki), (INTERMEDIATE, HIDDEN)),
            "fc2_b": jnp.zeros((HIDDEN,), jnp.float32),
        })
    return p


def _stack(layers, name):
    return jnp.stack([lp[name] for lp in layers])


# ---------------------------------------------------------------------------
# Forward pass: one pallas_call for the whole model; wrapper only does the
# patch unfold (input layout) and one-time weight stacking / constant tables.
# ---------------------------------------------------------------------------
def vit_classifier_forward(params, pixel_values):
    b = pixel_values.shape[0]
    g = IMG_SIZE // PATCH_SIZE
    tokens = b * SEQ
    f32 = jnp.float32

    # Patch "unfold": Conv2d(kernel=stride=PATCH) == reshape/transpose + matmul.
    x = pixel_values.reshape(b, CHANNELS, g, PATCH_SIZE, g, PATCH_SIZE)
    x = x.transpose(0, 2, 4, 1, 3, 5)
    x = x.reshape(b * NUM_PATCHES, CHANNELS * PATCH_SIZE * PATCH_SIZE)

    w_patch = params["patch_w"].reshape(HIDDEN, -1).T              # (C*P*P, H)
    b_patch = params["patch_b"].reshape(1, HIDDEN)

    # Constant tables so CLS insertion / pos-embed / softmax batching / CLS
    # pooling all happen inside the fused kernel as plain matmuls & adds.
    tok = jnp.arange(tokens)
    is_patch = (tok % SEQ) != 0
    patch_col = (tok // SEQ) * NUM_PATCHES + (tok % SEQ) - 1
    scat = jax.nn.one_hot(jnp.where(is_patch, patch_col, -1),
                          b * NUM_PATCHES, dtype=f32)              # (T, B*NP)
    cls_pos = jnp.tile(
        params["pos_embed"][0].at[0].add(params["cls_token"][0, 0]), (b, 1))  # (T, H)
    tok_batch = tok // SEQ
    attn_bias = jnp.where(tok_batch[:, None] == tok_batch[None, :],
                          0.0, NEG_INF).astype(f32)                # (T, T)
    cls_sel = jax.nn.one_hot(jnp.arange(b) * SEQ, tokens, dtype=f32)  # (B, T)

    L = params["layers"]
    ln1_g = _stack(L, "ln1_g").reshape(NUM_LAYERS, 1, HIDDEN)
    ln1_b = _stack(L, "ln1_b").reshape(NUM_LAYERS, 1, HIDDEN)
    qkv_w = jnp.stack([jnp.concatenate([lp["q_w"], lp["k_w"], lp["v_w"]], axis=1)
                       for lp in L])                               # (L, H, 3H)
    qkv_b = jnp.stack([jnp.concatenate([lp["q_b"], lp["k_b"], lp["v_b"]])
                       for lp in L]).reshape(NUM_LAYERS, 1, 3 * HIDDEN)
    ao_w = _stack(L, "ao_w")                                       # (L, H, H)
    ao_b = _stack(L, "ao_b").reshape(NUM_LAYERS, 1, HIDDEN)
    ln2_g = _stack(L, "ln2_g").reshape(NUM_LAYERS, 1, HIDDEN)
    ln2_b = _stack(L, "ln2_b").reshape(NUM_LAYERS, 1, HIDDEN)
    fc1_w = _stack(L, "fc1_w")                                     # (L, H, I)
    fc1_b = _stack(L, "fc1_b").reshape(NUM_LAYERS, 1, INTERMEDIATE)
    fc2_w = _stack(L, "fc2_w")                                     # (L, I, H)
    fc2_b = _stack(L, "fc2_b").reshape(NUM_LAYERS, 1, HIDDEN)

    args = (x, w_patch, b_patch, scat, cls_pos, attn_bias, cls_sel,
            ln1_g, ln1_b, qkv_w, qkv_b, ao_w, ao_b,
            ln2_g, ln2_b, fc1_w, fc1_b, fc2_w, fc2_b,
            params["ln_f_g"].reshape(1, HIDDEN), params["ln_f_b"].reshape(1, HIDDEN),
            params["pool_w"], params["pool_b"].reshape(1, HIDDEN),
            params["head_w"], params["head_b"].reshape(1, NUM_CLASSES))

    # Grid-less call: every operand is a whole-array VMEM block (total weights
    # + activations ~0.4 MiB, far under the scoped VMEM limit on v5e/v6e/v7x),
    # so there is exactly one kernel launch per forward pass.
    return pl.pallas_call(
        _vit_fused_kernel,
        out_shape=jax.ShapeDtypeStruct((b, NUM_CLASSES), f32),
    )(*args)


# ---------------------------------------------------------------------------
# Pure-JAX reference (for a correctness check only)
# ---------------------------------------------------------------------------
def _ref_forward(params, pixel_values):
    hp = jax.lax.Precision.HIGHEST
    b = pixel_values.shape[0]
    g = IMG_SIZE // PATCH_SIZE
    x = pixel_values.reshape(b, CHANNELS, g, PATCH_SIZE, g, PATCH_SIZE)
    x = x.transpose(0, 2, 4, 1, 3, 5).reshape(b * NUM_PATCHES, -1)
    w_patch = params["patch_w"].reshape(HIDDEN, -1).T
    patches = (jnp.dot(x, w_patch, precision=hp) + params["patch_b"]
               ).reshape(b, NUM_PATCHES, HIDDEN)
    h = jnp.concatenate(
        [jnp.broadcast_to(params["cls_token"], (b, 1, HIDDEN)), patches], axis=1
    ) + params["pos_embed"]

    def ln(t, gam, bet):
        m = jnp.mean(t, -1, keepdims=True)
        v = jnp.mean((t - m) ** 2, -1, keepdims=True)
        return (t - m) * jax.lax.rsqrt(v + LN_EPS) * gam + bet

    for lp in params["layers"]:
        hn = ln(h, lp["ln1_g"], lp["ln1_b"])
        q = jnp.dot(hn, lp["q_w"], precision=hp) + lp["q_b"]
        k = jnp.dot(hn, lp["k_w"], precision=hp) + lp["k_b"]
        v = jnp.dot(hn, lp["v_w"], precision=hp) + lp["v_b"]

        def sh(t):
            return t.reshape(b, SEQ, NUM_HEADS, HEAD_DIM).transpose(0, 2, 1, 3)

        s = jnp.einsum("bhqd,bhkd->bhqk", sh(q), sh(k),
                       precision=hp) / math.sqrt(HEAD_DIM)
        p = jax.nn.softmax(s, axis=-1)
        ctx = jnp.einsum("bhqk,bhkd->bhqd", p, sh(v), precision=hp)
        ctx = ctx.transpose(0, 2, 1, 3).reshape(b, SEQ, HIDDEN)
        h = h + jnp.dot(ctx, lp["ao_w"], precision=hp) + lp["ao_b"]

        hn = ln(h, lp["ln2_g"], lp["ln2_b"])
        inter = jax.nn.gelu(jnp.dot(hn, lp["fc1_w"], precision=hp) + lp["fc1_b"],
                            approximate=False)
        h = h + jnp.dot(inter, lp["fc2_w"], precision=hp) + lp["fc2_b"]

    h = ln(h, params["ln_f_g"], params["ln_f_b"])
    pooled = jnp.tanh(jnp.dot(h[:, 0, :], params["pool_w"], precision=hp)
                      + params["pool_b"])
    return jnp.dot(pooled, params["head_w"], precision=hp) + params["head_b"]


# ---------------------------------------------------------------------------
if __name__ == "__main__":
    key = jax.random.PRNGKey(0)
    k_params, k_x = jax.random.split(key)
    params = init_params(k_params)
    pixel_values = jax.random.normal(
        k_x, (BATCH, CHANNELS, IMG_SIZE, IMG_SIZE), jnp.float32)

    logits = jax.jit(vit_classifier_forward)(params, pixel_values)
    logits = jax.block_until_ready(logits)

    ref = _ref_forward(params, pixel_values)
    assert logits.shape == (BATCH, NUM_CLASSES)
    assert jnp.allclose(logits, ref, atol=1e-3, rtol=1e-2), (logits, ref)
    print("KERNEL_OK")
</pallas_src>

<mosaic_0001>
module attributes {stable_mosaic.version = 11 : i64} {
  func.func @_vit_fused_kernel(%arg0: memref<8x192xf32, #tpu.memory_space<vmem>>, %arg1: memref<192x64xf32, #tpu.memory_space<vmem>>, %arg2: memref<1x64xf32, #tpu.memory_space<vmem>>, %arg3: memref<10x8xf32, #tpu.memory_space<vmem>>, %arg4: memref<10x64xf32, #tpu.memory_space<vmem>>, %arg5: memref<10x10xf32, #tpu.memory_space<vmem>>, %arg6: memref<2x10xf32, #tpu.memory_space<vmem>>, %arg7: memref<2x1x64xf32, #tpu.memory_space<vmem>>, %arg8: memref<2x1x64xf32, #tpu.memory_space<vmem>>, %arg9: memref<2x64x192xf32, #tpu.memory_space<vmem>>, %arg10: memref<2x1x192xf32, #tpu.memory_space<vmem>>, %arg11: memref<2x64x64xf32, #tpu.memory_space<vmem>>, %arg12: memref<2x1x64xf32, #tpu.memory_space<vmem>>, %arg13: memref<2x1x64xf32, #tpu.memory_space<vmem>>, %arg14: memref<2x1x64xf32, #tpu.memory_space<vmem>>, %arg15: memref<2x64x128xf32, #tpu.memory_space<vmem>>, %arg16: memref<2x1x128xf32, #tpu.memory_space<vmem>>, %arg17: memref<2x128x64xf32, #tpu.memory_space<vmem>>, %arg18: memref<2x1x64xf32, #tpu.memory_space<vmem>>, %arg19: memref<1x64xf32, #tpu.memory_space<vmem>>, %arg20: memref<1x64xf32, #tpu.memory_space<vmem>>, %arg21: memref<64x64xf32, #tpu.memory_space<vmem>>, %arg22: memref<1x64xf32, #tpu.memory_space<vmem>>, %arg23: memref<64x3xf32, #tpu.memory_space<vmem>>, %arg24: memref<1x3xf32, #tpu.memory_space<vmem>>, %arg25: memref<2x3xf32, #tpu.memory_space<vmem>>) attributes {dimension_semantics = [], scalar_prefetch = 0 : i64, scratch_operands = 0 : i64, tpu.core_type = #tpu.core_type<tc>} {
    %c0 = arith.constant 0 : index
    %c0_0 = arith.constant 0 : index
    %0 = vector.load %arg0[%c0, %c0_0] : memref<8x192xf32, #tpu.memory_space<vmem>>, vector<8x192xf32>
    %c0_1 = arith.constant 0 : index
    %c0_2 = arith.constant 0 : index
    %1 = vector.load %arg1[%c0_1, %c0_2] : memref<192x64xf32, #tpu.memory_space<vmem>>, vector<192x64xf32>
    %cst = arith.constant dense<0.000000e+00> : vector<8x64xf32>
    %2 = tpu.matmul %0, %1, %cst {dimension_numbers = #tpu.dot_dimension_numbers<[1], [0], [0], [1], [0, 0, 1, 1], [], []>} : vector<8x192xf32>, vector<192x64xf32>, vector<8x64xf32> -> vector<8x64xf32>
    %c0_3 = arith.constant 0 : index
    %c0_4 = arith.constant 0 : index
    %3 = vector.load %arg2[%c0_3, %c0_4] : memref<1x64xf32, #tpu.memory_space<vmem>>, vector<1x64xf32>
    %4 = vector.broadcast %3 : vector<1x64xf32> to vector<8x64xf32>
    %5 = arith.addf %2, %4 : vector<8x64xf32>
    %c0_5 = arith.constant 0 : index
    %c0_6 = arith.constant 0 : index
    %6 = vector.load %arg3[%c0_5, %c0_6] : memref<10x8xf32, #tpu.memory_space<vmem>>, vector<10x8xf32>
    %cst_7 = arith.constant dense<0.000000e+00> : vector<10x64xf32>
    %7 = tpu.matmul %6, %5, %cst_7 {dimension_numbers = #tpu.dot_dimension_numbers<[1], [0], [0], [1], [0, 0, 1, 1], [], []>} : vector<10x8xf32>, vector<8x64xf32>, vector<10x64xf32> -> vector<10x64xf32>
    %c0_8 = arith.constant 0 : index
    %c0_9 = arith.constant 0 : index
    %8 = vector.load %arg4[%c0_8, %c0_9] : memref<10x64xf32, #tpu.memory_space<vmem>>, vector<10x64xf32>
    %9 = arith.addf %7, %8 : vector<10x64xf32>
    %c0_10 = arith.constant 0 : index
    %c0_11 = arith.constant 0 : index
    %10 = vector.load %arg5[%c0_10, %c0_11] : memref<10x10xf32, #tpu.memory_space<vmem>>, vector<10x10xf32>
    %c0_12 = arith.constant 0 : index
    %c0_13 = arith.constant 0 : index
    %c0_14 = arith.constant 0 : index
    %11 = vector.load %arg7[%c0_12, %c0_13, %c0_14] : memref<2x1x64xf32, #tpu.memory_space<vmem>>, vector<1x1x64xf32>
    %12 = vector.shape_cast %11 : vector<1x1x64xf32> to vector<1x64xf32>
    %c0_15 = arith.constant 0 : index
    %c0_16 = arith.constant 0 : index
    %c0_17 = arith.constant 0 : index
    %13 = vector.load %arg8[%c0_15, %c0_16, %c0_17] : memref<2x1x64xf32, #tpu.memory_space<vmem>>, vector<1x1x64xf32>
    %14 = vector.shape_cast %13 : vector<1x1x64xf32> to vector<1x64xf32>
    %cst_18 = arith.constant dense<0.000000e+00> : vector<10xf32>
    %15 = vector.multi_reduction <add>, %9, %cst_18 [1] : vector<10x64xf32> to vector<10xf32>
    %16 = vector.shape_cast %15 : vector<10xf32> to vector<10x1xf32>
    %cst_19 = arith.constant 6.400000e+01 : f32
    %17 = vector.broadcast %cst_19 : f32 to vector<10x1xf32>
    %18 = arith.divf %16, %17 : vector<10x1xf32>
    %19 = vector.broadcast %18 : vector<10x1xf32> to vector<10x64xf32>
    %20 = arith.subf %9, %19 : vector<10x64xf32>
    %21 = arith.mulf %20, %20 : vector<10x64xf32>
    %cst_20 = arith.constant dense<0.000000e+00> : vector<10xf32>
    %22 = vector.multi_reduction <add>, %21, %cst_20 [1] : vector<10x64xf32> to vector<10xf32>
    %23 = vector.shape_cast %22 : vector<10xf32> to vector<10x1xf32>
    %cst_21 = arith.constant 6.400000e+01 : f32
    %24 = vector.broadcast %cst_21 : f32 to vector<10x1xf32>
    %25 = arith.divf %23, %24 : vector<10x1xf32>
    %cst_22 = arith.constant 9.99999996E-13 : f32
    %26 = vector.broadcast %cst_22 : f32 to vector<10x1xf32>
    %27 = arith.addf %25, %26 : vector<10x1xf32>
    %28 = math.rsqrt %27 : vector<10x1xf32>
    %29 = vector.broadcast %28 : vector<10x1xf32> to vector<10x64xf32>
    %30 = arith.mulf %20, %29 : vector<10x64xf32>
    %31 = vector.broadcast %12 : vector<1x64xf32> to vector<10x64xf32>
    %32 = arith.mulf %30, %31 : vector<10x64xf32>
    %33 = vector.broadcast %14 : vector<1x64xf32> to vector<10x64xf32>
    %34 = arith.addf %32, %33 : vector<10x64xf32>
    %c0_23 = arith.constant 0 : index
    %c0_24 = arith.constant 0 : index
    %c0_25 = arith.constant 0 : index
    %35 = vector.load %arg9[%c0_23, %c0_24, %c0_25] : memref<2x64x192xf32, #tpu.memory_space<vmem>>, vector<1x64x192xf32>
    %36 = vector.shape_cast %35 : vector<1x64x192xf32> to vector<64x192xf32>
    %cst_26 = arith.constant dense<0.000000e+00> : vector<10x192xf32>
    %37 = tpu.matmul %34, %36, %cst_26 {dimension_numbers = #tpu.dot_dimension_numbers<[1], [0], [0], [1], [0, 0, 1, 1], [], []>} : vector<10x64xf32>, vector<64x192xf32>, vector<10x192xf32> -> vector<10x192xf32>
    %c0_27 = arith.constant 0 : index
    %c0_28 = arith.constant 0 : index
    %c0_29 = arith.constant 0 : index
    %38 = vector.load %arg10[%c0_27, %c0_28, %c0_29] : memref<2x1x192xf32, #tpu.memory_space<vmem>>, vector<1x1x192xf32>
    %39 = vector.shape_cast %38 : vector<1x1x192xf32> to vector<1x192xf32>
    %40 = vector.broadcast %39 : vector<1x192xf32> to vector<10x192xf32>
    %41 = arith.addf %37, %40 : vector<10x192xf32>
    %c0_30 = arith.constant 0 : index
    %c0_31 = arith.constant 0 : index
    %c0_32 = arith.constant 0 : index
    %42 = vector.load %arg11[%c0_30, %c0_31, %c0_32] : memref<2x64x64xf32, #tpu.memory_space<vmem>>, vector<1x64x64xf32>
    %43 = vector.shape_cast %42 : vector<1x64x64xf32> to vector<64x64xf32>
    %44 = vector.extract_strided_slice %41 {offsets = [0, 0], sizes = [10, 16], strides = [1, 1]} : vector<10x192xf32> to vector<10x16xf32>
    %45 = vector.extract_strided_slice %41 {offsets = [0, 64], sizes = [10, 16], strides = [1, 1]} : vector<10x192xf32> to vector<10x16xf32>
    %46 = vector.extract_strided_slice %41 {offsets = [0, 128], sizes = [10, 16], strides = [1, 1]} : vector<10x192xf32> to vector<10x16xf32>
    %cst_33 = arith.constant dense<0.000000e+00> : vector<10x10xf32>
    %47 = tpu.matmul %44, %45, %cst_33 {dimension_numbers = #tpu.dot_dimension_numbers<[1], [1], [0], [0], [0, 0, 1, 0], [], []>} : vector<10x16xf32>, vector<10x16xf32>, vector<10x10xf32> -> vector<10x10xf32>
    %cst_34 = arith.constant 2.500000e-01 : f32
    %48 = vector.broadcast %cst_34 : f32 to vector<10x10xf32>
    %49 = arith.mulf %47, %48 : vector<10x10xf32>
    %50 = arith.addf %49, %10 : vector<10x10xf32>
    %cst_35 = arith.constant dense<0xFF800000> : vector<10xf32>
    %51 = vector.multi_reduction <maximumf>, %50, %cst_35 [1] : vector<10x10xf32> to vector<10xf32>
    %52 = vector.shape_cast %51 : vector<10xf32> to vector<10x1xf32>
    %53 = vector.broadcast %52 : vector<10x1xf32> to vector<10x10xf32>
    %54 = arith.subf %50, %53 : vector<10x10xf32>
    %55 = math.exp %54 : vector<10x10xf32>
    %cst_36 = arith.constant dense<0.000000e+00> : vector<10xf32>
    %56 = vector.multi_reduction <add>, %55, %cst_36 [1] : vector<10x10xf32> to vector<10xf32>
    %57 = vector.shape_cast %56 : vector<10xf32> to vector<10x1xf32>
    %58 = vector.broadcast %57 : vector<10x1xf32> to vector<10x10xf32>
    %59 = arith.divf %55, %58 : vector<10x10xf32>
    %cst_37 = arith.constant dense<0.000000e+00> : vector<10x16xf32>
    %60 = tpu.matmul %59, %46, %cst_37 {dimension_numbers = #tpu.dot_dimension_numbers<[1], [0], [0], [1], [0, 0, 1, 1], [], []>} : vector<10x10xf32>, vector<10x16xf32>, vector<10x16xf32> -> vector<10x16xf32>
    %61 = vector.extract_strided_slice %43 {offsets = [0, 0], sizes = [16, 64], strides = [1, 1]} : vector<64x64xf32> to vector<16x64xf32>
    %cst_38 = arith.constant dense<0.000000e+00> : vector<10x64xf32>
    %62 = tpu.matmul %60, %61, %cst_38 {dimension_numbers = #tpu.dot_dimension_numbers<[1], [0], [0], [1], [0, 0, 1, 1], [], []>} : vector<10x16xf32>, vector<16x64xf32>, vector<10x64xf32> -> vector<10x64xf32>
    %63 = vector.extract_strided_slice %41 {offsets = [0, 16], sizes = [10, 16], strides = [1, 1]} : vector<10x192xf32> to vector<10x16xf32>
    %64 = vector.extract_strided_slice %41 {offsets = [0, 80], sizes = [10, 16], strides = [1, 1]} : vector<10x192xf32> to vector<10x16xf32>
    %65 = vector.extract_strided_slice %41 {offsets = [0, 144], sizes = [10, 16], strides = [1, 1]} : vector<10x192xf32> to vector<10x16xf32>
    %cst_39 = arith.constant dense<0.000000e+00> : vector<10x10xf32>
    %66 = tpu.matmul %63, %64, %cst_39 {dimension_numbers = #tpu.dot_dimension_numbers<[1], [1], [0], [0], [0, 0, 1, 0], [], []>} : vector<10x16xf32>, vector<10x16xf32>, vector<10x10xf32> -> vector<10x10xf32>
    %cst_40 = arith.constant 2.500000e-01 : f32
    %67 = vector.broadcast %cst_40 : f32 to vector<10x10xf32>
    %68 = arith.mulf %66, %67 : vector<10x10xf32>
    %69 = arith.addf %68, %10 : vector<10x10xf32>
    %cst_41 = arith.constant dense<0xFF800000> : vector<10xf32>
    %70 = vector.multi_reduction <maximumf>, %69, %cst_41 [1] : vector<10x10xf32> to vector<10xf32>
    %71 = vector.shape_cast %70 : vector<10xf32> to vector<10x1xf32>
    %72 = vector.broadcast %71 : vector<10x1xf32> to vector<10x10xf32>
    %73 = arith.subf %69, %72 : vector<10x10xf32>
    %74 = math.exp %73 : vector<10x10xf32>
    %cst_42 = arith.constant dense<0.000000e+00> : vector<10xf32>
    %75 = vector.multi_reduction <add>, %74, %cst_42 [1] : vector<10x10xf32> to vector<10xf32>
    %76 = vector.shape_cast %75 : vector<10xf32> to vector<10x1xf32>
    %77 = vector.broadcast %76 : vector<10x1xf32> to vector<10x10xf32>
    %78 = arith.divf %74, %77 : vector<10x10xf32>
    %cst_43 = arith.constant dense<0.000000e+00> : vector<10x16xf32>
    %79 = tpu.matmul %78, %65, %cst_43 {dimension_numbers = #tpu.dot_dimension_numbers<[1], [0], [0], [1], [0, 0, 1, 1], [], []>} : vector<10x10xf32>, vector<10x16xf32>, vector<10x16xf32> -> vector<10x16xf32>
    %80 = vector.extract_strided_slice %43 {offsets = [16, 0], sizes = [16, 64], strides = [1, 1]} : vector<64x64xf32> to vector<16x64xf32>
    %cst_44 = arith.constant dense<0.000000e+00> : vector<10x64xf32>
    %81 = tpu.matmul %79, %80, %cst_44 {dimension_numbers = #tpu.dot_dimension_numbers<[1], [0], [0], [1], [0, 0, 1, 1], [], []>} : vector<10x16xf32>, vector<16x64xf32>, vector<10x64xf32> -> vector<10x64xf32>
    %82 = arith.addf %62, %81 : vector<10x64xf32>
    %83 = vector.extract_strided_slice %41 {offsets = [0, 32], sizes = [10, 16], strides = [1, 1]} : vector<10x192xf32> to vector<10x16xf32>
    %84 = vector.extract_strided_slice %41 {offsets = [0, 96], sizes = [10, 16], strides = [1, 1]} : vector<10x192xf32> to vector<10x16xf32>
    %85 = vector.extract_strided_slice %41 {offsets = [0, 160], sizes = [10, 16], strides = [1, 1]} : vector<10x192xf32> to vector<10x16xf32>
    %cst_45 = arith.constant dense<0.000000e+00> : vector<10x10xf32>
    %86 = tpu.matmul %83, %84, %cst_45 {dimension_numbers = #tpu.dot_dimension_numbers<[1], [1], [0], [0], [0, 0, 1, 0], [], []>} : vector<10x16xf32>, vector<10x16xf32>, vector<10x10xf32> -> vector<10x10xf32>
    %cst_46 = arith.constant 2.500000e-01 : f32
    %87 = vector.broadcast %cst_46 : f32 to vector<10x10xf32>
    %88 = arith.mulf %86, %87 : vector<10x10xf32>
    %89 = arith.addf %88, %10 : vector<10x10xf32>
    %cst_47 = arith.constant dense<0xFF800000> : vector<10xf32>
    %90 = vector.multi_reduction <maximumf>, %89, %cst_47 [1] : vector<10x10xf32> to vector<10xf32>
    %91 = vector.shape_cast %90 : vector<10xf32> to vector<10x1xf32>
    %92 = vector.broadcast %91 : vector<10x1xf32> to vector<10x10xf32>
    %93 = arith.subf %89, %92 : vector<10x10xf32>
    %94 = math.exp %93 : vector<10x10xf32>
    %cst_48 = arith.constant dense<0.000000e+00> : vector<10xf32>
    %95 = vector.multi_reduction <add>, %94, %cst_48 [1] : vector<10x10xf32> to vector<10xf32>
    %96 = vector.shape_cast %95 : vector<10xf32> to vector<10x1xf32>
    %97 = vector.broadcast %96 : vector<10x1xf32> to vector<10x10xf32>
    %98 = arith.divf %94, %97 : vector<10x10xf32>
    %cst_49 = arith.constant dense<0.000000e+00> : vector<10x16xf32>
    %99 = tpu.matmul %98, %85, %cst_49 {dimension_numbers = #tpu.dot_dimension_numbers<[1], [0], [0], [1], [0, 0, 1, 1], [], []>} : vector<10x10xf32>, vector<10x16xf32>, vector<10x16xf32> -> vector<10x16xf32>
    %100 = vector.extract_strided_slice %43 {offsets = [32, 0], sizes = [16, 64], strides = [1, 1]} : vector<64x64xf32> to vector<16x64xf32>
    %cst_50 = arith.constant dense<0.000000e+00> : vector<10x64xf32>
    %101 = tpu.matmul %99, %100, %cst_50 {dimension_numbers = #tpu.dot_dimension_numbers<[1], [0], [0], [1], [0, 0, 1, 1], [], []>} : vector<10x16xf32>, vector<16x64xf32>, vector<10x64xf32> -> vector<10x64xf32>
    %102 = arith.addf %82, %101 : vector<10x64xf32>
    %103 = vector.extract_strided_slice %41 {offsets = [0, 48], sizes = [10, 16], strides = [1, 1]} : vector<10x192xf32> to vector<10x16xf32>
    %104 = vector.extract_strided_slice %41 {offsets = [0, 112], sizes = [10, 16], strides = [1, 1]} : vector<10x192xf32> to vector<10x16xf32>
    %105 = vector.extract_strided_slice %41 {offsets = [0, 176], sizes = [10, 16], strides = [1, 1]} : vector<10x192xf32> to vector<10x16xf32>
    %cst_51 = arith.constant dense<0.000000e+00> : vector<10x10xf32>
    %106 = tpu.matmul %103, %104, %cst_51 {dimension_numbers = #tpu.dot_dimension_numbers<[1], [1], [0], [0], [0, 0, 1, 0], [], []>} : vector<10x16xf32>, vector<10x16xf32>, vector<10x10xf32> -> vector<10x10xf32>
    %cst_52 = arith.constant 2.500000e-01 : f32
    %107 = vector.broadcast %cst_52 : f32 to vector<10x10xf32>
    %108 = arith.mulf %106, %107 : vector<10x10xf32>
    %109 = arith.addf %108, %10 : vector<10x10xf32>
    %cst_53 = arith.constant dense<0xFF800000> : vector<10xf32>
    %110 = vector.multi_reduction <maximumf>, %109, %cst_53 [1] : vector<10x10xf32> to vector<10xf32>
    %111 = vector.shape_cast %110 : vector<10xf32> to vector<10x1xf32>
    %112 = vector.broadcast %111 : vector<10x1xf32> to vector<10x10xf32>
    %113 = arith.subf %109, %112 : vector<10x10xf32>
    %114 = math.exp %113 : vector<10x10xf32>
    %cst_54 = arith.constant dense<0.000000e+00> : vector<10xf32>
    %115 = vector.multi_reduction <add>, %114, %cst_54 [1] : vector<10x10xf32> to vector<10xf32>
    %116 = vector.shape_cast %115 : vector<10xf32> to vector<10x1xf32>
    %117 = vector.broadcast %116 : vector<10x1xf32> to vector<10x10xf32>
    %118 = arith.divf %114, %117 : vector<10x10xf32>
    %cst_55 = arith.constant dense<0.000000e+00> : vector<10x16xf32>
    %119 = tpu.matmul %118, %105, %cst_55 {dimension_numbers = #tpu.dot_dimension_numbers<[1], [0], [0], [1], [0, 0, 1, 1], [], []>} : vector<10x10xf32>, vector<10x16xf32>, vector<10x16xf32> -> vector<10x16xf32>
    %120 = vector.extract_strided_slice %43 {offsets = [48, 0], sizes = [16, 64], strides = [1, 1]} : vector<64x64xf32> to vector<16x64xf32>
    %cst_56 = arith.constant dense<0.000000e+00> : vector<10x64xf32>
    %121 = tpu.matmul %119, %120, %cst_56 {dimension_numbers = #tpu.dot_dimension_numbers<[1], [0], [0], [1], [0, 0, 1, 1], [], []>} : vector<10x16xf32>, vector<16x64xf32>, vector<10x64xf32> -> vector<10x64xf32>
    %122 = arith.addf %102, %121 : vector<10x64xf32>
    %123 = arith.addf %9, %122 : vector<10x64xf32>
    %c0_57 = arith.constant 0 : index
    %c0_58 = arith.constant 0 : index
    %c0_59 = arith.constant 0 : index
    %124 = vector.load %arg12[%c0_57, %c0_58, %c0_59] : memref<2x1x64xf32, #tpu.memory_space<vmem>>, vector<1x1x64xf32>
    %125 = vector.shape_cast %124 : vector<1x1x64xf32> to vector<1x64xf32>
    %126 = vector.broadcast %125 : vector<1x64xf32> to vector<10x64xf32>
    %127 = arith.addf %123, %126 : vector<10x64xf32>
    %c0_60 = arith.constant 0 : index
    %c0_61 = arith.constant 0 : index
    %c0_62 = arith.constant 0 : index
    %128 = vector.load %arg13[%c0_60, %c0_61, %c0_62] : memref<2x1x64xf32, #tpu.memory_space<vmem>>, vector<1x1x64xf32>
    %129 = vector.shape_cast %128 : vector<1x1x64xf32> to vector<1x64xf32>
    %c0_63 = arith.constant 0 : index
    %c0_64 = arith.constant 0 : index
    %c0_65 = arith.constant 0 : index
    %130 = vector.load %arg14[%c0_63, %c0_64, %c0_65] : memref<2x1x64xf32, #tpu.memory_space<vmem>>, vector<1x1x64xf32>
    %131 = vector.shape_cast %130 : vector<1x1x64xf32> to vector<1x64xf32>
    %cst_66 = arith.constant dense<0.000000e+00> : vector<10xf32>
    %132 = vector.multi_reduction <add>, %127, %cst_66 [1] : vector<10x64xf32> to vector<10xf32>
    %133 = vector.shape_cast %132 : vector<10xf32> to vector<10x1xf32>
    %cst_67 = arith.constant 6.400000e+01 : f32
    %134 = vector.broadcast %cst_67 : f32 to vector<10x1xf32>
    %135 = arith.divf %133, %134 : vector<10x1xf32>
    %136 = vector.broadcast %135 : vector<10x1xf32> to vector<10x64xf32>
    %137 = arith.subf %127, %136 : vector<10x64xf32>
    %138 = arith.mulf %137, %137 : vector<10x64xf32>
    %cst_68 = arith.constant dense<0.000000e+00> : vector<10xf32>
    %139 = vector.multi_reduction <add>, %138, %cst_68 [1] : vector<10x64xf32> to vector<10xf32>
    %140 = vector.shape_cast %139 : vector<10xf32> to vector<10x1xf32>
    %cst_69 = arith.constant 6.400000e+01 : f32
    %141 = vector.broadcast %cst_69 : f32 to vector<10x1xf32>
    %142 = arith.divf %140, %141 : vector<10x1xf32>
    %cst_70 = arith.constant 9.99999996E-13 : f32
    %143 = vector.broadcast %cst_70 : f32 to vector<10x1xf32>
    %144 = arith.addf %142, %143 : vector<10x1xf32>
    %145 = math.rsqrt %144 : vector<10x1xf32>
    %146 = vector.broadcast %145 : vector<10x1xf32> to vector<10x64xf32>
    %147 = arith.mulf %137, %146 : vector<10x64xf32>
    %148 = vector.broadcast %129 : vector<1x64xf32> to vector<10x64xf32>
    %149 = arith.mulf %147, %148 : vector<10x64xf32>
    %150 = vector.broadcast %131 : vector<1x64xf32> to vector<10x64xf32>
    %151 = arith.addf %149, %150 : vector<10x64xf32>
    %c0_71 = arith.constant 0 : index
    %c0_72 = arith.constant 0 : index
    %c0_73 = arith.constant 0 : index
    %152 = vector.load %arg15[%c0_71, %c0_72, %c0_73] : memref<2x64x128xf32, #tpu.memory_space<vmem>>, vector<1x64x128xf32>
    %153 = vector.shape_cast %152 : vector<1x64x128xf32> to vector<64x128xf32>
    %cst_74 = arith.constant dense<0.000000e+00> : vector<10x128xf32>
    %154 = tpu.matmul %151, %153, %cst_74 {dimension_numbers = #tpu.dot_dimension_numbers<[1], [0], [0], [1], [0, 0, 1, 1], [], []>} : vector<10x64xf32>, vector<64x128xf32>, vector<10x128xf32> -> vector<10x128xf32>
    %c0_75 = arith.constant 0 : index
    %c0_76 = arith.constant 0 : index
    %c0_77 = arith.constant 0 : index
    %155 = vector.load %arg16[%c0_75, %c0_76, %c0_77] : memref<2x1x128xf32, #tpu.memory_space<vmem>>, vector<1x1x128xf32>
    %156 = vector.shape_cast %155 : vector<1x1x128xf32> to vector<1x128xf32>
    %157 = vector.broadcast %156 : vector<1x128xf32> to vector<10x128xf32>
    %158 = arith.addf %154, %157 : vector<10x128xf32>
    %cst_78 = arith.constant 5.000000e-01 : f32
    %159 = vector.broadcast %cst_78 : f32 to vector<10x128xf32>
    %160 = arith.mulf %159, %158 : vector<10x128xf32>
    %cst_79 = arith.constant 0.707106769 : f32
    %161 = vector.broadcast %cst_79 : f32 to vector<10x128xf32>
    %162 = arith.mulf %158, %161 : vector<10x128xf32>
    %163 = math.absf %162 : vector<10x128xf32>
    %cst_80 = arith.constant 0.327591091 : f32
    %164 = vector.broadcast %cst_80 : f32 to vector<10x128xf32>
    %165 = arith.mulf %164, %163 : vector<10x128xf32>
    %cst_81 = arith.constant 1.000000e+00 : f32
    %166 = vector.broadcast %cst_81 : f32 to vector<10x128xf32>
    %167 = arith.addf %166, %165 : vector<10x128xf32>
    %cst_82 = arith.constant 1.000000e+00 : f32
    %168 = vector.broadcast %cst_82 : f32 to vector<10x128xf32>
    %169 = arith.divf %168, %167 : vector<10x128xf32>
    %cst_83 = arith.constant 1.06140542 : f32
    %170 = vector.broadcast %cst_83 : f32 to vector<10x128xf32>
    %171 = arith.mulf %170, %169 : vector<10x128xf32>
    %cst_84 = arith.constant -1.45315206 : f32
    %172 = vector.broadcast %cst_84 : f32 to vector<10x128xf32>
    %173 = arith.addf %171, %172 : vector<10x128xf32>
    %174 = arith.mulf %173, %169 : vector<10x128xf32>
    %cst_85 = arith.constant 1.42141378 : f32
    %175 = vector.broadcast %cst_85 : f32 to vector<10x128xf32>
    %176 = arith.addf %174, %175 : vector<10x128xf32>
    %177 = arith.mulf %176, %169 : vector<10x128xf32>
    %cst_86 = arith.constant -0.284496725 : f32
    %178 = vector.broadcast %cst_86 : f32 to vector<10x128xf32>
    %179 = arith.addf %177, %178 : vector<10x128xf32>
    %180 = arith.mulf %179, %169 : vector<10x128xf32>
    %cst_87 = arith.constant 0.254829586 : f32
    %181 = vector.broadcast %cst_87 : f32 to vector<10x128xf32>
    %182 = arith.addf %180, %181 : vector<10x128xf32>
    %183 = arith.mulf %182, %169 : vector<10x128xf32>
    %cst_88 = arith.constant 0.000000e+00 : f32
    %184 = vector.broadcast %cst_88 : f32 to vector<10x128xf32>
    %185 = arith.subf %184, %163 : vector<10x128xf32>
    %186 = arith.mulf %185, %163 : vector<10x128xf32>
    %187 = math.exp %186 : vector<10x128xf32>
    %188 = arith.mulf %183, %187 : vector<10x128xf32>
    %cst_89 = arith.constant 1.000000e+00 : f32
    %189 = vector.broadcast %cst_89 : f32 to vector<10x128xf32>
    %190 = arith.subf %189, %188 : vector<10x128xf32>
    %cst_90 = arith.constant 0.000000e+00 : f32
    %191 = vector.broadcast %cst_90 : f32 to vector<10x128xf32>
    %192 = arith.cmpf oge, %162, %191 : vector<10x128xf32>
    %cst_91 = arith.constant 0.000000e+00 : f32
    %193 = vector.broadcast %cst_91 : f32 to vector<10x128xf32>
    %194 = arith.subf %193, %190 : vector<10x128xf32>
    %195 = arith.select %192, %190, %194 : vector<10x128xi1>, vector<10x128xf32>
    %cst_92 = arith.constant 1.000000e+00 : f32
    %196 = vector.broadcast %cst_92 : f32 to vector<10x128xf32>
    %197 = arith.addf %196, %195 : vector<10x128xf32>
    %198 = arith.mulf %160, %197 : vector<10x128xf32>
    %c0_93 = arith.constant 0 : index
    %c0_94 = arith.constant 0 : index
    %c0_95 = arith.constant 0 : index
    %199 = vector.load %arg17[%c0_93, %c0_94, %c0_95] : memref<2x128x64xf32, #tpu.memory_space<vmem>>, vector<1x128x64xf32>
    %200 = vector.shape_cast %199 : vector<1x128x64xf32> to vector<128x64xf32>
    %cst_96 = arith.constant dense<0.000000e+00> : vector<10x64xf32>
    %201 = tpu.matmul %198, %200, %cst_96 {dimension_numbers = #tpu.dot_dimension_numbers<[1], [0], [0], [1], [0, 0, 1, 1], [], []>} : vector<10x128xf32>, vector<128x64xf32>, vector<10x64xf32> -> vector<10x64xf32>
    %202 = arith.addf %127, %201 : vector<10x64xf32>
    %c0_97 = arith.constant 0 : index
    %c0_98 = arith.constant 0 : index
    %c0_99 = arith.constant 0 : index
    %203 = vector.load %arg18[%c0_97, %c0_98, %c0_99] : memref<2x1x64xf32, #tpu.memory_space<vmem>>, vector<1x1x64xf32>
    %204 = vector.shape_cast %203 : vector<1x1x64xf32> to vector<1x64xf32>
    %205 = vector.broadcast %204 : vector<1x64xf32> to vector<10x64xf32>
    %206 = arith.addf %202, %205 : vector<10x64xf32>
    %c1 = arith.constant 1 : index
    %c0_100 = arith.constant 0 : index
    %c0_101 = arith.constant 0 : index
    %207 = vector.load %arg7[%c1, %c0_100, %c0_101] : memref<2x1x64xf32, #tpu.memory_space<vmem>>, vector<1x1x64xf32>
    %208 = vector.shape_cast %207 : vector<1x1x64xf32> to vector<1x64xf32>
    %c1_102 = arith.constant 1 : index
    %c0_103 = arith.constant 0 : index
    %c0_104 = arith.constant 0 : index
    %209 = vector.load %arg8[%c1_102, %c0_103, %c0_104] : memref<2x1x64xf32, #tpu.memory_space<vmem>>, vector<1x1x64xf32>
    %210 = vector.shape_cast %209 : vector<1x1x64xf32> to vector<1x64xf32>
    %cst_105 = arith.constant dense<0.000000e+00> : vector<10xf32>
    %211 = vector.multi_reduction <add>, %206, %cst_105 [1] : vector<10x64xf32> to vector<10xf32>
    %212 = vector.shape_cast %211 : vector<10xf32> to vector<10x1xf32>
    %cst_106 = arith.constant 6.400000e+01 : f32
    %213 = vector.broadcast %cst_106 : f32 to vector<10x1xf32>
    %214 = arith.divf %212, %213 : vector<10x1xf32>
    %215 = vector.broadcast %214 : vector<10x1xf32> to vector<10x64xf32>
    %216 = arith.subf %206, %215 : vector<10x64xf32>
    %217 = arith.mulf %216, %216 : vector<10x64xf32>
    %cst_107 = arith.constant dense<0.000000e+00> : vector<10xf32>
    %218 = vector.multi_reduction <add>, %217, %cst_107 [1] : vector<10x64xf32> to vector<10xf32>
    %219 = vector.shape_cast %218 : vector<10xf32> to vector<10x1xf32>
    %cst_108 = arith.constant 6.400000e+01 : f32
    %220 = vector.broadcast %cst_108 : f32 to vector<10x1xf32>
    %221 = arith.divf %219, %220 : vector<10x1xf32>
    %cst_109 = arith.constant 9.99999996E-13 : f32
    %222 = vector.broadcast %cst_109 : f32 to vector<10x1xf32>
    %223 = arith.addf %221, %222 : vector<10x1xf32>
    %224 = math.rsqrt %223 : vector<10x1xf32>
    %225 = vector.broadcast %224 : vector<10x1xf32> to vector<10x64xf32>
    %226 = arith.mulf %216, %225 : vector<10x64xf32>
    %227 = vector.broadcast %208 : vector<1x64xf32> to vector<10x64xf32>
    %228 = arith.mulf %226, %227 : vector<10x64xf32>
    %229 = vector.broadcast %210 : vector<1x64xf32> to vector<10x64xf32>
    %230 = arith.addf %228, %229 : vector<10x64xf32>
    %c1_110 = arith.constant 1 : index
    %c0_111 = arith.constant 0 : index
    %c0_112 = arith.constant 0 : index
    %231 = vector.load %arg9[%c1_110, %c0_111, %c0_112] : memref<2x64x192xf32, #tpu.memory_space<vmem>>, vector<1x64x192xf32>
    %232 = vector.shape_cast %231 : vector<1x64x192xf32> to vector<64x192xf32>
    %cst_113 = arith.constant dense<0.000000e+00> : vector<10x192xf32>
    %233 = tpu.matmul %230, %232, %cst_113 {dimension_numbers = #tpu.dot_dimension_numbers<[1], [0], [0], [1], [0, 0, 1, 1], [], []>} : vector<10x64xf32>, vector<64x192xf32>, vector<10x192xf32> -> vector<10x192xf32>
    %c1_114 = arith.constant 1 : index
    %c0_115 = arith.constant 0 : index
    %c0_116 = arith.constant 0 : index
    %234 = vector.load %arg10[%c1_114, %c0_115, %c0_116] : memref<2x1x192xf32, #tpu.memory_space<vmem>>, vector<1x1x192xf32>
    %235 = vector.shape_cast %234 : vector<1x1x192xf32> to vector<1x192xf32>
    %236 = vector.broadcast %235 : vector<1x192xf32> to vector<10x192xf32>
    %237 = arith.addf %233, %236 : vector<10x192xf32>
    %c1_117 = arith.constant 1 : index
    %c0_118 = arith.constant 0 : index
    %c0_119 = arith.constant 0 : index
    %238 = vector.load %arg11[%c1_117, %c0_118, %c0_119] : memref<2x64x64xf32, #tpu.memory_space<vmem>>, vector<1x64x64xf32>
    %239 = vector.shape_cast %238 : vector<1x64x64xf32> to vector<64x64xf32>
    %240 = vector.extract_strided_slice %237 {offsets = [0, 0], sizes = [10, 16], strides = [1, 1]} : vector<10x192xf32> to vector<10x16xf32>
    %241 = vector.extract_strided_slice %237 {offsets = [0, 64], sizes = [10, 16], strides = [1, 1]} : vector<10x192xf32> to vector<10x16xf32>
    %242 = vector.extract_strided_slice %237 {offsets = [0, 128], sizes = [10, 16], strides = [1, 1]} : vector<10x192xf32> to vector<10x16xf32>
    %cst_120 = arith.constant dense<0.000000e+00> : vector<10x10xf32>
    %243 = tpu.matmul %240, %241, %cst_120 {dimension_numbers = #tpu.dot_dimension_numbers<[1], [1], [0], [0], [0, 0, 1, 0], [], []>} : vector<10x16xf32>, vector<10x16xf32>, vector<10x10xf32> -> vector<10x10xf32>
    %cst_121 = arith.constant 2.500000e-01 : f32
    %244 = vector.broadcast %cst_121 : f32 to vector<10x10xf32>
    %245 = arith.mulf %243, %244 : vector<10x10xf32>
    %246 = arith.addf %245, %10 : vector<10x10xf32>
    %cst_122 = arith.constant dense<0xFF800000> : vector<10xf32>
    %247 = vector.multi_reduction <maximumf>, %246, %cst_122 [1] : vector<10x10xf32> to vector<10xf32>
    %248 = vector.shape_cast %247 : vector<10xf32> to vector<10x1xf32>
    %249 = vector.broadcast %248 : vector<10x1xf32> to vector<10x10xf32>
    %250 = arith.subf %246, %249 : vector<10x10xf32>
    %251 = math.exp %250 : vector<10x10xf32>
    %cst_123 = arith.constant dense<0.000000e+00> : vector<10xf32>
    %252 = vector.multi_reduction <add>, %251, %cst_123 [1] : vector<10x10xf32> to vector<10xf32>
    %253 = vector.shape_cast %252 : vector<10xf32> to vector<10x1xf32>
    %254 = vector.broadcast %253 : vector<10x1xf32> to vector<10x10xf32>
    %255 = arith.divf %251, %254 : vector<10x10xf32>
    %cst_124 = arith.constant dense<0.000000e+00> : vector<10x16xf32>
    %256 = tpu.matmul %255, %242, %cst_124 {dimension_numbers = #tpu.dot_dimension_numbers<[1], [0], [0], [1], [0, 0, 1, 1], [], []>} : vector<10x10xf32>, vector<10x16xf32>, vector<10x16xf32> -> vector<10x16xf32>
    %257 = vector.extract_strided_slice %239 {offsets = [0, 0], sizes = [16, 64], strides = [1, 1]} : vector<64x64xf32> to vector<16x64xf32>
    %cst_125 = arith.constant dense<0.000000e+00> : vector<10x64xf32>
    %258 = tpu.matmul %256, %257, %cst_125 {dimension_numbers = #tpu.dot_dimension_numbers<[1], [0], [0], [1], [0, 0, 1, 1], [], []>} : vector<10x16xf32>, vector<16x64xf32>, vector<10x64xf32> -> vector<10x64xf32>
    %259 = vector.extract_strided_slice %237 {offsets = [0, 16], sizes = [10, 16], strides = [1, 1]} : vector<10x192xf32> to vector<10x16xf32>
    %260 = vector.extract_strided_slice %237 {offsets = [0, 80], sizes = [10, 16], strides = [1, 1]} : vector<10x192xf32> to vector<10x16xf32>
    %261 = vector.extract_strided_slice %237 {offsets = [0, 144], sizes = [10, 16], strides = [1, 1]} : vector<10x192xf32> to vector<10x16xf32>
    %cst_126 = arith.constant dense<0.000000e+00> : vector<10x10xf32>
    %262 = tpu.matmul %259, %260, %cst_126 {dimension_numbers = #tpu.dot_dimension_numbers<[1], [1], [0], [0], [0, 0, 1, 0], [], []>} : vector<10x16xf32>, vector<10x16xf32>, vector<10x10xf32> -> vector<10x10xf32>
    %cst_127 = arith.constant 2.500000e-01 : f32
    %263 = vector.broadcast %cst_127 : f32 to vector<10x10xf32>
    %264 = arith.mulf %262, %263 : vector<10x10xf32>
    %265 = arith.addf %264, %10 : vector<10x10xf32>
    %cst_128 = arith.constant dense<0xFF800000> : vector<10xf32>
    %266 = vector.multi_reduction <maximumf>, %265, %cst_128 [1] : vector<10x10xf32> to vector<10xf32>
    %267 = vector.shape_cast %266 : vector<10xf32> to vector<10x1xf32>
    %268 = vector.broadcast %267 : vector<10x1xf32> to vector<10x10xf32>
    %269 = arith.subf %265, %268 : vector<10x10xf32>
    %270 = math.exp %269 : vector<10x10xf32>
    %cst_129 = arith.constant dense<0.000000e+00> : vector<10xf32>
    %271 = vector.multi_reduction <add>, %270, %cst_129 [1] : vector<10x10xf32> to vector<10xf32>
    %272 = vector.shape_cast %271 : vector<10xf32> to vector<10x1xf32>
    %273 = vector.broadcast %272 : vector<10x1xf32> to vector<10x10xf32>
    %274 = arith.divf %270, %273 : vector<10x10xf32>
    %cst_130 = arith.constant dense<0.000000e+00> : vector<10x16xf32>
    %275 = tpu.matmul %274, %261, %cst_130 {dimension_numbers = #tpu.dot_dimension_numbers<[1], [0], [0], [1], [0, 0, 1, 1], [], []>} : vector<10x10xf32>, vector<10x16xf32>, vector<10x16xf32> -> vector<10x16xf32>
    %276 = vector.extract_strided_slice %239 {offsets = [16, 0], sizes = [16, 64], strides = [1, 1]} : vector<64x64xf32> to vector<16x64xf32>
    %cst_131 = arith.constant dense<0.000000e+00> : vector<10x64xf32>
    %277 = tpu.matmul %275, %276, %cst_131 {dimension_numbers = #tpu.dot_dimension_numbers<[1], [0], [0], [1], [0, 0, 1, 1], [], []>} : vector<10x16xf32>, vector<16x64xf32>, vector<10x64xf32> -> vector<10x64xf32>
    %278 = arith.addf %258, %277 : vector<10x64xf32>
    %279 = vector.extract_strided_slice %237 {offsets = [0, 32], sizes = [10, 16], strides = [1, 1]} : vector<10x192xf32> to vector<10x16xf32>
    %280 = vector.extract_strided_slice %237 {offsets = [0, 96], sizes = [10, 16], strides = [1, 1]} : vector<10x192xf32> to vector<10x16xf32>
    %281 = vector.extract_strided_slice %237 {offsets = [0, 160], sizes = [10, 16], strides = [1, 1]} : vector<10x192xf32> to vector<10x16xf32>
    %cst_132 = arith.constant dense<0.000000e+00> : vector<10x10xf32>
    %282 = tpu.matmul %279, %280, %cst_132 {dimension_numbers = #tpu.dot_dimension_numbers<[1], [1], [0], [0], [0, 0, 1, 0], [], []>} : vector<10x16xf32>, vector<10x16xf32>, vector<10x10xf32> -> vector<10x10xf32>
    %cst_133 = arith.constant 2.500000e-01 : f32
    %283 = vector.broadcast %cst_133 : f32 to vector<10x10xf32>
    %284 = arith.mulf %282, %283 : vector<10x10xf32>
    %285 = arith.addf %284, %10 : vector<10x10xf32>
    %cst_134 = arith.constant dense<0xFF800000> : vector<10xf32>
    %286 = vector.multi_reduction <maximumf>, %285, %cst_134 [1] : vector<10x10xf32> to vector<10xf32>
    %287 = vector.shape_cast %286 : vector<10xf32> to vector<10x1xf32>
    %288 = vector.broadcast %287 : vector<10x1xf32> to vector<10x10xf32>
    %289 = arith.subf %285, %288 : vector<10x10xf32>
    %290 = math.exp %289 : vector<10x10xf32>
    %cst_135 = arith.constant dense<0.000000e+00> : vector<10xf32>
    %291 = vector.multi_reduction <add>, %290, %cst_135 [1] : vector<10x10xf32> to vector<10xf32>
    %292 = vector.shape_cast %291 : vector<10xf32> to vector<10x1xf32>
    %293 = vector.broadcast %292 : vector<10x1xf32> to vector<10x10xf32>
    %294 = arith.divf %290, %293 : vector<10x10xf32>
    %cst_136 = arith.constant dense<0.000000e+00> : vector<10x16xf32>
    %295 = tpu.matmul %294, %281, %cst_136 {dimension_numbers = #tpu.dot_dimension_numbers<[1], [0], [0], [1], [0, 0, 1, 1], [], []>} : vector<10x10xf32>, vector<10x16xf32>, vector<10x16xf32> -> vector<10x16xf32>
    %296 = vector.extract_strided_slice %239 {offsets = [32, 0], sizes = [16, 64], strides = [1, 1]} : vector<64x64xf32> to vector<16x64xf32>
    %cst_137 = arith.constant dense<0.000000e+00> : vector<10x64xf32>
    %297 = tpu.matmul %295, %296, %cst_137 {dimension_numbers = #tpu.dot_dimension_numbers<[1], [0], [0], [1], [0, 0, 1, 1], [], []>} : vector<10x16xf32>, vector<16x64xf32>, vector<10x64xf32> -> vector<10x64xf32>
    %298 = arith.addf %278, %297 : vector<10x64xf32>
    %299 = vector.extract_strided_slice %237 {offsets = [0, 48], sizes = [10, 16], strides = [1, 1]} : vector<10x192xf32> to vector<10x16xf32>
    %300 = vector.extract_strided_slice %237 {offsets = [0, 112], sizes = [10, 16], strides = [1, 1]} : vector<10x192xf32> to vector<10x16xf32>
    %301 = vector.extract_strided_slice %237 {offsets = [0, 176], sizes = [10, 16], strides = [1, 1]} : vector<10x192xf32> to vector<10x16xf32>
    %cst_138 = arith.constant dense<0.000000e+00> : vector<10x10xf32>
    %302 = tpu.matmul %299, %300, %cst_138 {dimension_numbers = #tpu.dot_dimension_numbers<[1], [1], [0], [0], [0, 0, 1, 0], [], []>} : vector<10x16xf32>, vector<10x16xf32>, vector<10x10xf32> -> vector<10x10xf32>
    %cst_139 = arith.constant 2.500000e-01 : f32
    %303 = vector.broadcast %cst_139 : f32 to vector<10x10xf32>
    %304 = arith.mulf %302, %303 : vector<10x10xf32>
    %305 = arith.addf %304, %10 : vector<10x10xf32>
    %cst_140 = arith.constant dense<0xFF800000> : vector<10xf32>
    %306 = vector.multi_reduction <maximumf>, %305, %cst_140 [1] : vector<10x10xf32> to vector<10xf32>
    %307 = vector.shape_cast %306 : vector<10xf32> to vector<10x1xf32>
    %308 = vector.broadcast %307 : vector<10x1xf32> to vector<10x10xf32>
    %309 = arith.subf %305, %308 : vector<10x10xf32>
    %310 = math.exp %309 : vector<10x10xf32>
    %cst_141 = arith.constant dense<0.000000e+00> : vector<10xf32>
    %311 = vector.multi_reduction <add>, %310, %cst_141 [1] : vector<10x10xf32> to vector<10xf32>
    %312 = vector.shape_cast %311 : vector<10xf32> to vector<10x1xf32>
    %313 = vector.broadcast %312 : vector<10x1xf32> to vector<10x10xf32>
    %314 = arith.divf %310, %313 : vector<10x10xf32>
    %cst_142 = arith.constant dense<0.000000e+00> : vector<10x16xf32>
    %315 = tpu.matmul %314, %301, %cst_142 {dimension_numbers = #tpu.dot_dimension_numbers<[1], [0], [0], [1], [0, 0, 1, 1], [], []>} : vector<10x10xf32>, vector<10x16xf32>, vector<10x16xf32> -> vector<10x16xf32>
    %316 = vector.extract_strided_slice %239 {offsets = [48, 0], sizes = [16, 64], strides = [1, 1]} : vector<64x64xf32> to vector<16x64xf32>
    %cst_143 = arith.constant dense<0.000000e+00> : vector<10x64xf32>
    %317 = tpu.matmul %315, %316, %cst_143 {dimension_numbers = #tpu.dot_dimension_numbers<[1], [0], [0], [1], [0, 0, 1, 1], [], []>} : vector<10x16xf32>, vector<16x64xf32>, vector<10x64xf32> -> vector<10x64xf32>
    %318 = arith.addf %298, %317 : vector<10x64xf32>
    %319 = arith.addf %206, %318 : vector<10x64xf32>
    %c1_144 = arith.constant 1 : index
    %c0_145 = arith.constant 0 : index
    %c0_146 = arith.constant 0 : index
    %320 = vector.load %arg12[%c1_144, %c0_145, %c0_146] : memref<2x1x64xf32, #tpu.memory_space<vmem>>, vector<1x1x64xf32>
    %321 = vector.shape_cast %320 : vector<1x1x64xf32> to vector<1x64xf32>
    %322 = vector.broadcast %321 : vector<1x64xf32> to vector<10x64xf32>
    %323 = arith.addf %319, %322 : vector<10x64xf32>
    %c1_147 = arith.constant 1 : index
    %c0_148 = arith.constant 0 : index
    %c0_149 = arith.constant 0 : index
    %324 = vector.load %arg13[%c1_147, %c0_148, %c0_149] : memref<2x1x64xf32, #tpu.memory_space<vmem>>, vector<1x1x64xf32>
    %325 = vector.shape_cast %324 : vector<1x1x64xf32> to vector<1x64xf32>
    %c1_150 = arith.constant 1 : index
    %c0_151 = arith.constant 0 : index
    %c0_152 = arith.constant 0 : index
    %326 = vector.load %arg14[%c1_150, %c0_151, %c0_152] : memref<2x1x64xf32, #tpu.memory_space<vmem>>, vector<1x1x64xf32>
    %327 = vector.shape_cast %326 : vector<1x1x64xf32> to vector<1x64xf32>
    %cst_153 = arith.constant dense<0.000000e+00> : vector<10xf32>
    %328 = vector.multi_reduction <add>, %323, %cst_153 [1] : vector<10x64xf32> to vector<10xf32>
    %329 = vector.shape_cast %328 : vector<10xf32> to vector<10x1xf32>
    %cst_154 = arith.constant 6.400000e+01 : f32
    %330 = vector.broadcast %cst_154 : f32 to vector<10x1xf32>
    %331 = arith.divf %329, %330 : vector<10x1xf32>
    %332 = vector.broadcast %331 : vector<10x1xf32> to vector<10x64xf32>
    %333 = arith.subf %323, %332 : vector<10x64xf32>
    %334 = arith.mulf %333, %333 : vector<10x64xf32>
    %cst_155 = arith.constant dense<0.000000e+00> : vector<10xf32>
    %335 = vector.multi_reduction <add>, %334, %cst_155 [1] : vector<10x64xf32> to vector<10xf32>
    %336 = vector.shape_cast %335 : vector<10xf32> to vector<10x1xf32>
    %cst_156 = arith.constant 6.400000e+01 : f32
    %337 = vector.broadcast %cst_156 : f32 to vector<10x1xf32>
    %338 = arith.divf %336, %337 : vector<10x1xf32>
    %cst_157 = arith.constant 9.99999996E-13 : f32
    %339 = vector.broadcast %cst_157 : f32 to vector<10x1xf32>
    %340 = arith.addf %338, %339 : vector<10x1xf32>
    %341 = math.rsqrt %340 : vector<10x1xf32>
    %342 = vector.broadcast %341 : vector<10x1xf32> to vector<10x64xf32>
    %343 = arith.mulf %333, %342 : vector<10x64xf32>
    %344 = vector.broadcast %325 : vector<1x64xf32> to vector<10x64xf32>
    %345 = arith.mulf %343, %344 : vector<10x64xf32>
    %346 = vector.broadcast %327 : vector<1x64xf32> to vector<10x64xf32>
    %347 = arith.addf %345, %346 : vector<10x64xf32>
    %c1_158 = arith.constant 1 : index
    %c0_159 = arith.constant 0 : index
    %c0_160 = arith.constant 0 : index
    %348 = vector.load %arg15[%c1_158, %c0_159, %c0_160] : memref<2x64x128xf32, #tpu.memory_space<vmem>>, vector<1x64x128xf32>
    %349 = vector.shape_cast %348 : vector<1x64x128xf32> to vector<64x128xf32>
    %cst_161 = arith.constant dense<0.000000e+00> : vector<10x128xf32>
    %350 = tpu.matmul %347, %349, %cst_161 {dimension_numbers = #tpu.dot_dimension_numbers<[1], [0], [0], [1], [0, 0, 1, 1], [], []>} : vector<10x64xf32>, vector<64x128xf32>, vector<10x128xf32> -> vector<10x128xf32>
    %c1_162 = arith.constant 1 : index
    %c0_163 = arith.constant 0 : index
    %c0_164 = arith.constant 0 : index
    %351 = vector.load %arg16[%c1_162, %c0_163, %c0_164] : memref<2x1x128xf32, #tpu.memory_space<vmem>>, vector<1x1x128xf32>
    %352 = vector.shape_cast %351 : vector<1x1x128xf32> to vector<1x128xf32>
    %353 = vector.broadcast %352 : vector<1x128xf32> to vector<10x128xf32>
    %354 = arith.addf %350, %353 : vector<10x128xf32>
    %cst_165 = arith.constant 5.000000e-01 : f32
    %355 = vector.broadcast %cst_165 : f32 to vector<10x128xf32>
    %356 = arith.mulf %355, %354 : vector<10x128xf32>
    %cst_166 = arith.constant 0.707106769 : f32
    %357 = vector.broadcast %cst_166 : f32 to vector<10x128xf32>
    %358 = arith.mulf %354, %357 : vector<10x128xf32>
    %359 = math.absf %358 : vector<10x128xf32>
    %cst_167 = arith.constant 0.327591091 : f32
    %360 = vector.broadcast %cst_167 : f32 to vector<10x128xf32>
    %361 = arith.mulf %360, %359 : vector<10x128xf32>
    %cst_168 = arith.constant 1.000000e+00 : f32
    %362 = vector.broadcast %cst_168 : f32 to vector<10x128xf32>
    %363 = arith.addf %362, %361 : vector<10x128xf32>
    %cst_169 = arith.constant 1.000000e+00 : f32
    %364 = vector.broadcast %cst_169 : f32 to vector<10x128xf32>
    %365 = arith.divf %364, %363 : vector<10x128xf32>
    %cst_170 = arith.constant 1.06140542 : f32
    %366 = vector.broadcast %cst_170 : f32 to vector<10x128xf32>
    %367 = arith.mulf %366, %365 : vector<10x128xf32>
    %cst_171 = arith.constant -1.45315206 : f32
    %368 = vector.broadcast %cst_171 : f32 to vector<10x128xf32>
    %369 = arith.addf %367, %368 : vector<10x128xf32>
    %370 = arith.mulf %369, %365 : vector<10x128xf32>
    %cst_172 = arith.constant 1.42141378 : f32
    %371 = vector.broadcast %cst_172 : f32 to vector<10x128xf32>
    %372 = arith.addf %370, %371 : vector<10x128xf32>
    %373 = arith.mulf %372, %365 : vector<10x128xf32>
    %cst_173 = arith.constant -0.284496725 : f32
    %374 = vector.broadcast %cst_173 : f32 to vector<10x128xf32>
    %375 = arith.addf %373, %374 : vector<10x128xf32>
    %376 = arith.mulf %375, %365 : vector<10x128xf32>
    %cst_174 = arith.constant 0.254829586 : f32
    %377 = vector.broadcast %cst_174 : f32 to vector<10x128xf32>
    %378 = arith.addf %376, %377 : vector<10x128xf32>
    %379 = arith.mulf %378, %365 : vector<10x128xf32>
    %cst_175 = arith.constant 0.000000e+00 : f32
    %380 = vector.broadcast %cst_175 : f32 to vector<10x128xf32>
    %381 = arith.subf %380, %359 : vector<10x128xf32>
    %382 = arith.mulf %381, %359 : vector<10x128xf32>
    %383 = math.exp %382 : vector<10x128xf32>
    %384 = arith.mulf %379, %383 : vector<10x128xf32>
    %cst_176 = arith.constant 1.000000e+00 : f32
    %385 = vector.broadcast %cst_176 : f32 to vector<10x128xf32>
    %386 = arith.subf %385, %384 : vector<10x128xf32>
    %cst_177 = arith.constant 0.000000e+00 : f32
    %387 = vector.broadcast %cst_177 : f32 to vector<10x128xf32>
    %388 = arith.cmpf oge, %358, %387 : vector<10x128xf32>
    %cst_178 = arith.constant 0.000000e+00 : f32
    %389 = vector.broadcast %cst_178 : f32 to vector<10x128xf32>
    %390 = arith.subf %389, %386 : vector<10x128xf32>
    %391 = arith.select %388, %386, %390 : vector<10x128xi1>, vector<10x128xf32>
    %cst_179 = arith.constant 1.000000e+00 : f32
    %392 = vector.broadcast %cst_179 : f32 to vector<10x128xf32>
    %393 = arith.addf %392, %391 : vector<10x128xf32>
    %394 = arith.mulf %356, %393 : vector<10x128xf32>
    %c1_180 = arith.constant 1 : index
    %c0_181 = arith.constant 0 : index
    %c0_182 = arith.constant 0 : index
    %395 = vector.load %arg17[%c1_180, %c0_181, %c0_182] : memref<2x128x64xf32, #tpu.memory_space<vmem>>, vector<1x128x64xf32>
    %396 = vector.shape_cast %395 : vector<1x128x64xf32> to vector<128x64xf32>
    %cst_183 = arith.constant dense<0.000000e+00> : vector<10x64xf32>
    %397 = tpu.matmul %394, %396, %cst_183 {dimension_numbers = #tpu.dot_dimension_numbers<[1], [0], [0], [1], [0, 0, 1, 1], [], []>} : vector<10x128xf32>, vector<128x64xf32>, vector<10x64xf32> -> vector<10x64xf32>
    %398 = arith.addf %323, %397 : vector<10x64xf32>
    %c1_184 = arith.constant 1 : index
    %c0_185 = arith.constant 0 : index
    %c0_186 = arith.constant 0 : index
    %399 = vector.load %arg18[%c1_184, %c0_185, %c0_186] : memref<2x1x64xf32, #tpu.memory_space<vmem>>, vector<1x1x64xf32>
    %400 = vector.shape_cast %399 : vector<1x1x64xf32> to vector<1x64xf32>
    %401 = vector.broadcast %400 : vector<1x64xf32> to vector<10x64xf32>
    %402 = arith.addf %398, %401 : vector<10x64xf32>
    %c0_187 = arith.constant 0 : index
    %c0_188 = arith.constant 0 : index
    %403 = vector.load %arg19[%c0_187, %c0_188] : memref<1x64xf32, #tpu.memory_space<vmem>>, vector<1x64xf32>
    %c0_189 = arith.constant 0 : index
    %c0_190 = arith.constant 0 : index
    %404 = vector.load %arg20[%c0_189, %c0_190] : memref<1x64xf32, #tpu.memory_space<vmem>>, vector<1x64xf32>
    %cst_191 = arith.constant dense<0.000000e+00> : vector<10xf32>
    %405 = vector.multi_reduction <add>, %402, %cst_191 [1] : vector<10x64xf32> to vector<10xf32>
    %406 = vector.shape_cast %405 : vector<10xf32> to vector<10x1xf32>
    %cst_192 = arith.constant 6.400000e+01 : f32
    %407 = vector.broadcast %cst_192 : f32 to vector<10x1xf32>
    %408 = arith.divf %406, %407 : vector<10x1xf32>
    %409 = vector.broadcast %408 : vector<10x1xf32> to vector<10x64xf32>
    %410 = arith.subf %402, %409 : vector<10x64xf32>
    %411 = arith.mulf %410, %410 : vector<10x64xf32>
    %cst_193 = arith.constant dense<0.000000e+00> : vector<10xf32>
    %412 = vector.multi_reduction <add>, %411, %cst_193 [1] : vector<10x64xf32> to vector<10xf32>
    %413 = vector.shape_cast %412 : vector<10xf32> to vector<10x1xf32>
    %cst_194 = arith.constant 6.400000e+01 : f32
    %414 = vector.broadcast %cst_194 : f32 to vector<10x1xf32>
    %415 = arith.divf %413, %414 : vector<10x1xf32>
    %cst_195 = arith.constant 9.99999996E-13 : f32
    %416 = vector.broadcast %cst_195 : f32 to vector<10x1xf32>
    %417 = arith.addf %415, %416 : vector<10x1xf32>
    %418 = math.rsqrt %417 : vector<10x1xf32>
    %419 = vector.broadcast %418 : vector<10x1xf32> to vector<10x64xf32>
    %420 = arith.mulf %410, %419 : vector<10x64xf32>
    %421 = vector.broadcast %403 : vector<1x64xf32> to vector<10x64xf32>
    %422 = arith.mulf %420, %421 : vector<10x64xf32>
    %423 = vector.broadcast %404 : vector<1x64xf32> to vector<10x64xf32>
    %424 = arith.addf %422, %423 : vector<10x64xf32>
    %c0_196 = arith.constant 0 : index
    %c0_197 = arith.constant 0 : index
    %425 = vector.load %arg6[%c0_196, %c0_197] : memref<2x10xf32, #tpu.memory_space<vmem>>, vector<2x10xf32>
    %cst_198 = arith.constant dense<0.000000e+00> : vector<2x64xf32>
    %426 = tpu.matmul %425, %424, %cst_198 {dimension_numbers = #tpu.dot_dimension_numbers<[1], [0], [0], [1], [0, 0, 1, 1], [], []>} : vector<2x10xf32>, vector<10x64xf32>, vector<2x64xf32> -> vector<2x64xf32>
    %c0_199 = arith.constant 0 : index
    %c0_200 = arith.constant 0 : index
    %427 = vector.load %arg21[%c0_199, %c0_200] : memref<64x64xf32, #tpu.memory_space<vmem>>, vector<64x64xf32>
    %cst_201 = arith.constant dense<0.000000e+00> : vector<2x64xf32>
    %428 = tpu.matmul %426, %427, %cst_201 {dimension_numbers = #tpu.dot_dimension_numbers<[1], [0], [0], [1], [0, 0, 1, 1], [], []>} : vector<2x64xf32>, vector<64x64xf32>, vector<2x64xf32> -> vector<2x64xf32>
    %c0_202 = arith.constant 0 : index
    %c0_203 = arith.constant 0 : index
    %429 = vector.load %arg22[%c0_202, %c0_203] : memref<1x64xf32, #tpu.memory_space<vmem>>, vector<1x64xf32>
    %430 = vector.broadcast %429 : vector<1x64xf32> to vector<2x64xf32>
    %431 = arith.addf %428, %430 : vector<2x64xf32>
    %432 = math.tanh %431 : vector<2x64xf32>
    %c0_204 = arith.constant 0 : index
    %c0_205 = arith.constant 0 : index
    %433 = vector.load %arg23[%c0_204, %c0_205] : memref<64x3xf32, #tpu.memory_space<vmem>>, vector<64x3xf32>
    %cst_206 = arith.constant dense<0.000000e+00> : vector<2x3xf32>
    %434 = tpu.matmul %432, %433, %cst_206 {dimension_numbers = #tpu.dot_dimension_numbers<[1], [0], [0], [1], [0, 0, 1, 1], [], []>} : vector<2x64xf32>, vector<64x3xf32>, vector<2x3xf32> -> vector<2x3xf32>
    %c0_207 = arith.constant 0 : index
    %c0_208 = arith.constant 0 : index
    %435 = vector.load %arg24[%c0_207, %c0_208] : memref<1x3xf32, #tpu.memory_space<vmem>>, vector<1x3xf32>
    %436 = vector.broadcast %435 : vector<1x3xf32> to vector<2x3xf32>
    %437 = arith.addf %434, %436 : vector<2x3xf32>
    %c0_209 = arith.constant 0 : index
    %c0_210 = arith.constant 0 : index
    %438 = vector.load %arg25[%c0_209, %c0_210] : memref<2x3xf32, #tpu.memory_space<vmem>>, vector<2x3xf32>
    tpu.vector_store %arg25[%c0_209, %c0_210], %437 {strides = array<i32>} : memref<2x3xf32, #tpu.memory_space<vmem>>, vector<2x3xf32>,
    return
  }
}

</mosaic_0001>

<llo_original>
// kernel: tile.9
$region0: #{tile.9}
  %s0 = inlined_call_operand.vmem [shape: f32[2,5,64], index: 0, kind: input, shape index: {}]
  %s1 = inlined_call_operand.vmem [shape: f32[10,64], index: 1, kind: output, shape index: {}]
  %v2 = vld [vmem:[%s0] sm:$0x1f]
  %vm3 = vcmask 523264
  %4 = vst.msk [vmem:[%s1] sm:$0x1f] %vm3, %v2
  %s5 = scalar_lea.vmem %s0, 8
  %v6 = vld [vmem:[%s5] sm:$0x1f]
  %vm7 = vcmask 523264
  %s8 = scalar_lea.vmem %s1, 5
  %9 = vst.msk [vmem:[%s8] sm:$0x1f] %vm7, %v6

// kernel: vit_classifier_forward.1
$region0: #{vit_classifier_forward.1}
  #allocation0 [shape = 'u32[]', space=smem, size = 0x4, offset = 0x4, fixed_abs, tag = 'smem constant byte address 0x4 - core index']
  #allocation1 [shape = 'u32[144,128]{1,0:T(1,128)}', space=vmem, size = 0x12000, scoped, tag = 'internal scratch']
  %s0 = inlined_call_operand.vmem [shape: f32[8,192], index: 0, kind: input, shape index: {}]
  %s1 = inlined_call_operand.vmem [shape: f32[192,64], index: 1, kind: input, shape index: {}]
  %s2 = inlined_call_operand.vmem [shape: f32[1,64], index: 2, kind: input, shape index: {}]
  %s3 = inlined_call_operand.vmem [shape: f32[10,8], index: 3, kind: input, shape index: {}]
  %s4 = inlined_call_operand.vmem [shape: f32[10,64], index: 4, kind: input, shape index: {}]
  %s5 = inlined_call_operand.vmem [shape: f32[10,10], index: 5, kind: input, shape index: {}]
  %s6 = inlined_call_operand.vmem [shape: f32[2,10], index: 6, kind: input, shape index: {}]
  %s7 = inlined_call_operand.vmem [shape: f32[2,1,64], index: 7, kind: input, shape index: {}]
  %s8 = inlined_call_operand.vmem [shape: f32[2,1,64], index: 8, kind: input, shape index: {}]
  %s9 = inlined_call_operand.vmem [shape: f32[2,64,192], index: 9, kind: input, shape index: {}]
  %s10 = inlined_call_operand.vmem [shape: f32[2,1,192], index: 10, kind: input, shape index: {}]
  %s11 = inlined_call_operand.vmem [shape: f32[2,64,64], index: 11, kind: input, shape index: {}]
  %s12 = inlined_call_operand.vmem [shape: f32[2,1,64], index: 12, kind: input, shape index: {}]
  %s13 = inlined_call_operand.vmem [shape: f32[2,1,64], index: 13, kind: input, shape index: {}]
  %s14 = inlined_call_operand.vmem [shape: f32[2,1,64], index: 14, kind: input, shape index: {}]
  %s15 = inlined_call_operand.vmem [shape: f32[2,64,128], index: 15, kind: input, shape index: {}]
  %s16 = inlined_call_operand.vmem [shape: f32[2,1,128], index: 16, kind: input, shape index: {}]
  %s17 = inlined_call_operand.vmem [shape: f32[2,128,64], index: 17, kind: input, shape index: {}]
  %s18 = inlined_call_operand.vmem [shape: f32[2,1,64], index: 18, kind: input, shape index: {}]
  %s19 = inlined_call_operand.vmem [shape: f32[1,64], index: 19, kind: input, shape index: {}]
  %s20 = inlined_call_operand.vmem [shape: f32[1,64], index: 20, kind: input, shape index: {}]
  %s21 = inlined_call_operand.vmem [shape: f32[64,64], index: 21, kind: input, shape index: {}]
  %s22 = inlined_call_operand.vmem [shape: f32[1,64], index: 22, kind: input, shape index: {}]
  %s23 = inlined_call_operand.vmem [shape: f32[64,3], index: 23, kind: input, shape index: {}]
  %s24 = inlined_call_operand.vmem [shape: f32[1,3], index: 24, kind: input, shape index: {}]
  %s25 = inlined_call_operand.hbm [shape: f32[2,3], index: 25, kind: output, shape index: {}]
  %s26 = sld [smem:[#allocation0]]
  $region110: #{vit_classifier_forward.1} parent=0
    _
  %s28 = ssub.s32 1, %s26
  %s29 = scalar_select 0, %s28, %s26
  $region1: #{vit_classifier_forward.1} parent=0
    #allocation2 [shape = 'u8[1024]{0}', space=vmem, size = 0x400, scoped, tag = 'output window, operand 0, single buffered']
    #allocation3 [shape = 's32[1]{0}', space=sflag, size = 0x4, scoped, tag = 'scoped memory for vit_classifier_forward.1']
    %30 = vsyncpa [#allocation3], 0
    // Predicated region
    $region2: #{vit_classifier_forward.1} parent=1 // pred_check
      _
    $region3: #{vit_classifier_forward.1} parent=1 // pred_check_branch
      %32 = sbr.rel (0) target = $region5
    $region4: #{vit_classifier_forward.1} parent=1 // pred_region
      _
    $region5: #{vit_classifier_forward.1} parent=1 // pred_fallthru
      _
    // Predicated region
    $region6: #{vit_classifier_forward.1} parent=1 // pred_check
      _
    $region7: #{vit_classifier_forward.1} parent=1 // pred_check_branch
      %34 = sbr.rel (0) target = $region9
    $region8: #{vit_classifier_forward.1} parent=1 // pred_region
      _
    $region9: #{vit_classifier_forward.1} parent=1 // pred_fallthru
      _
    // Predicated region
    $region10: #{vit_classifier_forward.1} parent=1 // pred_check
      _
    $region11: #{vit_classifier_forward.1} parent=1 // pred_check_branch
      %36 = sbr.rel (0) target = $region13
    $region12: #{vit_classifier_forward.1} parent=1 // pred_region
      _
    $region13: #{vit_classifier_forward.1} parent=1 // pred_fallthru
      _
    // Predicated region
    $region14: #{vit_classifier_forward.1} parent=1 // pred_check
      _
    $region15: #{vit_classifier_forward.1} parent=1 // pred_check_branch
      %38 = sbr.rel (0) target = $region17
    $region16: #{vit_classifier_forward.1} parent=1 // pred_region
      _
    $region17: #{vit_classifier_forward.1} parent=1 // pred_fallthru
      _
    // Predicated region
    $region18: #{vit_classifier_forward.1} parent=1 // pred_check
      _
    $region19: #{vit_classifier_forward.1} parent=1 // pred_check_branch
      %40 = sbr.rel (0) target = $region21
    $region20: #{vit_classifier_forward.1} parent=1 // pred_region
      _
    $region21: #{vit_classifier_forward.1} parent=1 // pred_fallthru
      _
    // Predicated region
    $region22: #{vit_classifier_forward.1} parent=1 // pred_check
      _
    $region23: #{vit_classifier_forward.1} parent=1 // pred_check_branch
      %42 = sbr.rel (0) target = $region25
    $region24: #{vit_classifier_forward.1} parent=1 // pred_region
      _
    $region25: #{vit_classifier_forward.1} parent=1 // pred_fallthru
      _
    // Predicated region
    $region26: #{vit_classifier_forward.1} parent=1 // pred_check
      _
    $region27: #{vit_classifier_forward.1} parent=1 // pred_check_branch
      %44 = sbr.rel (0) target = $region29
    $region28: #{vit_classifier_forward.1} parent=1 // pred_region
      _
    $region29: #{vit_classifier_forward.1} parent=1 // pred_fallthru
      _
    // Predicated region
    $region30: #{vit_classifier_forward.1} parent=1 // pred_check
      _
    $region31: #{vit_classifier_forward.1} parent=1 // pred_check_branch
      %46 = sbr.rel (0) target = $region33
    $region32: #{vit_classifier_forward.1} parent=1 // pred_region
      _
    $region33: #{vit_classifier_forward.1} parent=1 // pred_fallthru
      _
    // Predicated region
    $region34: #{vit_classifier_forward.1} parent=1 // pred_check
      _
    $region35: #{vit_classifier_forward.1} parent=1 // pred_check_branch
      %48 = sbr.rel (0) target = $region37
    $region36: #{vit_classifier_forward.1} parent=1 // pred_region
      _
    $region37: #{vit_classifier_forward.1} parent=1 // pred_fallthru
      _
    // Predicated region
    $region38: #{vit_classifier_forward.1} parent=1 // pred_check
      _
    $region39: #{vit_classifier_forward.1} parent=1 // pred_check_branch
      %50 = sbr.rel (0) target = $region41
    $region40: #{vit_classifier_forward.1} parent=1 // pred_region
      _
    $region41: #{vit_classifier_forward.1} parent=1 // pred_fallthru
      _
    // Predicated region
    $region42: #{vit_classifier_forward.1} parent=1 // pred_check
      _
    $region43: #{vit_classifier_forward.1} parent=1 // pred_check_branch
      %52 = sbr.rel (0) target = $region45
    $region44: #{vit_classifier_forward.1} parent=1 // pred_region
      _
    $region45: #{vit_classifier_forward.1} parent=1 // pred_fallthru
      _
    // Predicated region
    $region46: #{vit_classifier_forward.1} parent=1 // pred_check
      _
    $region47: #{vit_classifier_forward.1} parent=1 // pred_check_branch
      %54 = sbr.rel (0) target = $region49
    $region48: #{vit_classifier_forward.1} parent=1 // pred_region
      _
    $region49: #{vit_classifier_forward.1} parent=1 // pred_fallthru
      _
    // Predicated region
    $region50: #{vit_classifier_forward.1} parent=1 // pred_check
      _
    $region51: #{vit_classifier_forward.1} parent=1 // pred_check_branch
      %56 = sbr.rel (0) target = $region53
    $region52: #{vit_classifier_forward.1} parent=1 // pred_region
      _
    $region53: #{vit_classifier_forward.1} parent=1 // pred_fallthru
      _
    // Predicated region
    $region54: #{vit_classifier_forward.1} parent=1 // pred_check
      _
    $region55: #{vit_classifier_forward.1} parent=1 // pred_check_branch
      %58 = sbr.rel (0) target = $region57
    $region56: #{vit_classifier_forward.1} parent=1 // pred_region
      _
    $region57: #{vit_classifier_forward.1} parent=1 // pred_fallthru
      _
    // Predicated region
    $region58: #{vit_classifier_forward.1} parent=1 // pred_check
      _
    $region59: #{vit_classifier_forward.1} parent=1 // pred_check_branch
      %60 = sbr.rel (0) target = $region61
    $region60: #{vit_classifier_forward.1} parent=1 // pred_region
      _
    $region61: #{vit_classifier_forward.1} parent=1 // pred_fallthru
      _
    // Predicated region
    $region62: #{vit_classifier_forward.1} parent=1 // pred_check
      _
    $region63: #{vit_classifier_forward.1} parent=1 // pred_check_branch
      %62 = sbr.rel (0) target = $region65
    $region64: #{vit_classifier_forward.1} parent=1 // pred_region
      _
    $region65: #{vit_classifier_forward.1} parent=1 // pred_fallthru
      _
    // Predicated region
    $region66: #{vit_classifier_forward.1} parent=1 // pred_check
      _
    $region67: #{vit_classifier_forward.1} parent=1 // pred_check_branch
      %64 = sbr.rel (0) target = $region69
    $region68: #{vit_classifier_forward.1} parent=1 // pred_region
      _
    $region69: #{vit_classifier_forward.1} parent=1 // pred_fallthru
      _
    // Predicated region
    $region70: #{vit_classifier_forward.1} parent=1 // pred_check
      _
    $region71: #{vit_classifier_forward.1} parent=1 // pred_check_branch
      %66 = sbr.rel (0) target = $region73
    $region72: #{vit_classifier_forward.1} parent=1 // pred_region
      _
    $region73: #{vit_classifier_forward.1} parent=1 // pred_fallthru
      _
    // Predicated region
    $region74: #{vit_classifier_forward.1} parent=1 // pred_check
      _
    $region75: #{vit_classifier_forward.1} parent=1 // pred_check_branch
      %68 = sbr.rel (0) target = $region77
    $region76: #{vit_classifier_forward.1} parent=1 // pred_region
      _
    $region77: #{vit_classifier_forward.1} parent=1 // pred_fallthru
      _
    // Predicated region
    $region78: #{vit_classifier_forward.1} parent=1 // pred_check
      _
    $region79: #{vit_classifier_forward.1} parent=1 // pred_check_branch
      %70 = sbr.rel (0) target = $region81
    $region80: #{vit_classifier_forward.1} parent=1 // pred_region
      _
    $region81: #{vit_classifier_forward.1} parent=1 // pred_fallthru
      _
    // Predicated region
    $region82: #{vit_classifier_forward.1} parent=1 // pred_check
      _
    $region83: #{vit_classifier_forward.1} parent=1 // pred_check_branch
      %72 = sbr.rel (0) target = $region85
    $region84: #{vit_classifier_forward.1} parent=1 // pred_region
      _
    $region85: #{vit_classifier_forward.1} parent=1 // pred_fallthru
      _
    // Predicated region
    $region86: #{vit_classifier_forward.1} parent=1 // pred_check
      _
    $region87: #{vit_classifier_forward.1} parent=1 // pred_check_branch
      %74 = sbr.rel (0) target = $region89
    $region88: #{vit_classifier_forward.1} parent=1 // pred_region
      _
    $region89: #{vit_classifier_forward.1} parent=1 // pred_fallthru
      _
    // Predicated region
    $region90: #{vit_classifier_forward.1} parent=1 // pred_check
      _
    $region91: #{vit_classifier_forward.1} parent=1 // pred_check_branch
      %76 = sbr.rel (0) target = $region93
    $region92: #{vit_classifier_forward.1} parent=1 // pred_region
      _
    $region93: #{vit_classifier_forward.1} parent=1 // pred_fallthru
      _
    // Predicated region
    $region94: #{vit_classifier_forward.1} parent=1 // pred_check
      _
    $region95: #{vit_classifier_forward.1} parent=1 // pred_check_branch
      %78 = sbr.rel (0) target = $region97
    $region96: #{vit_classifier_forward.1} parent=1 // pred_region
      _
    $region97: #{vit_classifier_forward.1} parent=1 // pred_fallthru
      _
    // Predicated region
    $region98: #{vit_classifier_forward.1} parent=1 // pred_check
      _
    $region99: #{vit_classifier_forward.1} parent=1 // pred_check_branch
      %80 = sbr.rel (0) target = $region101
    $region100: #{vit_classifier_forward.1} parent=1 // pred_region
      _
    $region101: #{vit_classifier_forward.1} parent=1 // pred_fallthru
      _
    %v81 = vld [vmem:[%s0] sm:$0xff]
    %v82 = vld [vmem:[%s0 + $0x8] sm:$0xff]
    %v83 = vld [vmem:[%s1] sm:$0xff]
    %v84 = vld [vmem:[%s1 + $0x8] sm:$0xff]
    %v85 = vld [vmem:[%s1 + $0x10] sm:$0xff]
    %v86 = vld [vmem:[%s1 + $0x18] sm:$0xff]
    %v87 = vld [vmem:[%s1 + $0x20] sm:$0xff]
    %v88 = vld [vmem:[%s1 + $0x28] sm:$0xff]
    %v89 = vld [vmem:[%s1 + $0x30] sm:$0xff]
    %v90 = vld [vmem:[%s1 + $0x38] sm:$0xff]
    %v91 = vld [vmem:[%s1 + $0x40] sm:$0xff]
    %v92 = vld [vmem:[%s1 + $0x48] sm:$0xff]
    %v93 = vld [vmem:[%s1 + $0x50] sm:$0xff]
    %v94 = vld [vmem:[%s1 + $0x58] sm:$0xff]
    %v95 = vld [vmem:[%s1 + $0x60] sm:$0xff]
    %v96 = vld [vmem:[%s1 + $0x68] sm:$0xff]
    %v97 = vld [vmem:[%s1 + $0x70] sm:$0xff]
    %v98 = vld [vmem:[%s1 + $0x78] sm:$0xff]
    %v99 = vld [vmem:[%s1 + $0x80] sm:$0xff]
    %v100 = vld [vmem:[%s1 + $0x88] sm:$0xff]
    %v101 = vld [vmem:[%s1 + $0x90] sm:$0xff]
    %v102 = vld [vmem:[%s1 + $0x98] sm:$0xff]
    %v103 = vld [vmem:[%s1 + $0xa0] sm:$0xff]
    %v104 = vld [vmem:[%s1 + $0xa8] sm:$0xff]
    %v105 = vld [vmem:[%s1 + $0xb0] sm:$0xff]
    %v106 = vld [vmem:[%s1 + $0xb8] sm:$0xff]
    %v107 = vld [vmem:[%s2] sm:$0x1]
    %v109 = vlaneseq
    %v110 = vshrl.u32 %v109, 7
    %v111 = vsub.s32 0, %v110
    %v112 = vrot.slane %v107, %v111
    %vm114 = vcmask 523264
    %v116 = vsel %vm114, %v82, 0
    %118 = vmatprep.subr.mxu0 0.0
    %119 = vmatpush1.msra.mxu0 %v83
    %120 = vmatprep.subr.mxu0 0.0
    %121 = vmatpush1.msra.mxu0 %v84
    %122 = vmatprep.subr.mxu0 0.0
    %123 = vmatpush1.msra.mxu0 %v85
    %124 = vmatprep.subr.mxu0 0.0
    %125 = vmatpush1.msra.mxu0 %v86
    %126 = vmatprep.subr.mxu0 0.0
    %127 = vmatpush1.msra.mxu0 %v87
    %128 = vmatprep.subr.mxu0 0.0
    %129 = vmatpush1.msra.mxu0 %v88
    %130 = vmatprep.subr.mxu0 0.0
    %131 = vmatpush1.msra.mxu0 %v89
    %132 = vmatprep.subr.mxu0 0.0
    %133 = vmatpush1.msra.mxu0 %v90
    %134 = vmatprep.subr.mxu0 0.0
    %135 = vmatpush1.msra.mxu0 %v91
    %136 = vmatprep.subr.mxu0 0.0
    %137 = vmatpush1.msra.mxu0 %v92
    %138 = vmatprep.subr.mxu0 0.0
    %139 = vmatpush1.msra.mxu0 %v93
    %140 = vmatprep.subr.mxu0 0.0
    %141 = vmatpush1.msra.mxu0 %v94
    %142 = vmatprep.subr.mxu0 0.0
    %143 = vmatpush1.msra.mxu0 %v95
    %144 = vmatprep.subr.mxu0 0.0
    %145 = vmatpush1.msra.mxu0 %v96
    %146 = vmatprep.subr.mxu0 0.0
    %147 = vmatpush1.msra.mxu0 %v97
    %148 = vmatprep.subr.mxu0 0.0
    %149 = vmatpush1.msra.mxu0 %v98
    %150 = vmatprep.subr.mxu0 0.0
    %151 = vmatpush1.msra.mxu0 %v99
    %152 = vmatprep.subr.mxu0 0.0
    %153 = vmatpush1.msra.mxu0 %v100
    %154 = vmatprep.subr.mxu0 0.0
    %155 = vmatpush1.msra.mxu0 %v101
    %156 = vmatprep.subr.mxu0 0.0
    %157 = vmatpush1.msra.mxu0 %v102
    %158 = vmatprep.subr.mxu0 0.0
    %159 = vmatpush1.msra.mxu0 %v103
    %160 = vmatprep.subr.mxu0 0.0
    %161 = vmatpush1.msra.mxu0 %v104
    %162 = vmatprep.subr.mxu0 0.0
    %163 = vmatpush1.msra.mxu0 %v105
    %164 = vmatprep.subr.mxu0 0.0
    %165 = vmatpush1.msra.mxu0 %v106
    %166 = vmatprep.subr.mxu0 0.0
    %167 = vmatpush1.msra.mxu0 0.0
    %168 = vmatprep.subr.mxu0 0.0
    %169 = vmatpush1.msra.mxu0 0.0
    %170 = vmatprep.subr.mxu0 0.0
    %171 = vmatpush1.msra.mxu0 0.0
    %172 = vmatprep.subr.mxu0 0.0
    %173 = vmatpush1.msra.mxu0 0.0
    %174 = vmatprep.subr.mxu0 0.0
    %175 = vmatpush1.msra.mxu0 0.0
    %176 = vmatprep.subr.mxu0 0.0
    %177 = vmatpush1.msra.mxu0 0.0
    %178 = vmatprep.subr.mxu0 0.0
    %179 = vmatpush1.msra.mxu0 0.0
    %180 = vmatprep.subr.mxu0 0.0
    %181 = vmatpush1.msra.mxu0 0.0
    %182 = vmatprep.mubr.f32.mxu0 %v116
    %183 = vmatmul.mubr.f32.gmra.mrb[0].mxu0 %v81
    %v184 = vpop.f32.mrb[0].mxu0
    %v185 = vadd.f32 %v112, %v184
    %v186 = vpop.f32.mrb[0].mxu0
    %187 = vdwg.mxu0
    %v188 = vld [vmem:[%s3] sm:$0xff]
    %v189 = vld [vmem:[%s3 + $0x8] sm:$0x3]
    %v190 = vld [vmem:[%s4] sm:$0xff]
    %v191 = vld [vmem:[%s4 + $0x8] sm:$0x3]
    %vm192 = vcmask 64512
    %v194 = vsel %vm192, %v188, 0
    %v197 = vsel %vm192, %v189, 0
    %199 = vmatprep.subr.mxu0 0.0
    %200 = vmatpush1.msra.mxu0 %v185
    %201 = vmatprep.subr.mxu0 0.0
    %202 = vmatpush1.msra.mxu0 0.0
    %203 = vmatprep.subr.mxu0 0.0
    %204 = vmatpush1.msra.mxu0 0.0
    %205 = vmatprep.subr.mxu0 0.0
    %206 = vmatpush1.msra.mxu0 0.0
    %207 = vmatprep.subr.mxu0 0.0
    %208 = vmatpush1.msra.mxu0 0.0
    %209 = vmatprep.subr.mxu0 0.0
    %210 = vmatpush1.msra.mxu0 0.0
    %211 = vmatprep.subr.mxu0 0.0
    %212 = vmatpush1.msra.mxu0 0.0
    %213 = vmatprep.subr.mxu0 0.0
    %214 = vmatpush1.msra.mxu0 0.0
    %215 = vmatprep.subr.mxu0 0.0
    %216 = vmatpush1.msra.mxu0 0.0
    %217 = vmatprep.subr.mxu0 0.0
    %218 = vmatpush1.msra.mxu0 0.0
    %219 = vmatprep.subr.mxu0 0.0
    %220 = vmatpush1.msra.mxu0 0.0
    %221 = vmatprep.subr.mxu0 0.0
    %222 = vmatpush1.msra.mxu0 0.0
    %223 = vmatprep.subr.mxu0 0.0
    %224 = vmatpush1.msra.mxu0 0.0
    %225 = vmatprep.subr.mxu0 0.0
    %226 = vmatpush1.msra.mxu0 0.0
    %227 = vmatprep.subr.mxu0 0.0
    %228 = vmatpush1.msra.mxu0 0.0
    %229 = vmatprep.subr.mxu0 0.0
    %230 = vmatpush1.msra.mxu0 0.0
    %231 = vmatprep.subr.mxu0 0.0
    %232 = vmatpush1.msra.mxu0 0.0
    %233 = vmatprep.subr.mxu0 0.0
    %234 = vmatpush1.msra.mxu0 0.0
    %235 = vmatprep.subr.mxu0 0.0
    %236 = vmatpush1.msra.mxu0 0.0
    %237 = vmatprep.subr.mxu0 0.0
    %238 = vmatpush1.msra.mxu0 0.0
    %239 = vmatprep.subr.mxu0 0.0
    %240 = vmatpush1.msra.mxu0 0.0
    %241 = vmatprep.subr.mxu0 0.0
    %242 = vmatpush1.msra.mxu0 0.0
    %243 = vmatprep.subr.mxu0 0.0
    %244 = vmatpush1.msra.mxu0 0.0
    %245 = vmatprep.subr.mxu0 0.0
    %246 = vmatpush1.msra.mxu0 0.0
    %247 = vmatprep.subr.mxu0 0.0
    %248 = vmatpush1.msra.mxu0 0.0
    %249 = vmatprep.subr.mxu0 0.0
    %250 = vmatpush1.msra.mxu0 0.0
    %251 = vmatprep.subr.mxu0 0.0
    %252 = vmatpush1.msra.mxu0 0.0
    %253 = vmatprep.subr.mxu0 0.0
    %254 = vmatpush1.msra.mxu0 0.0
    %255 = vmatprep.subr.mxu0 0.0
    %256 = vmatpush1.msra.mxu0 0.0
    %257 = vmatprep.subr.mxu0 0.0
    %258 = vmatpush1.msra.mxu0 0.0
    %259 = vmatprep.subr.mxu0 0.0
    %260 = vmatpush1.msra.mxu0 0.0
    %261 = vmatprep.subr.mxu0 0.0
    %262 = vmatpush1.msra.mxu0 0.0
    %263 = vmatprep.mubr.f32.mxu0 0.0
    %264 = vmatmul.mubr.f32.gmra.mrb[0].mxu0 %v194
    %v265 = vpop.f32.mrb[0].mxu0
    %v266 = vadd.f32 %v190, %v265
    %v267 = vpop.f32.mrb[0].mxu0
    %268 = vmatprep.mubr.f32.mxu0 0.0
    %269 = vmatmul.mubr.f32.gmra.mrb[0].mxu0 %v197
    %v270 = vpop.f32.mrb[0].mxu0
    %v271 = vadd.f32 %v191, %v270
    %v272 = vpop.f32.mrb[0].mxu0
    %273 = vdwg.mxu0
    %v274 = vld [vmem:[%s5] sm:$0xff]
    %v275 = vld [vmem:[%s5 + $0x8] sm:$0x3]
    %v276 = vld [vmem:[%s7] sm:$0x1]
    %v277 = vld [vmem:[%s8] sm:$0x1]
    %v278 = vsel %vm114, %v266, 0.0
    %279 = vadd.xlane.f32.xlu0 %v278
    %v280 = vpop.xlane.xlu0 %279
    %vm281 = vcmask 517120
    %v282 = vsel %vm281, %v271, 0.0
    %283 = vadd.xlane.f32.xlu0 %v282
    %v284 = vpop.xlane.xlu0 %283
    %v285 = vrcp.pop 64.0
    %v286 = vmul.f32 %v280, %v285
    %v287 = vmul.f32 %v284, %v285
    %v288 = vsub.f32 %v266, %v286
    %v289 = vsub.f32 %v271, %v287
    %v290 = vmul.f32 %v288, %v288
    %v291 = vmul.f32 %v289, %v289
    %v292 = vsel %vm114, %v290, 0.0
    %293 = vadd.xlane.f32.xlu0 %v292
    %v294 = vpop.xlane.xlu0 %293
    %v295 = vsel %vm281, %v291, 0.0
    %296 = vadd.xlane.f32.xlu0 %v295
    %v297 = vpop.xlane.xlu0 %296
    %v298 = vmul.f32 %v294, %v285
    %v299 = vmul.f32 %v297, %v285
    %v300 = vadd.f32 %v298, 1e-12
    %v301 = vadd.f32 %v299, 1e-12
    %v302 = vrsqrt.pop %v300
    %v303 = vrsqrt.pop %v301
    %v304 = vmul.f32 %v288, %v302
    %v305 = vmul.f32 %v289, %v303
    %v307 = vlaneseq
    %v308 = vshrl.u32 %v307, 7
    %v309 = vsub.s32 0, %v308
    %v310 = vrot.slane %v276, %v309
    %v312 = vmul.f32 %v304, %v310
    %v313 = vmul.f32 %v305, %v310
    %v315 = vlaneseq
    %v316 = vshrl.u32 %v315, 7
    %v317 = vsub.s32 0, %v316
    %v318 = vrot.slane %v277, %v317
    %v320 = vadd.f32 %v312, %v318
    %v321 = vadd.f32 %v313, %v318
    %v322 = vld [vmem:[%s9] sm:$0xff]
    %v323 = vld [vmem:[%s9 + $0x8] sm:$0xff]
    %v324 = vld [vmem:[%s9 + $0x10] sm:$0xff]
    %v325 = vld [vmem:[%s9 + $0x18] sm:$0xff]
    %v326 = vld [vmem:[%s9 + $0x20] sm:$0xff]
    %v327 = vld [vmem:[%s9 + $0x28] sm:$0xff]
    %v328 = vld [vmem:[%s9 + $0x30] sm:$0xff]
    %v329 = vld [vmem:[%s9 + $0x38] sm:$0xff]
    %v330 = vld [vmem:[%s9 + $0x40] sm:$0xff]
    %v331 = vld [vmem:[%s9 + $0x48] sm:$0xff]
    %v332 = vld [vmem:[%s9 + $0x50] sm:$0xff]
    %v333 = vld [vmem:[%s9 + $0x58] sm:$0xff]
    %v334 = vld [vmem:[%s9 + $0x60] sm:$0xff]
    %v335 = vld [vmem:[%s9 + $0x68] sm:$0xff]
    %v336 = vld [vmem:[%s9 + $0x70] sm:$0xff]
    %v337 = vld [vmem:[%s9 + $0x78] sm:$0xff]
    %v338 = vld [vmem:[%s10] sm:$0x3]
    %v340 = vlaneseq
    %v341 = vshrl.u32 %v340, 7
    %v342 = vsub.s32 0, %v341
    %v343 = vrot.slane %v338, %v342
    %v344 = vlaneseq
    %v345 = vshrl.u32 %v344, 7
    %v346 = vsub.s32 1, %v345
    %v347 = vrot.slane %v338, %v346
    %v351 = vsel %vm114, %v320, 0
    %v354 = vsel %vm114, %v321, 0
    %356 = vmatprep.subr.mxu0 %v323
    %357 = vmatpush1.msra.mxu0 %v322
    %358 = vmatprep.subr.mxu0 %v325
    %359 = vmatpush1.msra.mxu0 %v324
    %360 = vmatprep.subr.mxu0 %v327
    %361 = vmatpush1.msra.mxu0 %v326
    %362 = vmatprep.subr.mxu0 %v329
    %363 = vmatpush1.msra.mxu0 %v328
    %364 = vmatprep.subr.mxu0 %v331
    %365 = vmatpush1.msra.mxu0 %v330
    %366 = vmatprep.subr.mxu0 %v333
    %367 = vmatpush1.msra.mxu0 %v332
    %368 = vmatprep.subr.mxu0 %v335
    %369 = vmatpush1.msra.mxu0 %v334
    %370 = vmatprep.subr.mxu0 %v337
    %371 = vmatpush1.msra.mxu0 %v336
    %372 = vmatprep.subr.mxu0 0.0
    %373 = vmatpush1.msra.mxu0 0.0
    %374 = vmatprep.subr.mxu0 0.0
    %375 = vmatpush1.msra.mxu0 0.0
    %376 = vmatprep.subr.mxu0 0.0
    %377 = vmatpush1.msra.mxu0 0.0
    %378 = vmatprep.subr.mxu0 0.0
    %379 = vmatpush1.msra.mxu0 0.0
    %380 = vmatprep.subr.mxu0 0.0
    %381 = vmatpush1.msra.mxu0 0.0
    %382 = vmatprep.subr.mxu0 0.0
    %383 = vmatpush1.msra.mxu0 0.0
    %384 = vmatprep.subr.mxu0 0.0
    %385 = vmatpush1.msra.mxu0 0.0
    %386 = vmatprep.subr.mxu0 0.0
    %387 = vmatpush1.msra.mxu0 0.0
    %388 = vmatprep.subr.mxu0 0.0
    %389 = vmatpush1.msra.mxu0 0.0
    %390 = vmatprep.subr.mxu0 0.0
    %391 = vmatpush1.msra.mxu0 0.0
    %392 = vmatprep.subr.mxu0 0.0
    %393 = vmatpush1.msra.mxu0 0.0
    %394 = vmatprep.subr.mxu0 0.0
    %395 = vmatpush1.msra.mxu0 0.0
    %396 = vmatprep.subr.mxu0 0.0
    %397 = vmatpush1.msra.mxu0 0.0
    %398 = vmatprep.subr.mxu0 0.0
    %399 = vmatpush1.msra.mxu0 0.0
    %400 = vmatprep.subr.mxu0 0.0
    %401 = vmatpush1.msra.mxu0 0.0
    %402 = vmatprep.subr.mxu0 0.0
    %403 = vmatpush1.msra.mxu0 0.0
    %404 = vmatprep.subr.mxu0 0.0
    %405 = vmatpush1.msra.mxu0 0.0
    %406 = vmatprep.subr.mxu0 0.0
    %407 = vmatpush1.msra.mxu0 0.0
    %408 = vmatprep.subr.mxu0 0.0
    %409 = vmatpush1.msra.mxu0 0.0
    %410 = vmatprep.subr.mxu0 0.0
    %411 = vmatpush1.msra.mxu0 0.0
    %412 = vmatprep.subr.mxu0 0.0
    %413 = vmatpush1.msra.mxu0 0.0
    %414 = vmatprep.subr.mxu0 0.0
    %415 = vmatpush1.msra.mxu0 0.0
    %416 = vmatprep.subr.mxu0 0.0
    %417 = vmatpush1.msra.mxu0 0.0
    %418 = vmatprep.subr.mxu0 0.0
    %419 = vmatpush1.msra.mxu0 0.0
    %420 = vmatprep.mubr.f32.mxu0 0.0
    %421 = vmatmul.mubr.f32.gmra.mrb[0].mxu0 %v351
    %v422 = vpop.f32.mrb[0].mxu0
    %v423 = vadd.f32 %v343, %v422
    %v424 = vpop.f32.mrb[0].mxu0
    %v425 = vadd.f32 %v347, %v424
    %426 = vmatprep.mubr.f32.mxu0 0.0
    %427 = vmatmul.mubr.f32.gmra.mrb[0].mxu0 %v354
    %v428 = vpop.f32.mrb[0].mxu0
    %v429 = vadd.f32 %v343, %v428
    %v430 = vpop.f32.mrb[0].mxu0
    %v431 = vadd.f32 %v347, %v430
    %432 = vdwg.mxu0
    %v433 = vld [vmem:[%s11] sm:$0xff]
    %v434 = vld [vmem:[%s11 + $0x8] sm:$0xff]
    %v435 = vld [vmem:[%s11 + $0x10] sm:$0xff]
    %v436 = vld [vmem:[%s11 + $0x18] sm:$0xff]
    %v437 = vld [vmem:[%s11 + $0x20] sm:$0xff]
    %v438 = vld [vmem:[%s11 + $0x28] sm:$0xff]
    %v439 = vld [vmem:[%s11 + $0x30] sm:$0xff]
    %v440 = vld [vmem:[%s11 + $0x38] sm:$0xff]
    %443 = vrot.lane.b32.xlu0 %v423, 64
    %v444 = vpop.permute.xlu0 %443
    %445 = vrot.lane.b32.xlu0 %v429, 64
    %v446 = vpop.permute.xlu0 %445
    %vm447 = vcmask 130048
    %v448 = vsel %vm447, %v423, 0
    %v450 = vsel %vm447, %v429, 0
    %v452 = vsel %vm447, %v444, 0
    %v454 = vsel %vm447, %v446, 0
    %456 = vmatprep.subr.mxu0 0.0
    %457 = vmatpush1.xpose.msra.mxu0 %v452
    %458 = vmatprep.subr.mxu0 0.0
    %459 = vmatpush1.xpose.msra.mxu0 %v454
    %460 = vmatprep.subr.mxu0 0.0
    %461 = vmatpush1.xpose.msra.mxu0 0.0
    %462 = vmatprep.subr.mxu0 0.0
    %463 = vmatpush1.xpose.msra.mxu0 0.0
    %464 = vmatprep.subr.mxu0 0.0
    %465 = vmatpush1.xpose.msra.mxu0 0.0
    %466 = vmatprep.subr.mxu0 0.0
    %467 = vmatpush1.xpose.msra.mxu0 0.0
    %468 = vmatprep.subr.mxu0 0.0
    %469 = vmatpush1.xpose.msra.mxu0 0.0
    %470 = vmatprep.subr.mxu0 0.0
    %471 = vmatpush1.xpose.msra.mxu0 0.0
    %472 = vmatprep.subr.mxu0 0.0
    %473 = vmatpush1.xpose.msra.mxu0 0.0
    %474 = vmatprep.subr.mxu0 0.0
    %475 = vmatpush1.xpose.msra.mxu0 0.0
    %476 = vmatprep.subr.mxu0 0.0
    %477 = vmatpush1.xpose.msra.mxu0 0.0
    %478 = vmatprep.subr.mxu0 0.0
    %479 = vmatpush1.xpose.msra.mxu0 0.0
    %480 = vmatprep.subr.mxu0 0.0
    %481 = vmatpush1.xpose.msra.mxu0 0.0
    %482 = vmatprep.subr.mxu0 0.0
    %483 = vmatpush1.xpose.msra.mxu0 0.0
    %484 = vmatprep.subr.mxu0 0.0
    %485 = vmatpush1.xpose.msra.mxu0 0.0
    %486 = vmatprep.subr.mxu0 0.0
    %487 = vmatpush1.xpose.msra.mxu0 0.0
    %488 = vmatprep.subr.mxu0 0.0
    %489 = vmatpush1.xpose.msra.mxu0 0.0
    %490 = vmatprep.subr.mxu0 0.0
    %491 = vmatpush1.xpose.msra.mxu0 0.0
    %492 = vmatprep.subr.mxu0 0.0
    %493 = vmatpush1.xpose.msra.mxu0 0.0
    %494 = vmatprep.subr.mxu0 0.0
    %495 = vmatpush1.xpose.msra.mxu0 0.0
    %496 = vmatprep.subr.mxu0 0.0
    %497 = vmatpush1.xpose.msra.mxu0 0.0
    %498 = vmatprep.subr.mxu0 0.0
    %499 = vmatpush1.xpose.msra.mxu0 0.0
    %500 = vmatprep.subr.mxu0 0.0
    %501 = vmatpush1.xpose.msra.mxu0 0.0
    %502 = vmatprep.subr.mxu0 0.0
    %503 = vmatpush1.xpose.msra.mxu0 0.0
    %504 = vmatprep.subr.mxu0 0.0
    %505 = vmatpush1.xpose.msra.mxu0 0.0
    %506 = vmatprep.subr.mxu0 0.0
    %507 = vmatpush1.xpose.msra.mxu0 0.0
    %508 = vmatprep.subr.mxu0 0.0
    %509 = vmatpush1.xpose.msra.mxu0 0.0
    %510 = vmatprep.subr.mxu0 0.0
    %511 = vmatpush1.xpose.msra.mxu0 0.0
    %512 = vmatprep.subr.mxu0 0.0
    %513 = vmatpush1.xpose.msra.mxu0 0.0
    %514 = vmatprep.subr.mxu0 0.0
    %515 = vmatpush1.xpose.msra.mxu0 0.0
    %516 = vmatprep.subr.mxu0 0.0
    %517 = vmatpush1.xpose.msra.mxu0 0.0
    %518 = vmatprep.subr.mxu0 0.0
    %519 = vmatpush1.xpose.msra.mxu0 0.0
    %520 = vmatprep.mubr.f32.mxu0 0.0
    %521 = vmatmul.mubr.f32.gmra.mrb[0].mxu0 %v448
    %v522 = vpop.f32.mrb[0].mxu0
    %v523 = vadd.f32 0.0, %v522
    %v524 = vpop.f32.mrb[0].mxu0
    %525 = vmatprep.mubr.f32.mxu0 0.0
    %526 = vmatmul.mubr.f32.gmra.mrb[0].mxu0 %v450
    %v527 = vpop.f32.mrb[0].mxu0
    %v528 = vadd.f32 0.0, %v527
    %v529 = vpop.f32.mrb[0].mxu0
    %530 = vdwg.mxu0
    %v531 = vmul.f32 %v523, 0.25
    %v532 = vmul.f32 %v528, 0.25
    %v533 = vadd.f32 %v531, %v274
    %v534 = vadd.f32 %v532, %v275
    %vm535 = vcmask 80896
    %v536 = vsel %vm535, %v533, -inf
    %537 = vmax.xlane.f32.xlu0 %v536
    %v538 = vpop.xlane.xlu0 %537
    %vm539 = vcmask 74752
    %v540 = vsel %vm539, %v534, -inf
    %541 = vmax.xlane.f32.xlu0 %v540
    %v542 = vpop.xlane.xlu0 %541
    %v543 = vsub.f32 %v533, %v538
    %v544 = vsub.f32 %v534, %v542
    %v545 = vmul.f32 %v543, 1.442695
    %v546 = vpow.pop %v545
    %v547 = vmul.f32 %v544, 1.442695
    %v548 = vpow.pop %v547
    %v549 = vsel %vm535, %v546, 0.0
    %550 = vadd.xlane.f32.xlu0 %v549
    %v551 = vpop.xlane.xlu0 %550
    %v552 = vsel %vm539, %v548, 0.0
    %553 = vadd.xlane.f32.xlu0 %v552
    %v554 = vpop.xlane.xlu0 %553
    %v555 = vrcp.pop %v551
    %v556 = vmul.f32 %v546, %v555
    %v557 = vrcp.pop %v554
    %v558 = vmul.f32 %v548, %v557
    %v560 = vsel %vm535, %v556, 0
    %v563 = vsel %vm535, %v558, 0
    %vm565 = vcmask 1041408
    %v567 = vsel %vm565, %v431, 0
    %569 = vmatprep.subr.mxu0 0.0
    %570 = vmatpush1.msra.mxu0 %v425
    %571 = vmatprep.subr.mxu0 0.0
    %572 = vmatpush1.msra.mxu0 %v567
    %573 = vmatprep.subr.mxu0 0.0
    %574 = vmatpush1.msra.mxu0 0.0
    %575 = vmatprep.subr.mxu0 0.0
    %576 = vmatpush1.msra.mxu0 0.0
    %577 = vmatprep.subr.mxu0 0.0
    %578 = vmatpush1.msra.mxu0 0.0
    %579 = vmatprep.subr.mxu0 0.0
    %580 = vmatpush1.msra.mxu0 0.0
    %581 = vmatprep.subr.mxu0 0.0
    %582 = vmatpush1.msra.mxu0 0.0
    %583 = vmatprep.subr.mxu0 0.0
    %584 = vmatpush1.msra.mxu0 0.0
    %585 = vmatprep.subr.mxu0 0.0
    %586 = vmatpush1.msra.mxu0 0.0
    %587 = vmatprep.subr.mxu0 0.0
    %588 = vmatpush1.msra.mxu0 0.0
    %589 = vmatprep.subr.mxu0 0.0
    %590 = vmatpush1.msra.mxu0 0.0
    %591 = vmatprep.subr.mxu0 0.0
    %592 = vmatpush1.msra.mxu0 0.0
    %593 = vmatprep.subr.mxu0 0.0
    %594 = vmatpush1.msra.mxu0 0.0
    %595 = vmatprep.subr.mxu0 0.0
    %596 = vmatpush1.msra.mxu0 0.0
    %597 = vmatprep.subr.mxu0 0.0
    %598 = vmatpush1.msra.mxu0 0.0
    %599 = vmatprep.subr.mxu0 0.0
    %600 = vmatpush1.msra.mxu0 0.0
    %601 = vmatprep.subr.mxu0 0.0
    %602 = vmatpush1.msra.mxu0 0.0
    %603 = vmatprep.subr.mxu0 0.0
    %604 = vmatpush1.msra.mxu0 0.0
    %605 = vmatprep.subr.mxu0 0.0
    %606 = vmatpush1.msra.mxu0 0.0
    %607 = vmatprep.subr.mxu0 0.0
    %608 = vmatpush1.msra.mxu0 0.0
    %609 = vmatprep.subr.mxu0 0.0
    %610 = vmatpush1.msra.mxu0 0.0
    %611 = vmatprep.subr.mxu0 0.0
    %612 = vmatpush1.msra.mxu0 0.0
    %613 = vmatprep.subr.mxu0 0.0
    %614 = vmatpush1.msra.mxu0 0.0
    %615 = vmatprep.subr.mxu0 0.0
    %616 = vmatpush1.msra.mxu0 0.0
    %617 = vmatprep.subr.mxu0 0.0
    %618 = vmatpush1.msra.mxu0 0.0
    %619 = vmatprep.subr.mxu0 0.0
    %620 = vmatpush1.msra.mxu0 0.0
    %621 = vmatprep.subr.mxu0 0.0
    %622 = vmatpush1.msra.mxu0 0.0
    %623 = vmatprep.subr.mxu0 0.0
    %624 = vmatpush1.msra.mxu0 0.0
    %625 = vmatprep.subr.mxu0 0.0
    %626 = vmatpush1.msra.mxu0 0.0
    %627 = vmatprep.subr.mxu0 0.0
    %628 = vmatpush1.msra.mxu0 0.0
    %629 = vmatprep.subr.mxu0 0.0
    %630 = vmatpush1.msra.mxu0 0.0
    %631 = vmatprep.subr.mxu0 0.0
    %632 = vmatpush1.msra.mxu0 0.0
    %633 = vmatprep.mubr.f32.mxu0 0.0
    %634 = vmatmul.mubr.f32.gmra.mrb[0].mxu0 %v560
    %v635 = vpop.f32.mrb[0].mxu0
    %v636 = vadd.f32 0.0, %v635
    %v637 = vpop.f32.mrb[0].mxu0
    %638 = vmatprep.mubr.f32.mxu0 0.0
    %639 = vmatmul.mubr.f32.gmra.mrb[0].mxu0 %v563
    %v640 = vpop.f32.mrb[0].mxu0
    %v641 = vadd.f32 0.0, %v640
    %v642 = vpop.f32.mrb[0].mxu0
    %643 = vdwg.mxu0
    %644 = vrot.lane.b32.xlu0 %v423, 112
    %v645 = vpop.permute.xlu0 %644
    %646 = vrot.lane.b32.xlu0 %v429, 112
    %v647 = vpop.permute.xlu0 %646
    %648 = vrot.lane.b32.xlu0 %v423, 48
    %v649 = vpop.permute.xlu0 %648
    %650 = vrot.lane.b32.xlu0 %v429, 48
    %v651 = vpop.permute.xlu0 %650
    %v652 = vsel %vm447, %v645, 0
    %v654 = vsel %vm447, %v647, 0
    %v656 = vsel %vm447, %v649, 0
    %v658 = vsel %vm447, %v651, 0
    %660 = vmatprep.subr.mxu0 0.0
    %661 = vmatpush1.xpose.msra.mxu0 %v656
    %662 = vmatprep.subr.mxu0 0.0
    %663 = vmatpush1.xpose.msra.mxu0 %v658
    %664 = vmatprep.subr.mxu0 0.0
    %665 = vmatpush1.xpose.msra.mxu0 0.0
    %666 = vmatprep.subr.mxu0 0.0
    %667 = vmatpush1.xpose.msra.mxu0 0.0
    %668 = vmatprep.subr.mxu0 0.0
    %669 = vmatpush1.xpose.msra.mxu0 0.0
    %670 = vmatprep.subr.mxu0 0.0
    %671 = vmatpush1.xpose.msra.mxu0 0.0
    %672 = vmatprep.subr.mxu0 0.0
    %673 = vmatpush1.xpose.msra.mxu0 0.0
    %674 = vmatprep.subr.mxu0 0.0
    %675 = vmatpush1.xpose.msra.mxu0 0.0
    %676 = vmatprep.subr.mxu0 0.0
    %677 = vmatpush1.xpose.msra.mxu0 0.0
    %678 = vmatprep.subr.mxu0 0.0
    %679 = vmatpush1.xpose.msra.mxu0 0.0
    %680 = vmatprep.subr.mxu0 0.0
    %681 = vmatpush1.xpose.msra.mxu0 0.0
    %682 = vmatprep.subr.mxu0 0.0
    %683 = vmatpush1.xpose.msra.mxu0 0.0
    %684 = vmatprep.subr.mxu0 0.0
    %685 = vmatpush1.xpose.msra.mxu0 0.0
    %686 = vmatprep.subr.mxu0 0.0
    %687 = vmatpush1.xpose.msra.mxu0 0.0
    %688 = vmatprep.subr.mxu0 0.0
    %689 = vmatpush1.xpose.msra.mxu0 0.0
    %690 = vmatprep.subr.mxu0 0.0
    %691 = vmatpush1.xpose.msra.mxu0 0.0
    %692 = vmatprep.subr.mxu0 0.0
    %693 = vmatpush1.xpose.msra.mxu0 0.0
    %694 = vmatprep.subr.mxu0 0.0
    %695 = vmatpush1.xpose.msra.mxu0 0.0
    %696 = vmatprep.subr.mxu0 0.0
    %697 = vmatpush1.xpose.msra.mxu0 0.0
    %698 = vmatprep.subr.mxu0 0.0
    %699 = vmatpush1.xpose.msra.mxu0 0.0
    %700 = vmatprep.subr.mxu0 0.0
    %701 = vmatpush1.xpose.msra.mxu0 0.0
    %702 = vmatprep.subr.mxu0 0.0
    %703 = vmatpush1.xpose.msra.mxu0 0.0
    %704 = vmatprep.subr.mxu0 0.0
    %705 = vmatpush1.xpose.msra.mxu0 0.0
    %706 = vmatprep.subr.mxu0 0.0
    %707 = vmatpush1.xpose.msra.mxu0 0.0
    %708 = vmatprep.subr.mxu0 0.0
    %709 = vmatpush1.xpose.msra.mxu0 0.0
    %710 = vmatprep.subr.mxu0 0.0
    %711 = vmatpush1.xpose.msra.mxu0 0.0
    %712 = vmatprep.subr.mxu0 0.0
    %713 = vmatpush1.xpose.msra.mxu0 0.0
    %714 = vmatprep.subr.mxu0 0.0
    %715 = vmatpush1.xpose.msra.mxu0 0.0
    %716 = vmatprep.subr.mxu0 0.0
    %717 = vmatpush1.xpose.msra.mxu0 0.0
    %718 = vmatprep.subr.mxu0 0.0
    %719 = vmatpush1.xpose.msra.mxu0 0.0
    %720 = vmatprep.subr.mxu0 0.0
    %721 = vmatpush1.xpose.msra.mxu0 0.0
    %722 = vmatprep.subr.mxu0 0.0
    %723 = vmatpush1.xpose.msra.mxu0 0.0
    %724 = vmatprep.mubr.f32.mxu0 0.0
    %725 = vmatmul.mubr.f32.gmra.mrb[0].mxu0 %v652
    %v726 = vpop.f32.mrb[0].mxu0
    %v727 = vadd.f32 0.0, %v726
    %v728 = vpop.f32.mrb[0].mxu0
    %729 = vmatprep.mubr.f32.mxu0 0.0
    %730 = vmatmul.mubr.f32.gmra.mrb[0].mxu0 %v654
    %v731 = vpop.f32.mrb[0].mxu0
    %v732 = vadd.f32 0.0, %v731
    %v733 = vpop.f32.mrb[0].mxu0
    %734 = vdwg.mxu0
    %v735 = vmul.f32 %v727, 0.25
    %v736 = vmul.f32 %v732, 0.25
    %v737 = vadd.f32 %v735, %v274
    %v738 = vadd.f32 %v736, %v275
    %v739 = vsel %vm535, %v737, -inf
    %740 = vmax.xlane.f32.xlu0 %v739
    %v741 = vpop.xlane.xlu0 %740
    %v742 = vsel %vm539, %v738, -inf
    %743 = vmax.xlane.f32.xlu0 %v742
    %v744 = vpop.xlane.xlu0 %743
    %v745 = vsub.f32 %v737, %v741
    %v746 = vsub.f32 %v738, %v744
    %v747 = vmul.f32 %v745, 1.442695
    %v748 = vpow.pop %v747
    %v749 = vmul.f32 %v746, 1.442695
    %v750 = vpow.pop %v749
    %v751 = vsel %vm535, %v748, 0.0
    %752 = vadd.xlane.f32.xlu0 %v751
    %v753 = vpop.xlane.xlu0 %752
    %v754 = vsel %vm539, %v750, 0.0
    %755 = vadd.xlane.f32.xlu0 %v754
    %v756 = vpop.xlane.xlu0 %755
    %v757 = vrcp.pop %v753
    %v758 = vmul.f32 %v748, %v757
    %v759 = vrcp.pop %v756
    %v760 = vmul.f32 %v750, %v759
    %762 = vrot.lane.b32.xlu0 %v425, 112
    %v763 = vpop.permute.xlu0 %762
    %764 = vrot.lane.b32.xlu0 %v431, 112
    %v765 = vpop.permute.xlu0 %764
    %v768 = vsel %vm535, %v758, 0
    %v771 = vsel %vm535, %v760, 0
    %v773 = vsel %vm565, %v765, 0
    %775 = vmatprep.subr.mxu0 0.0
    %776 = vmatpush1.msra.mxu0 %v763
    %777 = vmatprep.subr.mxu0 0.0
    %778 = vmatpush1.msra.mxu0 %v773
    %779 = vmatprep.subr.mxu0 0.0
    %780 = vmatpush1.msra.mxu0 0.0
    %781 = vmatprep.subr.mxu0 0.0
    %782 = vmatpush1.msra.mxu0 0.0
    %783 = vmatprep.subr.mxu0 0.0
    %784 = vmatpush1.msra.mxu0 0.0
    %785 = vmatprep.subr.mxu0 0.0
    %786 = vmatpush1.msra.mxu0 0.0
    %787 = vmatprep.subr.mxu0 0.0
    %788 = vmatpush1.msra.mxu0 0.0
    %789 = vmatprep.subr.mxu0 0.0
    %790 = vmatpush1.msra.mxu0 0.0
    %791 = vmatprep.subr.mxu0 0.0
    %792 = vmatpush1.msra.mxu0 0.0
    %793 = vmatprep.subr.mxu0 0.0
    %794 = vmatpush1.msra.mxu0 0.0
    %795 = vmatprep.subr.mxu0 0.0
    %796 = vmatpush1.msra.mxu0 0.0
    %797 = vmatprep.subr.mxu0 0.0
    %798 = vmatpush1.msra.mxu0 0.0
    %799 = vmatprep.subr.mxu0 0.0
    %800 = vmatpush1.msra.mxu0 0.0
    %801 = vmatprep.subr.mxu0 0.0
    %802 = vmatpush1.msra.mxu0 0.0
    %803 = vmatprep.subr.mxu0 0.0
    %804 = vmatpush1.msra.mxu0 0.0
    %805 = vmatprep.subr.mxu0 0.0
    %806 = vmatpush1.msra.mxu0 0.0
    %807 = vmatprep.subr.mxu0 0.0
    %808 = vmatpush1.msra.mxu0 0.0
    %809 = vmatprep.subr.mxu0 0.0
    %810 = vmatpush1.msra.mxu0 0.0
    %811 = vmatprep.subr.mxu0 0.0
    %812 = vmatpush1.msra.mxu0 0.0
    %813 = vmatprep.subr.mxu0 0.0
    %814 = vmatpush1.msra.mxu0 0.0
    %815 = vmatprep.subr.mxu0 0.0
    %816 = vmatpush1.msra.mxu0 0.0
    %817 = vmatprep.subr.mxu0 0.0
    %818 = vmatpush1.msra.mxu0 0.0
    %819 = vmatprep.subr.mxu0 0.0
    %820 = vmatpush1.msra.mxu0 0.0
    %821 = vmatprep.subr.mxu0 0.0
    %822 = vmatpush1.msra.mxu0 0.0
    %823 = vmatprep.subr.mxu0 0.0
    %824 = vmatpush1.msra.mxu0 0.0
    %825 = vmatprep.subr.mxu0 0.0
    %826 = vmatpush1.msra.mxu0 0.0
    %827 = vmatprep.subr.mxu0 0.0
    %828 = vmatpush1.msra.mxu0 0.0
    %829 = vmatprep.subr.mxu0 0.0
    %830 = vmatpush1.msra.mxu0 0.0
    %831 = vmatprep.subr.mxu0 0.0
    %832 = vmatpush1.msra.mxu0 0.0
    %833 = vmatprep.subr.mxu0 0.0
    %834 = vmatpush1.msra.mxu0 0.0
    %835 = vmatprep.subr.mxu0 0.0
    %836 = vmatpush1.msra.mxu0 0.0
    %837 = vmatprep.subr.mxu0 0.0
    %838 = vmatpush1.msra.mxu0 0.0
    %839 = vmatprep.mubr.f32.mxu0 0.0
    %840 = vmatmul.mubr.f32.gmra.mrb[0].mxu0 %v768
    %v841 = vpop.f32.mrb[0].mxu0
    %v842 = vadd.f32 0.0, %v841
    %v843 = vpop.f32.mrb[0].mxu0
    %844 = vmatprep.mubr.f32.mxu0 0.0
    %845 = vmatmul.mubr.f32.gmra.mrb[0].mxu0 %v771
    %v846 = vpop.f32.mrb[0].mxu0
    %v847 = vadd.f32 0.0, %v846
    %v848 = vpop.f32.mrb[0].mxu0
    %849 = vdwg.mxu0
    %v851 = vsel %vm447, %v842, 0
    %v854 = vsel %vm447, %v847, 0
    %856 = vmatprep.subr.mxu0 0.0
    %857 = vmatpush1.msra.mxu0 %v435
    %858 = vmatprep.subr.mxu0 0.0
    %859 = vmatpush1.msra.mxu0 %v436
    %860 = vmatprep.subr.mxu0 0.0
    %861 = vmatpush1.msra.mxu0 0.0
    %862 = vmatprep.subr.mxu0 0.0
    %863 = vmatpush1.msra.mxu0 0.0
    %864 = vmatprep.subr.mxu0 0.0
    %865 = vmatpush1.msra.mxu0 0.0
    %866 = vmatprep.subr.mxu0 0.0
    %867 = vmatpush1.msra.mxu0 0.0
    %868 = vmatprep.subr.mxu0 0.0
    %869 = vmatpush1.msra.mxu0 0.0
    %870 = vmatprep.subr.mxu0 0.0
    %871 = vmatpush1.msra.mxu0 0.0
    %872 = vmatprep.subr.mxu0 0.0
    %873 = vmatpush1.msra.mxu0 0.0
    %874 = vmatprep.subr.mxu0 0.0
    %875 = vmatpush1.msra.mxu0 0.0
    %876 = vmatprep.subr.mxu0 0.0
    %877 = vmatpush1.msra.mxu0 0.0
    %878 = vmatprep.subr.mxu0 0.0
    %879 = vmatpush1.msra.mxu0 0.0
    %880 = vmatprep.subr.mxu0 0.0
    %881 = vmatpush1.msra.mxu0 0.0
    %882 = vmatprep.subr.mxu0 0.0
    %883 = vmatpush1.msra.mxu0 0.0
    %884 = vmatprep.subr.mxu0 0.0
    %885 = vmatpush1.msra.mxu0 0.0
    %886 = vmatprep.subr.mxu0 0.0
    %887 = vmatpush1.msra.mxu0 0.0
    %888 = vmatprep.subr.mxu0 0.0
    %889 = vmatpush1.msra.mxu0 0.0
    %890 = vmatprep.subr.mxu0 0.0
    %891 = vmatpush1.msra.mxu0 0.0
    %892 = vmatprep.subr.mxu0 0.0
    %893 = vmatpush1.msra.mxu0 0.0
    %894 = vmatprep.subr.mxu0 0.0
    %895 = vmatpush1.msra.mxu0 0.0
    %896 = vmatprep.subr.mxu0 0.0
    %897 = vmatpush1.msra.mxu0 0.0
    %898 = vmatprep.subr.mxu0 0.0
    %899 = vmatpush1.msra.mxu0 0.0
    %900 = vmatprep.subr.mxu0 0.0
    %901 = vmatpush1.msra.mxu0 0.0
    %902 = vmatprep.subr.mxu0 0.0
    %903 = vmatpush1.msra.mxu0 0.0
    %904 = vmatprep.subr.mxu0 0.0
    %905 = vmatpush1.msra.mxu0 0.0
    %906 = vmatprep.subr.mxu0 0.0
    %907 = vmatpush1.msra.mxu0 0.0
    %908 = vmatprep.subr.mxu0 0.0
    %909 = vmatpush1.msra.mxu0 0.0
    %910 = vmatprep.subr.mxu0 0.0
    %911 = vmatpush1.msra.mxu0 0.0
    %912 = vmatprep.subr.mxu0 0.0
    %913 = vmatpush1.msra.mxu0 0.0
    %914 = vmatprep.subr.mxu0 0.0
    %915 = vmatpush1.msra.mxu0 0.0
    %916 = vmatprep.subr.mxu0 0.0
    %917 = vmatpush1.msra.mxu0 0.0
    %918 = vmatprep.subr.mxu0 0.0
    %919 = vmatpush1.msra.mxu0 0.0
    %920 = vmatprep.mubr.f32.mxu0 0.0
    %921 = vmatmul.mubr.f32.gmra.mrb[0].mxu0 %v851
    %v922 = vpop.f32.mrb[0].mxu0
    %v923 = vadd.f32 0.0, %v922
    %v924 = vpop.f32.mrb[0].mxu0
    %925 = vmatprep.mubr.f32.mxu0 0.0
    %926 = vmatmul.mubr.f32.gmra.mrb[0].mxu0 %v854
    %v927 = vpop.f32.mrb[0].mxu0
    %v928 = vadd.f32 0.0, %v927
    %v929 = vpop.f32.mrb[0].mxu0
    %930 = vdwg.mxu0
    %v932 = vsel %vm447, %v636, 0
    %v935 = vsel %vm447, %v641, 0
    %937 = vmatprep.subr.mxu0 0.0
    %938 = vmatpush1.msra.mxu0 %v433
    %939 = vmatprep.subr.mxu0 0.0
    %940 = vmatpush1.msra.mxu0 %v434
    %941 = vmatprep.subr.mxu0 0.0
    %942 = vmatpush1.msra.mxu0 0.0
    %943 = vmatprep.subr.mxu0 0.0
    %944 = vmatpush1.msra.mxu0 0.0
    %945 = vmatprep.subr.mxu0 0.0
    %946 = vmatpush1.msra.mxu0 0.0
    %947 = vmatprep.subr.mxu0 0.0
    %948 = vmatpush1.msra.mxu0 0.0
    %949 = vmatprep.subr.mxu0 0.0
    %950 = vmatpush1.msra.mxu0 0.0
    %951 = vmatprep.subr.mxu0 0.0
    %952 = vmatpush1.msra.mxu0 0.0
    %953 = vmatprep.subr.mxu0 0.0
    %954 = vmatpush1.msra.mxu0 0.0
    %955 = vmatprep.subr.mxu0 0.0
    %956 = vmatpush1.msra.mxu0 0.0
    %957 = vmatprep.subr.mxu0 0.0
    %958 = vmatpush1.msra.mxu0 0.0
    %959 = vmatprep.subr.mxu0 0.0
    %960 = vmatpush1.msra.mxu0 0.0
    %961 = vmatprep.subr.mxu0 0.0
    %962 = vmatpush1.msra.mxu0 0.0
    %963 = vmatprep.subr.mxu0 0.0
    %964 = vmatpush1.msra.mxu0 0.0
    %965 = vmatprep.subr.mxu0 0.0
    %966 = vmatpush1.msra.mxu0 0.0
    %967 = vmatprep.subr.mxu0 0.0
    %968 = vmatpush1.msra.mxu0 0.0
    %969 = vmatprep.subr.mxu0 0.0
    %970 = vmatpush1.msra.mxu0 0.0
    %971 = vmatprep.subr.mxu0 0.0
    %972 = vmatpush1.msra.mxu0 0.0
    %973 = vmatprep.subr.mxu0 0.0
    %974 = vmatpush1.msra.mxu0 0.0
    %975 = vmatprep.subr.mxu0 0.0
    %976 = vmatpush1.msra.mxu0 0.0
    %977 = vmatprep.subr.mxu0 0.0
    %978 = vmatpush1.msra.mxu0 0.0
    %979 = vmatprep.subr.mxu0 0.0
    %980 = vmatpush1.msra.mxu0 0.0
    %981 = vmatprep.subr.mxu0 0.0
    %982 = vmatpush1.msra.mxu0 0.0
    %983 = vmatprep.subr.mxu0 0.0
    %984 = vmatpush1.msra.mxu0 0.0
    %985 = vmatprep.subr.mxu0 0.0
    %986 = vmatpush1.msra.mxu0 0.0
    %987 = vmatprep.subr.mxu0 0.0
    %988 = vmatpush1.msra.mxu0 0.0
    %989 = vmatprep.subr.mxu0 0.0
    %990 = vmatpush1.msra.mxu0 0.0
    %991 = vmatprep.subr.mxu0 0.0
    %992 = vmatpush1.msra.mxu0 0.0
    %993 = vmatprep.subr.mxu0 0.0
    %994 = vmatpush1.msra.mxu0 0.0
    %995 = vmatprep.subr.mxu0 0.0
    %996 = vmatpush1.msra.mxu0 0.0
    %997 = vmatprep.subr.mxu0 0.0
    %998 = vmatpush1.msra.mxu0 0.0
    %999 = vmatprep.subr.mxu0 0.0
    %1000 = vmatpush1.msra.mxu0 0.0
    %1001 = vmatprep.mubr.f32.mxu0 0.0
    %1002 = vmatmul.mubr.f32.gmra.mrb[0].mxu0 %v932
    %v1003 = vpop.f32.mrb[0].mxu0
    %v1004 = vadd.f32 %v923, %v1003
    %v1005 = vpop.f32.mrb[0].mxu0
    %1006 = vmatprep.mubr.f32.mxu0 0.0
    %1007 = vmatmul.mubr.f32.gmra.mrb[0].mxu0 %v935
    %v1008 = vpop.f32.mrb[0].mxu0
    %v1009 = vadd.f32 %v928, %v1008
    %v1010 = vpop.f32.mrb[0].mxu0
    %1011 = vdwg.mxu0
    %1012 = vrot.lane.b32.xlu0 %v423, 96
    %v1013 = vpop.permute.xlu0 %1012
    %1014 = vrot.lane.b32.xlu0 %v429, 96
    %v1015 = vpop.permute.xlu0 %1014
    %1016 = vrot.lane.b32.xlu0 %v423, 32
    %v1017 = vpop.permute.xlu0 %1016
    %1018 = vrot.lane.b32.xlu0 %v429, 32
    %v1019 = vpop.permute.xlu0 %1018
    %v1020 = vsel %vm447, %v1013, 0
    %v1022 = vsel %vm447, %v1015, 0
    %v1024 = vsel %vm447, %v1017, 0
    %v1026 = vsel %vm447, %v1019, 0
    %1028 = vmatprep.subr.mxu0 0.0
    %1029 = vmatpush1.xpose.msra.mxu0 %v1024
    %1030 = vmatprep.subr.mxu0 0.0
    %1031 = vmatpush1.xpose.msra.mxu0 %v1026
    %1032 = vmatprep.subr.mxu0 0.0
    %1033 = vmatpush1.xpose.msra.mxu0 0.0
    %1034 = vmatprep.subr.mxu0 0.0
    %1035 = vmatpush1.xpose.msra.mxu0 0.0
    %1036 = vmatprep.subr.mxu0 0.0
    %1037 = vmatpush1.xpose.msra.mxu0 0.0
    %1038 = vmatprep.subr.mxu0 0.0
    %1039 = vmatpush1.xpose.msra.mxu0 0.0
    %1040 = vmatprep.subr.mxu0 0.0
    %1041 = vmatpush1.xpose.msra.mxu0 0.0
    %1042 = vmatprep.subr.mxu0 0.0
    %1043 = vmatpush1.xpose.msra.mxu0 0.0
    %1044 = vmatprep.subr.mxu0 0.0
    %1045 = vmatpush1.xpose.msra.mxu0 0.0
    %1046 = vmatprep.subr.mxu0 0.0
    %1047 = vmatpush1.xpose.msra.mxu0 0.0
    %1048 = vmatprep.subr.mxu0 0.0
    %1049 = vmatpush1.xpose.msra.mxu0 0.0
    %1050 = vmatprep.subr.mxu0 0.0
    %1051 = vmatpush1.xpose.msra.mxu0 0.0
    %1052 = vmatprep.subr.mxu0 0.0
    %1053 = vmatpush1.xpose.msra.mxu0 0.0
    %1054 = vmatprep.subr.mxu0 0.0
    %1055 = vmatpush1.xpose.msra.mxu0 0.0
    %1056 = vmatprep.subr.mxu0 0.0
    %1057 = vmatpush1.xpose.msra.mxu0 0.0
    %1058 = vmatprep.subr.mxu0 0.0
    %1059 = vmatpush1.xpose.msra.mxu0 0.0
    %1060 = vmatprep.subr.mxu0 0.0
    %1061 = vmatpush1.xpose.msra.mxu0 0.0
    %1062 = vmatprep.subr.mxu0 0.0
    %1063 = vmatpush1.xpose.msra.mxu0 0.0
    %1064 = vmatprep.subr.mxu0 0.0
    %1065 = vmatpush1.xpose.msra.mxu0 0.0
    %1066 = vmatprep.subr.mxu0 0.0
    %1067 = vmatpush1.xpose.msra.mxu0 0.0
    %1068 = vmatprep.subr.mxu0 0.0
    %1069 = vmatpush1.xpose.msra.mxu0 0.0
    %1070 = vmatprep.subr.mxu0 0.0
    %1071 = vmatpush1.xpose.msra.mxu0 0.0
    %1072 = vmatprep.subr.mxu0 0.0
    %1073 = vmatpush1.xpose.msra.mxu0 0.0
    %1074 = vmatprep.subr.mxu0 0.0
    %1075 = vmatpush1.xpose.msra.mxu0 0.0
    %1076 = vmatprep.subr.mxu0 0.0
    %1077 = vmatpush1.xpose.msra.mxu0 0.0
    %1078 = vmatprep.subr.mxu0 0.0
    %1079 = vmatpush1.xpose.msra.mxu0 0.0
    %1080 = vmatprep.subr.mxu0 0.0
    %1081 = vmatpush1.xpose.msra.mxu0 0.0
    %1082 = vmatprep.subr.mxu0 0.0
    %1083 = vmatpush1.xpose.msra.mxu0 0.0
    %1084 = vmatprep.subr.mxu0 0.0
    %1085 = vmatpush1.xpose.msra.mxu0 0.0
    %1086 = vmatprep.subr.mxu0 0.0
    %1087 = vmatpush1.xpose.msra.mxu0 0.0
    %1088 = vmatprep.subr.mxu0 0.0
    %1089 = vmatpush1.xpose.msra.mxu0 0.0
    %1090 = vmatprep.subr.mxu0 0.0
    %1091 = vmatpush1.xpose.msra.mxu0 0.0
    %1092 = vmatprep.mubr.f32.mxu0 0.0
    %1093 = vmatmul.mubr.f32.gmra.mrb[0].mxu0 %v1020
    %v1094 = vpop.f32.mrb[0].mxu0
    %v1095 = vadd.f32 0.0, %v1094
    %v1096 = vpop.f32.mrb[0].mxu0
    %1097 = vmatprep.mubr.f32.mxu0 0.0
    %1098 = vmatmul.mubr.f32.gmra.mrb[0].mxu0 %v1022
    %v1099 = vpop.f32.mrb[0].mxu0
    %v1100 = vadd.f32 0.0, %v1099
    %v1101 = vpop.f32.mrb[0].mxu0
    %1102 = vdwg.mxu0
    %v1103 = vmul.f32 %v1095, 0.25
    %v1104 = vmul.f32 %v1100, 0.25
    %v1105 = vadd.f32 %v1103, %v274
    %v1106 = vadd.f32 %v1104, %v275
    %v1107 = vsel %vm535, %v1105, -inf
    %1108 = vmax.xlane.f32.xlu0 %v1107
    %v1109 = vpop.xlane.xlu0 %1108
    %v1110 = vsel %vm539, %v1106, -inf
    %1111 = vmax.xlane.f32.xlu0 %v1110
    %v1112 = vpop.xlane.xlu0 %1111
    %v1113 = vsub.f32 %v1105, %v1109
    %v1114 = vsub.f32 %v1106, %v1112
    %v1115 = vmul.f32 %v1113, 1.442695
    %v1116 = vpow.pop %v1115
    %v1117 = vmul.f32 %v1114, 1.442695
    %v1118 = vpow.pop %v1117
    %v1119 = vsel %vm535, %v1116, 0.0
    %1120 = vadd.xlane.f32.xlu0 %v1119
    %v1121 = vpop.xlane.xlu0 %1120
    %v1122 = vsel %vm539, %v1118, 0.0
    %1123 = vadd.xlane.f32.xlu0 %v1122
    %v1124 = vpop.xlane.xlu0 %1123
    %v1125 = vrcp.pop %v1121
    %v1126 = vmul.f32 %v1116, %v1125
    %v1127 = vrcp.pop %v1124
    %v1128 = vmul.f32 %v1118, %v1127
    %1129 = vrot.lane.b32.xlu0 %v425, 96
    %v1130 = vpop.permute.xlu0 %1129
    %1131 = vrot.lane.b32.xlu0 %v431, 96
    %v1132 = vpop.permute.xlu0 %1131
    %v1135 = vsel %vm535, %v1126, 0
    %v1138 = vsel %vm535, %v1128, 0
    %v1140 = vsel %vm565, %v1132, 0
    %1142 = vmatprep.subr.mxu0 0.0
    %1143 = vmatpush1.msra.mxu0 %v1130
    %1144 = vmatprep.subr.mxu0 0.0
    %1145 = vmatpush1.msra.mxu0 %v1140
    %1146 = vmatprep.subr.mxu0 0.0
    %1147 = vmatpush1.msra.mxu0 0.0
    %1148 = vmatprep.subr.mxu0 0.0
    %1149 = vmatpush1.msra.mxu0 0.0
    %1150 = vmatprep.subr.mxu0 0.0
    %1151 = vmatpush1.msra.mxu0 0.0
    %1152 = vmatprep.subr.mxu0 0.0
    %1153 = vmatpush1.msra.mxu0 0.0
    %1154 = vmatprep.subr.mxu0 0.0
    %1155 = vmatpush1.msra.mxu0 0.0
    %1156 = vmatprep.subr.mxu0 0.0
    %1157 = vmatpush1.msra.mxu0 0.0
    %1158 = vmatprep.subr.mxu0 0.0
    %1159 = vmatpush1.msra.mxu0 0.0
    %1160 = vmatprep.subr.mxu0 0.0
    %1161 = vmatpush1.msra.mxu0 0.0
    %1162 = vmatprep.subr.mxu0 0.0
    %1163 = vmatpush1.msra.mxu0 0.0
    %1164 = vmatprep.subr.mxu0 0.0
    %1165 = vmatpush1.msra.mxu0 0.0
    %1166 = vmatprep.subr.mxu0 0.0
    %1167 = vmatpush1.msra.mxu0 0.0
    %1168 = vmatprep.subr.mxu0 0.0
    %1169 = vmatpush1.msra.mxu0 0.0
    %1170 = vmatprep.subr.mxu0 0.0
    %1171 = vmatpush1.msra.mxu0 0.0
    %1172 = vmatprep.subr.mxu0 0.0
    %1173 = vmatpush1.msra.mxu0 0.0
    %1174 = vmatprep.subr.mxu0 0.0
    %1175 = vmatpush1.msra.mxu0 0.0
    %1176 = vmatprep.subr.mxu0 0.0
    %1177 = vmatpush1.msra.mxu0 0.0
    %1178 = vmatprep.subr.mxu0 0.0
    %1179 = vmatpush1.msra.mxu0 0.0
    %1180 = vmatprep.subr.mxu0 0.0
    %1181 = vmatpush1.msra.mxu0 0.0
    %1182 = vmatprep.subr.mxu0 0.0
    %1183 = vmatpush1.msra.mxu0 0.0
    %1184 = vmatprep.subr.mxu0 0.0
    %1185 = vmatpush1.msra.mxu0 0.0
    %1186 = vmatprep.subr.mxu0 0.0
    %1187 = vmatpush1.msra.mxu0 0.0
    %1188 = vmatprep.subr.mxu0 0.0
    %1189 = vmatpush1.msra.mxu0 0.0
    %1190 = vmatprep.subr.mxu0 0.0
    %1191 = vmatpush1.msra.mxu0 0.0
    %1192 = vmatprep.subr.mxu0 0.0
    %1193 = vmatpush1.msra.mxu0 0.0
    %1194 = vmatprep.subr.mxu0 0.0
    %1195 = vmatpush1.msra.mxu0 0.0
    %1196 = vmatprep.subr.mxu0 0.0
    %1197 = vmatpush1.msra.mxu0 0.0
    %1198 = vmatprep.subr.mxu0 0.0
    %1199 = vmatpush1.msra.mxu0 0.0
    %1200 = vmatprep.subr.mxu0 0.0
    %1201 = vmatpush1.msra.mxu0 0.0
    %1202 = vmatprep.subr.mxu0 0.0
    %1203 = vmatpush1.msra.mxu0 0.0
    %1204 = vmatprep.subr.mxu0 0.0
    %1205 = vmatpush1.msra.mxu0 0.0
    %1206 = vmatprep.mubr.f32.mxu0 0.0
    %1207 = vmatmul.mubr.f32.gmra.mrb[0].mxu0 %v1135
    %v1208 = vpop.f32.mrb[0].mxu0
    %v1209 = vadd.f32 0.0, %v1208
    %v1210 = vpop.f32.mrb[0].mxu0
    %1211 = vmatprep.mubr.f32.mxu0 0.0
    %1212 = vmatmul.mubr.f32.gmra.mrb[0].mxu0 %v1138
    %v1213 = vpop.f32.mrb[0].mxu0
    %v1214 = vadd.f32 0.0, %v1213
    %v1215 = vpop.f32.mrb[0].mxu0
    %1216 = vdwg.mxu0
    %v1218 = vsel %vm447, %v1209, 0
    %v1221 = vsel %vm447, %v1214, 0
    %1223 = vmatprep.subr.mxu0 0.0
    %1224 = vmatpush1.msra.mxu0 %v437
    %1225 = vmatprep.subr.mxu0 0.0
    %1226 = vmatpush1.msra.mxu0 %v438
    %1227 = vmatprep.subr.mxu0 0.0
    %1228 = vmatpush1.msra.mxu0 0.0
    %1229 = vmatprep.subr.mxu0 0.0
    %1230 = vmatpush1.msra.mxu0 0.0
    %1231 = vmatprep.subr.mxu0 0.0
    %1232 = vmatpush1.msra.mxu0 0.0
    %1233 = vmatprep.subr.mxu0 0.0
    %1234 = vmatpush1.msra.mxu0 0.0
    %1235 = vmatprep.subr.mxu0 0.0
    %1236 = vmatpush1.msra.mxu0 0.0
    %1237 = vmatprep.subr.mxu0 0.0
    %1238 = vmatpush1.msra.mxu0 0.0
    %1239 = vmatprep.subr.mxu0 0.0
    %1240 = vmatpush1.msra.mxu0 0.0
    %1241 = vmatprep.subr.mxu0 0.0
    %1242 = vmatpush1.msra.mxu0 0.0
    %1243 = vmatprep.subr.mxu0 0.0
    %1244 = vmatpush1.msra.mxu0 0.0
    %1245 = vmatprep.subr.mxu0 0.0
    %1246 = vmatpush1.msra.mxu0 0.0
    %1247 = vmatprep.subr.mxu0 0.0
    %1248 = vmatpush1.msra.mxu0 0.0
    %1249 = vmatprep.subr.mxu0 0.0
    %1250 = vmatpush1.msra.mxu0 0.0
    %1251 = vmatprep.subr.mxu0 0.0
    %1252 = vmatpush1.msra.mxu0 0.0
    %1253 = vmatprep.subr.mxu0 0.0
    %1254 = vmatpush1.msra.mxu0 0.0
    %1255 = vmatprep.subr.mxu0 0.0
    %1256 = vmatpush1.msra.mxu0 0.0
    %1257 = vmatprep.subr.mxu0 0.0
    %1258 = vmatpush1.msra.mxu0 0.0
    %1259 = vmatprep.subr.mxu0 0.0
    %1260 = vmatpush1.msra.mxu0 0.0
    %1261 = vmatprep.subr.mxu0 0.0
    %1262 = vmatpush1.msra.mxu0 0.0
    %1263 = vmatprep.subr.mxu0 0.0
    %1264 = vmatpush1.msra.mxu0 0.0
    %1265 = vmatprep.subr.mxu0 0.0
    %1266 = vmatpush1.msra.mxu0 0.0
    %1267 = vmatprep.subr.mxu0 0.0
    %1268 = vmatpush1.msra.mxu0 0.0
    %1269 = vmatprep.subr.mxu0 0.0
    %1270 = vmatpush1.msra.mxu0 0.0
    %1271 = vmatprep.subr.mxu0 0.0
    %1272 = vmatpush1.msra.mxu0 0.0
    %1273 = vmatprep.subr.mxu0 0.0
    %1274 = vmatpush1.msra.mxu0 0.0
    %1275 = vmatprep.subr.mxu0 0.0
    %1276 = vmatpush1.msra.mxu0 0.0
    %1277 = vmatprep.subr.mxu0 0.0
    %1278 = vmatpush1.msra.mxu0 0.0
    %1279 = vmatprep.subr.mxu0 0.0
    %1280 = vmatpush1.msra.mxu0 0.0
    %1281 = vmatprep.subr.mxu0 0.0
    %1282 = vmatpush1.msra.mxu0 0.0
    %1283 = vmatprep.subr.mxu0 0.0
    %1284 = vmatpush1.msra.mxu0 0.0
    %1285 = vmatprep.subr.mxu0 0.0
    %1286 = vmatpush1.msra.mxu0 0.0
    %1287 = vmatprep.mubr.f32.mxu0 0.0
    %1288 = vmatmul.mubr.f32.gmra.mrb[0].mxu0 %v1218
    %v1289 = vpop.f32.mrb[0].mxu0
    %v1290 = vadd.f32 0.0, %v1289
    %v1291 = vpop.f32.mrb[0].mxu0
    %1292 = vmatprep.mubr.f32.mxu0 0.0
    %1293 = vmatmul.mubr.f32.gmra.mrb[0].mxu0 %v1221
    %v1294 = vpop.f32.mrb[0].mxu0
    %v1295 = vadd.f32 0.0, %v1294
    %v1296 = vpop.f32.mrb[0].mxu0
    %1297 = vdwg.mxu0
    %v1298 = vadd.f32 %v1004, %v1290
    %v1299 = vadd.f32 %v1009, %v1295
    %1300 = vrot.lane.b32.xlu0 %v423, 80
    %v1301 = vpop.permute.xlu0 %1300
    %1302 = vrot.lane.b32.xlu0 %v429, 80
    %v1303 = vpop.permute.xlu0 %1302
    %1304 = vrot.lane.b32.xlu0 %v423, 16
    %v1305 = vpop.permute.xlu0 %1304
    %1306 = vrot.lane.b32.xlu0 %v429, 16
    %v1307 = vpop.permute.xlu0 %1306
    %v1308 = vsel %vm447, %v1301, 0
    %v1310 = vsel %vm447, %v1303, 0
    %v1312 = vsel %vm447, %v1305, 0
    %v1314 = vsel %vm447, %v1307, 0
    %1316 = vmatprep.subr.mxu0 0.0
    %1317 = vmatpush1.xpose.msra.mxu0 %v1312
    %1318 = vmatprep.subr.mxu0 0.0
    %1319 = vmatpush1.xpose.msra.mxu0 %v1314
    %1320 = vmatprep.subr.mxu0 0.0
    %1321 = vmatpush1.xpose.msra.mxu0 0.0
    %1322 = vmatprep.subr.mxu0 0.0
    %1323 = vmatpush1.xpose.msra.mxu0 0.0
    %1324 = vmatprep.subr.mxu0 0.0
    %1325 = vmatpush1.xpose.msra.mxu0 0.0
    %1326 = vmatprep.subr.mxu0 0.0
    %1327 = vmatpush1.xpose.msra.mxu0 0.0
    %1328 = vmatprep.subr.mxu0 0.0
    %1329 = vmatpush1.xpose.msra.mxu0 0.0
    %1330 = vmatprep.subr.mxu0 0.0
    %1331 = vmatpush1.xpose.msra.mxu0 0.0
    %1332 = vmatprep.subr.mxu0 0.0
    %1333 = vmatpush1.xpose.msra.mxu0 0.0
    %1334 = vmatprep.subr.mxu0 0.0
    %1335 = vmatpush1.xpose.msra.mxu0 0.0
    %1336 = vmatprep.subr.mxu0 0.0
    %1337 = vmatpush1.xpose.msra.mxu0 0.0
    %1338 = vmatprep.subr.mxu0 0.0
    %1339 = vmatpush1.xpose.msra.mxu0 0.0
    %1340 = vmatprep.subr.mxu0 0.0
    %1341 = vmatpush1.xpose.msra.mxu0 0.0
    %1342 = vmatprep.subr.mxu0 0.0
    %1343 = vmatpush1.xpose.msra.mxu0 0.0
    %1344 = vmatprep.subr.mxu0 0.0
    %1345 = vmatpush1.xpose.msra.mxu0 0.0
    %1346 = vmatprep.subr.mxu0 0.0
    %1347 = vmatpush1.xpose.msra.mxu0 0.0
    %1348 = vmatprep.subr.mxu0 0.0
    %1349 = vmatpush1.xpose.msra.mxu0 0.0
    %1350 = vmatprep.subr.mxu0 0.0
    %1351 = vmatpush1.xpose.msra.mxu0 0.0
    %1352 = vmatprep.subr.mxu0 0.0
    %1353 = vmatpush1.xpose.msra.mxu0 0.0
    %1354 = vmatprep.subr.mxu0 0.0
    %1355 = vmatpush1.xpose.msra.mxu0 0.0
    %1356 = vmatprep.subr.mxu0 0.0
    %1357 = vmatpush1.xpose.msra.mxu0 0.0
    %1358 = vmatprep.subr.mxu0 0.0
    %1359 = vmatpush1.xpose.msra.mxu0 0.0
    %1360 = vmatprep.subr.mxu0 0.0
    %1361 = vmatpush1.xpose.msra.mxu0 0.0
    %1362 = vmatprep.subr.mxu0 0.0
    %1363 = vmatpush1.xpose.msra.mxu0 0.0
    %1364 = vmatprep.subr.mxu0 0.0
    %1365 = vmatpush1.xpose.msra.mxu0 0.0
    %1366 = vmatprep.subr.mxu0 0.0
    %1367 = vmatpush1.xpose.msra.mxu0 0.0
    %1368 = vmatprep.subr.mxu0 0.0
    %1369 = vmatpush1.xpose.msra.mxu0 0.0
    %1370 = vmatprep.subr.mxu0 0.0
    %1371 = vmatpush1.xpose.msra.mxu0 0.0
    %1372 = vmatprep.subr.mxu0 0.0
    %1373 = vmatpush1.xpose.msra.mxu0 0.0
    %1374 = vmatprep.subr.mxu0 0.0
    %1375 = vmatpush1.xpose.msra.mxu0 0.0
    %1376 = vmatprep.subr.mxu0 0.0
    %1377 = vmatpush1.xpose.msra.mxu0 0.0
    %1378 = vmatprep.subr.mxu0 0.0
    %1379 = vmatpush1.xpose.msra.mxu0 0.0
    %1380 = vmatprep.mubr.f32.mxu0 0.0
    %1381 = vmatmul.mubr.f32.gmra.mrb[0].mxu0 %v1308
    %v1382 = vpop.f32.mrb[0].mxu0
    %v1383 = vadd.f32 0.0, %v1382
    %v1384 = vpop.f32.mrb[0].mxu0
    %1385 = vmatprep.mubr.f32.mxu0 0.0
    %1386 = vmatmul.mubr.f32.gmra.mrb[0].mxu0 %v1310
    %v1387 = vpop.f32.mrb[0].mxu0
    %v1388 = vadd.f32 0.0, %v1387
    %v1389 = vpop.f32.mrb[0].mxu0
    %1390 = vdwg.mxu0
    %v1391 = vmul.f32 %v1383, 0.25
    %v1392 = vmul.f32 %v1388, 0.25
    %v1393 = vadd.f32 %v1391, %v274
    %v1394 = vadd.f32 %v1392, %v275
    %v1395 = vsel %vm535, %v1393, -inf
    %1396 = vmax.xlane.f32.xlu0 %v1395
    %v1397 = vpop.xlane.xlu0 %1396
    %v1398 = vsel %vm539, %v1394, -inf
    %1399 = vmax.xlane.f32.xlu0 %v1398
    %v1400 = vpop.xlane.xlu0 %1399
    %v1401 = vsub.f32 %v1393, %v1397
    %v1402 = vsub.f32 %v1394, %v1400
    %v1403 = vmul.f32 %v1401, 1.442695
    %v1404 = vpow.pop %v1403
    %v1405 = vmul.f32 %v1402, 1.442695
    %v1406 = vpow.pop %v1405
    %v1407 = vsel %vm535, %v1404, 0.0
    %1408 = vadd.xlane.f32.xlu0 %v1407
    %v1409 = vpop.xlane.xlu0 %1408
    %v1410 = vsel %vm539, %v1406, 0.0
    %1411 = vadd.xlane.f32.xlu0 %v1410
    %v1412 = vpop.xlane.xlu0 %1411
    %v1413 = vrcp.pop %v1409
    %v1414 = vmul.f32 %v1404, %v1413
    %v1415 = vrcp.pop %v1412
    %v1416 = vmul.f32 %v1406, %v1415
    %1417 = vrot.lane.b32.xlu0 %v425, 80
    %v1418 = vpop.permute.xlu0 %1417
    %1419 = vrot.lane.b32.xlu0 %v431, 80
    %v1420 = vpop.permute.xlu0 %1419
    %v1423 = vsel %vm535, %v1414, 0
    %v1426 = vsel %vm535, %v1416, 0
    %v1428 = vsel %vm565, %v1420, 0
    %1430 = vmatprep.subr.mxu0 0.0
    %1431 = vmatpush1.msra.mxu0 %v1418
    %1432 = vmatprep.subr.mxu0 0.0
    %1433 = vmatpush1.msra.mxu0 %v1428
    %1434 = vmatprep.subr.mxu0 0.0
    %1435 = vmatpush1.msra.mxu0 0.0
    %1436 = vmatprep.subr.mxu0 0.0
    %1437 = vmatpush1.msra.mxu0 0.0
    %1438 = vmatprep.subr.mxu0 0.0
    %1439 = vmatpush1.msra.mxu0 0.0
    %1440 = vmatprep.subr.mxu0 0.0
    %1441 = vmatpush1.msra.mxu0 0.0
    %1442 = vmatprep.subr.mxu0 0.0
    %1443 = vmatpush1.msra.mxu0 0.0
    %1444 = vmatprep.subr.mxu0 0.0
    %1445 = vmatpush1.msra.mxu0 0.0
    %1446 = vmatprep.subr.mxu0 0.0
    %1447 = vmatpush1.msra.mxu0 0.0
    %1448 = vmatprep.subr.mxu0 0.0
    %1449 = vmatpush1.msra.mxu0 0.0
    %1450 = vmatprep.subr.mxu0 0.0
    %1451 = vmatpush1.msra.mxu0 0.0
    %1452 = vmatprep.subr.mxu0 0.0
    %1453 = vmatpush1.msra.mxu0 0.0
    %1454 = vmatprep.subr.mxu0 0.0
    %1455 = vmatpush1.msra.mxu0 0.0
    %1456 = vmatprep.subr.mxu0 0.0
    %1457 = vmatpush1.msra.mxu0 0.0
    %1458 = vmatprep.subr.mxu0 0.0
    %1459 = vmatpush1.msra.mxu0 0.0
    %1460 = vmatprep.subr.mxu0 0.0
    %1461 = vmatpush1.msra.mxu0 0.0
    %1462 = vmatprep.subr.mxu0 0.0
    %1463 = vmatpush1.msra.mxu0 0.0
    %1464 = vmatprep.subr.mxu0 0.0
    %1465 = vmatpush1.msra.mxu0 0.0
    %1466 = vmatprep.subr.mxu0 0.0
    %1467 = vmatpush1.msra.mxu0 0.0
    %1468 = vmatprep.subr.mxu0 0.0
    %1469 = vmatpush1.msra.mxu0 0.0
    %1470 = vmatprep.subr.mxu0 0.0
    %1471 = vmatpush1.msra.mxu0 0.0
    %1472 = vmatprep.subr.mxu0 0.0
    %1473 = vmatpush1.msra.mxu0 0.0
    %1474 = vmatprep.subr.mxu0 0.0
    %1475 = vmatpush1.msra.mxu0 0.0
    %1476 = vmatprep.subr.mxu0 0.0
    %1477 = vmatpush1.msra.mxu0 0.0
    %1478 = vmatprep.subr.mxu0 0.0
    %1479 = vmatpush1.msra.mxu0 0.0
    %1480 = vmatprep.subr.mxu0 0.0
    %1481 = vmatpush1.msra.mxu0 0.0
    %1482 = vmatprep.subr.mxu0 0.0
    %1483 = vmatpush1.msra.mxu0 0.0
    %1484 = vmatprep.subr.mxu0 0.0
    %1485 = vmatpush1.msra.mxu0 0.0
    %1486 = vmatprep.subr.mxu0 0.0
    %1487 = vmatpush1.msra.mxu0 0.0
    %1488 = vmatprep.subr.mxu0 0.0
    %1489 = vmatpush1.msra.mxu0 0.0
    %1490 = vmatprep.subr.mxu0 0.0
    %1491 = vmatpush1.msra.mxu0 0.0
    %1492 = vmatprep.subr.mxu0 0.0
    %1493 = vmatpush1.msra.mxu0 0.0
    %1494 = vmatprep.mubr.f32.mxu0 0.0
    %1495 = vmatmul.mubr.f32.gmra.mrb[0].mxu0 %v1423
    %v1496 = vpop.f32.mrb[0].mxu0
    %v1497 = vadd.f32 0.0, %v1496
    %v1498 = vpop.f32.mrb[0].mxu0
    %1499 = vmatprep.mubr.f32.mxu0 0.0
    %1500 = vmatmul.mubr.f32.gmra.mrb[0].mxu0 %v1426
    %v1501 = vpop.f32.mrb[0].mxu0
    %v1502 = vadd.f32 0.0, %v1501
    %v1503 = vpop.f32.mrb[0].mxu0
    %1504 = vdwg.mxu0
    %v1506 = vsel %vm447, %v1497, 0
    %v1509 = vsel %vm447, %v1502, 0
    %1511 = vmatprep.subr.mxu0 0.0
    %1512 = vmatpush1.msra.mxu0 %v439
    %1513 = vmatprep.subr.mxu0 0.0
    %1514 = vmatpush1.msra.mxu0 %v440
    %1515 = vmatprep.subr.mxu0 0.0
    %1516 = vmatpush1.msra.mxu0 0.0
    %1517 = vmatprep.subr.mxu0 0.0
    %1518 = vmatpush1.msra.mxu0 0.0
    %1519 = vmatprep.subr.mxu0 0.0
    %1520 = vmatpush1.msra.mxu0 0.0
    %1521 = vmatprep.subr.mxu0 0.0
    %1522 = vmatpush1.msra.mxu0 0.0
    %1523 = vmatprep.subr.mxu0 0.0
    %1524 = vmatpush1.msra.mxu0 0.0
    %1525 = vmatprep.subr.mxu0 0.0
    %1526 = vmatpush1.msra.mxu0 0.0
    %1527 = vmatprep.subr.mxu0 0.0
    %1528 = vmatpush1.msra.mxu0 0.0
    %1529 = vmatprep.subr.mxu0 0.0
    %1530 = vmatpush1.msra.mxu0 0.0
    %1531 = vmatprep.subr.mxu0 0.0
    %1532 = vmatpush1.msra.mxu0 0.0
    %1533 = vmatprep.subr.mxu0 0.0
    %1534 = vmatpush1.msra.mxu0 0.0
    %1535 = vmatprep.subr.mxu0 0.0
    %1536 = vmatpush1.msra.mxu0 0.0
    %1537 = vmatprep.subr.mxu0 0.0
    %1538 = vmatpush1.msra.mxu0 0.0
    %1539 = vmatprep.subr.mxu0 0.0
    %1540 = vmatpush1.msra.mxu0 0.0
    %1541 = vmatprep.subr.mxu0 0.0
    %1542 = vmatpush1.msra.mxu0 0.0
    %1543 = vmatprep.subr.mxu0 0.0
    %1544 = vmatpush1.msra.mxu0 0.0
    %1545 = vmatprep.subr.mxu0 0.0
    %1546 = vmatpush1.msra.mxu0 0.0
    %1547 = vmatprep.subr.mxu0 0.0
    %1548 = vmatpush1.msra.mxu0 0.0
    %1549 = vmatprep.subr.mxu0 0.0
    %1550 = vmatpush1.msra.mxu0 0.0
    %1551 = vmatprep.subr.mxu0 0.0
    %1552 = vmatpush1.msra.mxu0 0.0
    %1553 = vmatprep.subr.mxu0 0.0
    %1554 = vmatpush1.msra.mxu0 0.0
    %1555 = vmatprep.subr.mxu0 0.0
    %1556 = vmatpush1.msra.mxu0 0.0
    %1557 = vmatprep.subr.mxu0 0.0
    %1558 = vmatpush1.msra.mxu0 0.0
    %1559 = vmatprep.subr.mxu0 0.0
    %1560 = vmatpush1.msra.mxu0 0.0
    %1561 = vmatprep.subr.mxu0 0.0
    %1562 = vmatpush1.msra.mxu0 0.0
    %1563 = vmatprep.subr.mxu0 0.0
    %1564 = vmatpush1.msra.mxu0 0.0
    %1565 = vmatprep.subr.mxu0 0.0
    %1566 = vmatpush1.msra.mxu0 0.0
    %1567 = vmatprep.subr.mxu0 0.0
    %1568 = vmatpush1.msra.mxu0 0.0
    %1569 = vmatprep.subr.mxu0 0.0
    %1570 = vmatpush1.msra.mxu0 0.0
    %1571 = vmatprep.subr.mxu0 0.0
    %1572 = vmatpush1.msra.mxu0 0.0
    %1573 = vmatprep.subr.mxu0 0.0
    %1574 = vmatpush1.msra.mxu0 0.0
    %1575 = vmatprep.mubr.f32.mxu0 0.0
    %1576 = vmatmul.mubr.f32.gmra.mrb[0].mxu0 %v1506
    %v1577 = vpop.f32.mrb[0].mxu0
    %v1578 = vadd.f32 0.0, %v1577
    %v1579 = vpop.f32.mrb[0].mxu0
    %1580 = vmatprep.mubr.f32.mxu0 0.0
    %1581 = vmatmul.mubr.f32.gmra.mrb[0].mxu0 %v1509
    %v1582 = vpop.f32.mrb[0].mxu0
    %v1583 = vadd.f32 0.0, %v1582
    %v1584 = vpop.f32.mrb[0].mxu0
    %1585 = vdwg.mxu0
    %v1586 = vadd.f32 %v1298, %v1578
    %v1587 = vadd.f32 %v1299, %v1583
    %v1588 = vadd.f32 %v266, %v1586
    %v1589 = vadd.f32 %v271, %v1587
    %v1590 = vld [vmem:[%s12] sm:$0x1]
    %v1592 = vlaneseq
    %v1593 = vshrl.u32 %v1592, 7
    %v1594 = vsub.s32 0, %v1593
    %v1595 = vrot.slane %v1590, %v1594
    %v1597 = vadd.f32 %v1588, %v1595
    %v1598 = vadd.f32 %v1589, %v1595
    %v1599 = vld [vmem:[%s13] sm:$0x1]
    %v1600 = vld [vmem:[%s14] sm:$0x1]
    %v1601 = vsel %vm114, %v1597, 0.0
    %1602 = vadd.xlane.f32.xlu0 %v1601
    %v1603 = vpop.xlane.xlu0 %1602
    %v1604 = vsel %vm281, %v1598, 0.0
    %1605 = vadd.xlane.f32.xlu0 %v1604
    %v1606 = vpop.xlane.xlu0 %1605
    %v1607 = vmul.f32 %v1603, %v285
    %v1608 = vmul.f32 %v1606, %v285
    %v1609 = vsub.f32 %v1597, %v1607
    %v1610 = vsub.f32 %v1598, %v1608
    %v1611 = vmul.f32 %v1609, %v1609
    %v1612 = vmul.f32 %v1610, %v1610
    %v1613 = vsel %vm114, %v1611, 0.0
    %1614 = vadd.xlane.f32.xlu0 %v1613
    %v1615 = vpop.xlane.xlu0 %1614
    %v1616 = vsel %vm281, %v1612, 0.0
    %1617 = vadd.xlane.f32.xlu0 %v1616
    %v1618 = vpop.xlane.xlu0 %1617
    %v1619 = vmul.f32 %v1615, %v285
    %v1620 = vmul.f32 %v1618, %v285
    %v1621 = vadd.f32 %v1619, 1e-12
    %v1622 = vadd.f32 %v1620, 1e-12
    %v1623 = vrsqrt.pop %v1621
    %v1624 = vrsqrt.pop %v1622
    %v1625 = vmul.f32 %v1609, %v1623
    %v1626 = vmul.f32 %v1610, %v1624
    %v1628 = vlaneseq
    %v1629 = vshrl.u32 %v1628, 7
    %v1630 = vsub.s32 0, %v1629
    %v1631 = vrot.slane %v1599, %v1630
    %v1633 = vmul.f32 %v1625, %v1631
    %v1634 = vmul.f32 %v1626, %v1631
    %v1636 = vlaneseq
    %v1637 = vshrl.u32 %v1636, 7
    %v1638 = vsub.s32 0, %v1637
    %v1639 = vrot.slane %v1600, %v1638
    %v1641 = vadd.f32 %v1633, %v1639
    %v1642 = vadd.f32 %v1634, %v1639
    %v1643 = vld [vmem:[%s15] sm:$0xff]
    %v1644 = vld [vmem:[%s15 + $0x8] sm:$0xff]
    %v1645 = vld [vmem:[%s15 + $0x10] sm:$0xff]
    %v1646 = vld [vmem:[%s15 + $0x18] sm:$0xff]
    %v1647 = vld [vmem:[%s15 + $0x20] sm:$0xff]
    %v1648 = vld [vmem:[%s15 + $0x28] sm:$0xff]
    %v1649 = vld [vmem:[%s15 + $0x30] sm:$0xff]
    %v1650 = vld [vmem:[%s15 + $0x38] sm:$0xff]
    %v1651 = vld [vmem:[%s16] sm:$0x1]
    %v1653 = vlaneseq
    %v1654 = vshrl.u32 %v1653, 7
    %v1655 = vsub.s32 0, %v1654
    %v1656 = vrot.slane %v1651, %v1655
    %v1659 = vsel %vm114, %v1641, 0
    %v1662 = vsel %vm114, %v1642, 0
    %1664 = vmatprep.subr.mxu0 0.0
    %1665 = vmatpush1.msra.mxu0 %v1643
    %1666 = vmatprep.subr.mxu0 0.0
    %1667 = vmatpush1.msra.mxu0 %v1644
    %1668 = vmatprep.subr.mxu0 0.0
    %1669 = vmatpush1.msra.mxu0 %v1645
    %1670 = vmatprep.subr.mxu0 0.0
    %1671 = vmatpush1.msra.mxu0 %v1646
    %1672 = vmatprep.subr.mxu0 0.0
    %1673 = vmatpush1.msra.mxu0 %v1647
    %1674 = vmatprep.subr.mxu0 0.0
    %1675 = vmatpush1.msra.mxu0 %v1648
    %1676 = vmatprep.subr.mxu0 0.0
    %1677 = vmatpush1.msra.mxu0 %v1649
    %1678 = vmatprep.subr.mxu0 0.0
    %1679 = vmatpush1.msra.mxu0 %v1650
    %1680 = vmatprep.subr.mxu0 0.0
    %1681 = vmatpush1.msra.mxu0 0.0
    %1682 = vmatprep.subr.mxu0 0.0
    %1683 = vmatpush1.msra.mxu0 0.0
    %1684 = vmatprep.subr.mxu0 0.0
    %1685 = vmatpush1.msra.mxu0 0.0
    %1686 = vmatprep.subr.mxu0 0.0
    %1687 = vmatpush1.msra.mxu0 0.0
    %1688 = vmatprep.subr.mxu0 0.0
    %1689 = vmatpush1.msra.mxu0 0.0
    %1690 = vmatprep.subr.mxu0 0.0
    %1691 = vmatpush1.msra.mxu0 0.0
    %1692 = vmatprep.subr.mxu0 0.0
    %1693 = vmatpush1.msra.mxu0 0.0
    %1694 = vmatprep.subr.mxu0 0.0
    %1695 = vmatpush1.msra.mxu0 0.0
    %1696 = vmatprep.subr.mxu0 0.0
    %1697 = vmatpush1.msra.mxu0 0.0
    %1698 = vmatprep.subr.mxu0 0.0
    %1699 = vmatpush1.msra.mxu0 0.0
    %1700 = vmatprep.subr.mxu0 0.0
    %1701 = vmatpush1.msra.mxu0 0.0
    %1702 = vmatprep.subr.mxu0 0.0
    %1703 = vmatpush1.msra.mxu0 0.0
    %1704 = vmatprep.subr.mxu0 0.0
    %1705 = vmatpush1.msra.mxu0 0.0
    %1706 = vmatprep.subr.mxu0 0.0
    %1707 = vmatpush1.msra.mxu0 0.0
    %1708 = vmatprep.subr.mxu0 0.0
    %1709 = vmatpush1.msra.mxu0 0.0
    %1710 = vmatprep.subr.mxu0 0.0
    %1711 = vmatpush1.msra.mxu0 0.0
    %1712 = vmatprep.subr.mxu0 0.0
    %1713 = vmatpush1.msra.mxu0 0.0
    %1714 = vmatprep.subr.mxu0 0.0
    %1715 = vmatpush1.msra.mxu0 0.0
    %1716 = vmatprep.subr.mxu0 0.0
    %1717 = vmatpush1.msra.mxu0 0.0
    %1718 = vmatprep.subr.mxu0 0.0
    %1719 = vmatpush1.msra.mxu0 0.0
    %1720 = vmatprep.subr.mxu0 0.0
    %1721 = vmatpush1.msra.mxu0 0.0
    %1722 = vmatprep.subr.mxu0 0.0
    %1723 = vmatpush1.msra.mxu0 0.0
    %1724 = vmatprep.subr.mxu0 0.0
    %1725 = vmatpush1.msra.mxu0 0.0
    %1726 = vmatprep.subr.mxu0 0.0
    %1727 = vmatpush1.msra.mxu0 0.0
    %1728 = vmatprep.mubr.f32.mxu0 0.0
    %1729 = vmatmul.mubr.f32.gmra.mrb[0].mxu0 %v1659
    %v1730 = vpop.f32.mrb[0].mxu0
    %v1731 = vadd.f32 %v1656, %v1730
    %v1732 = vpop.f32.mrb[0].mxu0
    %1733 = vmatprep.mubr.f32.mxu0 0.0
    %1734 = vmatmul.mubr.f32.gmra.mrb[0].mxu0 %v1662
    %v1735 = vpop.f32.mrb[0].mxu0
    %v1736 = vadd.f32 %v1656, %v1735
    %v1737 = vpop.f32.mrb[0].mxu0
    %1738 = vdwg.mxu0
    %v1739 = vmul.f32 %v1731, 0.5
    %v1740 = vmul.f32 %v1736, 0.5
    %v1741 = vmul.f32 %v1731, 0.70710677
    %v1742 = vmul.f32 %v1736, 0.70710677
    %v1743 = vand.u32 2147483647, %v1741
    %v1744 = vand.u32 2147483647, %v1742
    %v1745 = vmul.f32 %v1743, 0.3275911
    %v1746 = vmul.f32 %v1744, 0.3275911
    %v1747 = vadd.f32 %v1745, 1.0
    %v1748 = vadd.f32 %v1746, 1.0
    %v1749 = vrcp.pop %v1747
    %v1750 = vmul.f32 1.0, %v1749
    %v1751 = vrcp.pop %v1748
    %v1752 = vmul.f32 1.0, %v1751
    %v1753 = vmul.f32 %v1750, 1.0614054
    %v1754 = vmul.f32 %v1752, 1.0614054
    %v1755 = vadd.f32 %v1753, -1.4531521
    %v1756 = vadd.f32 %v1754, -1.4531521
    %v1757 = vmul.f32 %v1755, %v1750
    %v1758 = vmul.f32 %v1756, %v1752
    %v1759 = vadd.f32 %v1757, 1.4214138
    %v1760 = vadd.f32 %v1758, 1.4214138
    %v1761 = vmul.f32 %v1759, %v1750
    %v1762 = vmul.f32 %v1760, %v1752
    %v1763 = vadd.f32 %v1761, -0.28449672
    %v1764 = vadd.f32 %v1762, -0.28449672
    %v1765 = vmul.f32 %v1763, %v1750
    %v1766 = vmul.f32 %v1764, %v1752
    %v1767 = vadd.f32 %v1765, 0.2548296
    %v1768 = vadd.f32 %v1766, 0.2548296
    %v1769 = vmul.f32 %v1767, %v1750
    %v1770 = vmul.f32 %v1768, %v1752
    %v1771 = vsub.f32 0.0, %v1743
    %v1772 = vsub.f32 0.0, %v1744
    %v1773 = vmul.f32 %v1771, %v1743
    %v1774 = vmul.f32 %v1772, %v1744
    %v1775 = vmul.f32 %v1773, 1.442695
    %v1776 = vpow.pop %v1775
    %v1777 = vmul.f32 %v1774, 1.442695
    %v1778 = vpow.pop %v1777
    %v1779 = vmul.f32 %v1769, %v1776
    %v1780 = vmul.f32 %v1770, %v1778
    %v1781 = vsub.f32 1.0, %v1779
    %v1782 = vsub.f32 1.0, %v1780
    %vm1783 = vcmp.ge.f32.partialorder %v1741, 0.0
    %vm1784 = vcmp.ge.f32.partialorder %v1742, 0.0
    %v1785 = vsub.f32 0.0, %v1781
    %v1786 = vsub.f32 0.0, %v1782
    %v1787 = vsel %vm1783, %v1781, %v1785
    %v1788 = vsel %vm1784, %v1782, %v1786
    %v1789 = vadd.f32 %v1787, 1.0
    %v1790 = vadd.f32 %v1788, 1.0
    %v1791 = vmul.f32 %v1739, %v1789
    %v1792 = vmul.f32 %v1740, %v1790
    %v1793 = vld [vmem:[%s17] sm:$0xff]
    %v1794 = vld [vmem:[%s17 + $0x8] sm:$0xff]
    %v1795 = vld [vmem:[%s17 + $0x10] sm:$0xff]
    %v1796 = vld [vmem:[%s17 + $0x18] sm:$0xff]
    %v1797 = vld [vmem:[%s17 + $0x20] sm:$0xff]
    %v1798 = vld [vmem:[%s17 + $0x28] sm:$0xff]
    %v1799 = vld [vmem:[%s17 + $0x30] sm:$0xff]
    %v1800 = vld [vmem:[%s17 + $0x38] sm:$0xff]
    %v1801 = vld [vmem:[%s17 + $0x40] sm:$0xff]
    %v1802 = vld [vmem:[%s17 + $0x48] sm:$0xff]
    %v1803 = vld [vmem:[%s17 + $0x50] sm:$0xff]
    %v1804 = vld [vmem:[%s17 + $0x58] sm:$0xff]
    %v1805 = vld [vmem:[%s17 + $0x60] sm:$0xff]
    %v1806 = vld [vmem:[%s17 + $0x68] sm:$0xff]
    %v1807 = vld [vmem:[%s17 + $0x70] sm:$0xff]
    %v1808 = vld [vmem:[%s17 + $0x78] sm:$0xff]
    %1809 = vmatprep.subr.mxu0 0.0
    %1810 = vmatpush1.msra.mxu0 %v1793
    %1811 = vmatprep.subr.mxu0 0.0
    %1812 = vmatpush1.msra.mxu0 %v1794
    %1813 = vmatprep.subr.mxu0 0.0
    %1814 = vmatpush1.msra.mxu0 %v1795
    %1815 = vmatprep.subr.mxu0 0.0
    %1816 = vmatpush1.msra.mxu0 %v1796
    %1817 = vmatprep.subr.mxu0 0.0
    %1818 = vmatpush1.msra.mxu0 %v1797
    %1819 = vmatprep.subr.mxu0 0.0
    %1820 = vmatpush1.msra.mxu0 %v1798
    %1821 = vmatprep.subr.mxu0 0.0
    %1822 = vmatpush1.msra.mxu0 %v1799
    %1823 = vmatprep.subr.mxu0 0.0
    %1824 = vmatpush1.msra.mxu0 %v1800
    %1825 = vmatprep.subr.mxu0 0.0
    %1826 = vmatpush1.msra.mxu0 %v1801
    %1827 = vmatprep.subr.mxu0 0.0
    %1828 = vmatpush1.msra.mxu0 %v1802
    %1829 = vmatprep.subr.mxu0 0.0
    %1830 = vmatpush1.msra.mxu0 %v1803
    %1831 = vmatprep.subr.mxu0 0.0
    %1832 = vmatpush1.msra.mxu0 %v1804
    %1833 = vmatprep.subr.mxu0 0.0
    %1834 = vmatpush1.msra.mxu0 %v1805
    %1835 = vmatprep.subr.mxu0 0.0
    %1836 = vmatpush1.msra.mxu0 %v1806
    %1837 = vmatprep.subr.mxu0 0.0
    %1838 = vmatpush1.msra.mxu0 %v1807
    %1839 = vmatprep.subr.mxu0 0.0
    %1840 = vmatpush1.msra.mxu0 %v1808
    %1841 = vmatprep.subr.mxu0 0.0
    %1842 = vmatpush1.msra.mxu0 0.0
    %1843 = vmatprep.subr.mxu0 0.0
    %1844 = vmatpush1.msra.mxu0 0.0
    %1845 = vmatprep.subr.mxu0 0.0
    %1846 = vmatpush1.msra.mxu0 0.0
    %1847 = vmatprep.subr.mxu0 0.0
    %1848 = vmatpush1.msra.mxu0 0.0
    %1849 = vmatprep.subr.mxu0 0.0
    %1850 = vmatpush1.msra.mxu0 0.0
    %1851 = vmatprep.subr.mxu0 0.0
    %1852 = vmatpush1.msra.mxu0 0.0
    %1853 = vmatprep.subr.mxu0 0.0
    %1854 = vmatpush1.msra.mxu0 0.0
    %1855 = vmatprep.subr.mxu0 0.0
    %1856 = vmatpush1.msra.mxu0 0.0
    %1857 = vmatprep.subr.mxu0 0.0
    %1858 = vmatpush1.msra.mxu0 0.0
    %1859 = vmatprep.subr.mxu0 0.0
    %1860 = vmatpush1.msra.mxu0 0.0
    %1861 = vmatprep.subr.mxu0 0.0
    %1862 = vmatpush1.msra.mxu0 0.0
    %1863 = vmatprep.subr.mxu0 0.0
    %1864 = vmatpush1.msra.mxu0 0.0
    %1865 = vmatprep.subr.mxu0 0.0
    %1866 = vmatpush1.msra.mxu0 0.0
    %1867 = vmatprep.subr.mxu0 0.0
    %1868 = vmatpush1.msra.mxu0 0.0
    %1869 = vmatprep.subr.mxu0 0.0
    %1870 = vmatpush1.msra.mxu0 0.0
    %1871 = vmatprep.subr.mxu0 0.0
    %1872 = vmatpush1.msra.mxu0 0.0
    %1873 = vmatprep.mubr.f32.mxu0 0.0
    %1874 = vmatmul.mubr.f32.gmra.mrb[0].mxu0 %v1791
    %v1875 = vpop.f32.mrb[0].mxu0
    %v1876 = vadd.f32 0.0, %v1875
    %v1877 = vpop.f32.mrb[0].mxu0
    %1878 = vmatprep.mubr.f32.mxu0 0.0
    %1879 = vmatmul.mubr.f32.gmra.mrb[0].mxu0 %v1792
    %v1880 = vpop.f32.mrb[0].mxu0
    %v1881 = vadd.f32 0.0, %v1880
    %v1882 = vpop.f32.mrb[0].mxu0
    %1883 = vdwg.mxu0
    %v1884 = vadd.f32 %v1597, %v1876
    %v1885 = vadd.f32 %v1598, %v1881
    %v1886 = vld [vmem:[%s18] sm:$0x1]
    %v1888 = vlaneseq
    %v1889 = vshrl.u32 %v1888, 7
    %v1890 = vsub.s32 0, %v1889
    %v1891 = vrot.slane %v1886, %v1890
    %v1893 = vadd.f32 %v1884, %v1891
    %v1894 = vadd.f32 %v1885, %v1891
    %s1895 = scalar_lea.vmem %s7, 1
    %v1896 = vld [vmem:[%s1895] sm:$0x1]
    %s1897 = scalar_lea.vmem %s8, 1
    %v1898 = vld [vmem:[%s1897] sm:$0x1]
    %v1899 = vsel %vm114, %v1893, 0.0
    %1900 = vadd.xlane.f32.xlu0 %v1899
    %v1901 = vpop.xlane.xlu0 %1900
    %v1902 = vsel %vm281, %v1894, 0.0
    %1903 = vadd.xlane.f32.xlu0 %v1902
    %v1904 = vpop.xlane.xlu0 %1903
    %v1905 = vmul.f32 %v1901, %v285
    %v1906 = vmul.f32 %v1904, %v285
    %v1907 = vsub.f32 %v1893, %v1905
    %v1908 = vsub.f32 %v1894, %v1906
    %v1909 = vmul.f32 %v1907, %v1907
    %v1910 = vmul.f32 %v1908, %v1908
    %v1911 = vsel %vm114, %v1909, 0.0
    %1912 = vadd.xlane.f32.xlu0 %v1911
    %v1913 = vpop.xlane.xlu0 %1912
    %v1914 = vsel %vm281, %v1910, 0.0
    %1915 = vadd.xlane.f32.xlu0 %v1914
    %v1916 = vpop.xlane.xlu0 %1915
    %v1917 = vmul.f32 %v1913, %v285
    %v1918 = vmul.f32 %v1916, %v285
    %v1919 = vadd.f32 %v1917, 1e-12
    %v1920 = vadd.f32 %v1918, 1e-12
    %v1921 = vrsqrt.pop %v1919
    %v1922 = vrsqrt.pop %v1920
    %v1923 = vmul.f32 %v1907, %v1921
    %v1924 = vmul.f32 %v1908, %v1922
    %v1926 = vlaneseq
    %v1927 = vshrl.u32 %v1926, 7
    %v1928 = vsub.s32 0, %v1927
    %v1929 = vrot.slane %v1896, %v1928
    %v1931 = vmul.f32 %v1923, %v1929
    %v1932 = vmul.f32 %v1924, %v1929
    %v1934 = vlaneseq
    %v1935 = vshrl.u32 %v1934, 7
    %v1936 = vsub.s32 0, %v1935
    %v1937 = vrot.slane %v1898, %v1936
    %v1939 = vadd.f32 %v1931, %v1937
    %v1940 = vadd.f32 %v1932, %v1937
    %s1941 = scalar_lea.vmem %s9, 128
    %v1942 = vld [vmem:[%s1941] sm:$0xff]
    %v1943 = vld [vmem:[%s1941 + $0x8] sm:$0xff]
    %v1944 = vld [vmem:[%s1941 + $0x10] sm:$0xff]
    %v1945 = vld [vmem:[%s1941 + $0x18] sm:$0xff]
    %v1946 = vld [vmem:[%s1941 + $0x20] sm:$0xff]
    %v1947 = vld [vmem:[%s1941 + $0x28] sm:$0xff]
    %v1948 = vld [vmem:[%s1941 + $0x30] sm:$0xff]
    %v1949 = vld [vmem:[%s1941 + $0x38] sm:$0xff]
    %v1950 = vld [vmem:[%s1941 + $0x40] sm:$0xff]
    %v1951 = vld [vmem:[%s1941 + $0x48] sm:$0xff]
    %v1952 = vld [vmem:[%s1941 + $0x50] sm:$0xff]
    %v1953 = vld [vmem:[%s1941 + $0x58] sm:$0xff]
    %v1954 = vld [vmem:[%s1941 + $0x60] sm:$0xff]
    %v1955 = vld [vmem:[%s1941 + $0x68] sm:$0xff]
    %v1956 = vld [vmem:[%s1941 + $0x70] sm:$0xff]
    %v1957 = vld [vmem:[%s1941 + $0x78] sm:$0xff]
    %s1958 = scalar_lea.vmem %s10, 2
    %v1959 = vld [vmem:[%s1958] sm:$0x3]
    %v1961 = vlaneseq
    %v1962 = vshrl.u32 %v1961, 7
    %v1963 = vsub.s32 0, %v1962
    %v1964 = vrot.slane %v1959, %v1963
    %v1965 = vlaneseq
    %v1966 = vshrl.u32 %v1965, 7
    %v1967 = vsub.s32 1, %v1966
    %v1968 = vrot.slane %v1959, %v1967
    %v1972 = vsel %vm114, %v1939, 0
    %v1975 = vsel %vm114, %v1940, 0
    %1977 = vmatprep.subr.mxu0 %v1943
    %1978 = vmatpush1.msra.mxu0 %v1942
    %1979 = vmatprep.subr.mxu0 %v1945
    %1980 = vmatpush1.msra.mxu0 %v1944
    %1981 = vmatprep.subr.mxu0 %v1947
    %1982 = vmatpush1.msra.mxu0 %v1946
    %1983 = vmatprep.subr.mxu0 %v1949
    %1984 = vmatpush1.msra.mxu0 %v1948
    %1985 = vmatprep.subr.mxu0 %v1951
    %1986 = vmatpush1.msra.mxu0 %v1950
    %1987 = vmatprep.subr.mxu0 %v1953
    %1988 = vmatpush1.msra.mxu0 %v1952
    %1989 = vmatprep.subr.mxu0 %v1955
    %1990 = vmatpush1.msra.mxu0 %v1954
    %1991 = vmatprep.subr.mxu0 %v1957
    %1992 = vmatpush1.msra.mxu0 %v1956
    %1993 = vmatprep.subr.mxu0 0.0
    %1994 = vmatpush1.msra.mxu0 0.0
    %1995 = vmatprep.subr.mxu0 0.0
    %1996 = vmatpush1.msra.mxu0 0.0
    %1997 = vmatprep.subr.mxu0 0.0
    %1998 = vmatpush1.msra.mxu0 0.0
    %1999 = vmatprep.subr.mxu0 0.0
    %2000 = vmatpush1.msra.mxu0 0.0
    %2001 = vmatprep.subr.mxu0 0.0
    %2002 = vmatpush1.msra.mxu0 0.0
    %2003 = vmatprep.subr.mxu0 0.0
    %2004 = vmatpush1.msra.mxu0 0.0
    %2005 = vmatprep.subr.mxu0 0.0
    %2006 = vmatpush1.msra.mxu0 0.0
    %2007 = vmatprep.subr.mxu0 0.0
    %2008 = vmatpush1.msra.mxu0 0.0
    %2009 = vmatprep.subr.mxu0 0.0
    %2010 = vmatpush1.msra.mxu0 0.0
    %2011 = vmatprep.subr.mxu0 0.0
    %2012 = vmatpush1.msra.mxu0 0.0
    %2013 = vmatprep.subr.mxu0 0.0
    %2014 = vmatpush1.msra.mxu0 0.0
    %2015 = vmatprep.subr.mxu0 0.0
    %2016 = vmatpush1.msra.mxu0 0.0
    %2017 = vmatprep.subr.mxu0 0.0
    %2018 = vmatpush1.msra.mxu0 0.0
    %2019 = vmatprep.subr.mxu0 0.0
    %2020 = vmatpush1.msra.mxu0 0.0
    %2021 = vmatprep.subr.mxu0 0.0
    %2022 = vmatpush1.msra.mxu0 0.0
    %2023 = vmatprep.subr.mxu0 0.0
    %2024 = vmatpush1.msra.mxu0 0.0
    %2025 = vmatprep.subr.mxu0 0.0
    %2026 = vmatpush1.msra.mxu0 0.0
    %2027 = vmatprep.subr.mxu0 0.0
    %2028 = vmatpush1.msra.mxu0 0.0
    %2029 = vmatprep.subr.mxu0 0.0
    %2030 = vmatpush1.msra.mxu0 0.0
    %2031 = vmatprep.subr.mxu0 0.0
    %2032 = vmatpush1.msra.mxu0 0.0
    %2033 = vmatprep.subr.mxu0 0.0
    %2034 = vmatpush1.msra.mxu0 0.0
    %2035 = vmatprep.subr.mxu0 0.0
    %2036 = vmatpush1.msra.mxu0 0.0
    %2037 = vmatprep.subr.mxu0 0.0
    %2038 = vmatpush1.msra.mxu0 0.0
    %2039 = vmatprep.subr.mxu0 0.0
    %2040 = vmatpush1.msra.mxu0 0.0
    %2041 = vmatprep.mubr.f32.mxu0 0.0
    %2042 = vmatmul.mubr.f32.gmra.mrb[0].mxu0 %v1972
    %v2043 = vpop.f32.mrb[0].mxu0
    %v2044 = vadd.f32 %v1964, %v2043
    %v2045 = vpop.f32.mrb[0].mxu0
    %v2046 = vadd.f32 %v1968, %v2045
    %2047 = vmatprep.mubr.f32.mxu0 0.0
    %2048 = vmatmul.mubr.f32.gmra.mrb[0].mxu0 %v1975
    %v2049 = vpop.f32.mrb[0].mxu0
    %v2050 = vadd.f32 %v1964, %v2049
    %v2051 = vpop.f32.mrb[0].mxu0
    %v2052 = vadd.f32 %v1968, %v2051
    %2053 = vdwg.mxu0
    %s2054 = scalar_lea.vmem %s11, 64
    %v2055 = vld [vmem:[%s2054] sm:$0xff]
    %v2056 = vld [vmem:[%s2054 + $0x8] sm:$0xff]
    %v2057 = vld [vmem:[%s2054 + $0x10] sm:$0xff]
    %v2058 = vld [vmem:[%s2054 + $0x18] sm:$0xff]
    %v2059 = vld [vmem:[%s2054 + $0x20] sm:$0xff]
    %v2060 = vld [vmem:[%s2054 + $0x28] sm:$0xff]
    %v2061 = vld [vmem:[%s2054 + $0x30] sm:$0xff]
    %v2062 = vld [vmem:[%s2054 + $0x38] sm:$0xff]
    %2065 = vrot.lane.b32.xlu0 %v2044, 64
    %v2066 = vpop.permute.xlu0 %2065
    %2067 = vrot.lane.b32.xlu0 %v2050, 64
    %v2068 = vpop.permute.xlu0 %2067
    %v2069 = vsel %vm447, %v2044, 0
    %v2071 = vsel %vm447, %v2050, 0
    %v2073 = vsel %vm447, %v2066, 0
    %v2075 = vsel %vm447, %v2068, 0
    %2077 = vmatprep.subr.mxu0 0.0
    %2078 = vmatpush1.xpose.msra.mxu0 %v2073
    %2079 = vmatprep.subr.mxu0 0.0
    %2080 = vmatpush1.xpose.msra.mxu0 %v2075
    %2081 = vmatprep.subr.mxu0 0.0
    %2082 = vmatpush1.xpose.msra.mxu0 0.0
    %2083 = vmatprep.subr.mxu0 0.0
    %2084 = vmatpush1.xpose.msra.mxu0 0.0
    %2085 = vmatprep.subr.mxu0 0.0
    %2086 = vmatpush1.xpose.msra.mxu0 0.0
    %2087 = vmatprep.subr.mxu0 0.0
    %2088 = vmatpush1.xpose.msra.mxu0 0.0
    %2089 = vmatprep.subr.mxu0 0.0
    %2090 = vmatpush1.xpose.msra.mxu0 0.0
    %2091 = vmatprep.subr.mxu0 0.0
    %2092 = vmatpush1.xpose.msra.mxu0 0.0
    %2093 = vmatprep.subr.mxu0 0.0
    %2094 = vmatpush1.xpose.msra.mxu0 0.0
    %2095 = vmatprep.subr.mxu0 0.0
    %2096 = vmatpush1.xpose.msra.mxu0 0.0
    %2097 = vmatprep.subr.mxu0 0.0
    %2098 = vmatpush1.xpose.msra.mxu0 0.0
    %2099 = vmatprep.subr.mxu0 0.0
    %2100 = vmatpush1.xpose.msra.mxu0 0.0
    %2101 = vmatprep.subr.mxu0 0.0
    %2102 = vmatpush1.xpose.msra.mxu0 0.0
    %2103 = vmatprep.subr.mxu0 0.0
    %2104 = vmatpush1.xpose.msra.mxu0 0.0
    %2105 = vmatprep.subr.mxu0 0.0
    %2106 = vmatpush1.xpose.msra.mxu0 0.0
    %2107 = vmatprep.subr.mxu0 0.0
    %2108 = vmatpush1.xpose.msra.mxu0 0.0
    %2109 = vmatprep.subr.mxu0 0.0
    %2110 = vmatpush1.xpose.msra.mxu0 0.0
    %2111 = vmatprep.subr.mxu0 0.0
    %2112 = vmatpush1.xpose.msra.mxu0 0.0
    %2113 = vmatprep.subr.mxu0 0.0
    %2114 = vmatpush1.xpose.msra.mxu0 0.0
    %2115 = vmatprep.subr.mxu0 0.0
    %2116 = vmatpush1.xpose.msra.mxu0 0.0
    %2117 = vmatprep.subr.mxu0 0.0
    %2118 = vmatpush1.xpose.msra.mxu0 0.0
    %2119 = vmatprep.subr.mxu0 0.0
    %2120 = vmatpush1.xpose.msra.mxu0 0.0
    %2121 = vmatprep.subr.mxu0 0.0
    %2122 = vmatpush1.xpose.msra.mxu0 0.0
    %2123 = vmatprep.subr.mxu0 0.0
    %2124 = vmatpush1.xpose.msra.mxu0 0.0
    %2125 = vmatprep.subr.mxu0 0.0
    %2126 = vmatpush1.xpose.msra.mxu0 0.0
    %2127 = vmatprep.subr.mxu0 0.0
    %2128 = vmatpush1.xpose.msra.mxu0 0.0
    %2129 = vmatprep.subr.mxu0 0.0
    %2130 = vmatpush1.xpose.msra.mxu0 0.0
    %2131 = vmatprep.subr.mxu0 0.0
    %2132 = vmatpush1.xpose.msra.mxu0 0.0
    %2133 = vmatprep.subr.mxu0 0.0
    %2134 = vmatpush1.xpose.msra.mxu0 0.0
    %2135 = vmatprep.subr.mxu0 0.0
    %2136 = vmatpush1.xpose.msra.mxu0 0.0
    %2137 = vmatprep.subr.mxu0 0.0
    %2138 = vmatpush1.xpose.msra.mxu0 0.0
    %2139 = vmatprep.subr.mxu0 0.0
    %2140 = vmatpush1.xpose.msra.mxu0 0.0
    %2141 = vmatprep.mubr.f32.mxu0 0.0
    %2142 = vmatmul.mubr.f32.gmra.mrb[0].mxu0 %v2069
    %v2143 = vpop.f32.mrb[0].mxu0
    %v2144 = vadd.f32 0.0, %v2143
    %v2145 = vpop.f32.mrb[0].mxu0
    %2146 = vmatprep.mubr.f32.mxu0 0.0
    %2147 = vmatmul.mubr.f32.gmra.mrb[0].mxu0 %v2071
    %v2148 = vpop.f32.mrb[0].mxu0
    %v2149 = vadd.f32 0.0, %v2148
    %v2150 = vpop.f32.mrb[0].mxu0
    %2151 = vdwg.mxu0
    %v2152 = vmul.f32 %v2144, 0.25
    %v2153 = vmul.f32 %v2149, 0.25
    %v2154 = vadd.f32 %v2152, %v274
    %v2155 = vadd.f32 %v2153, %v275
    %v2156 = vsel %vm535, %v2154, -inf
    %2157 = vmax.xlane.f32.xlu0 %v2156
    %v2158 = vpop.xlane.xlu0 %2157
    %v2159 = vsel %vm539, %v2155, -inf
    %2160 = vmax.xlane.f32.xlu0 %v2159
    %v2161 = vpop.xlane.xlu0 %2160
    %v2162 = vsub.f32 %v2154, %v2158
    %v2163 = vsub.f32 %v2155, %v2161
    %v2164 = vmul.f32 %v2162, 1.442695
    %v2165 = vpow.pop %v2164
    %v2166 = vmul.f32 %v2163, 1.442695
    %v2167 = vpow.pop %v2166
    %v2168 = vsel %vm535, %v2165, 0.0
    %2169 = vadd.xlane.f32.xlu0 %v2168
    %v2170 = vpop.xlane.xlu0 %2169
    %v2171 = vsel %vm539, %v2167, 0.0
    %2172 = vadd.xlane.f32.xlu0 %v2171
    %v2173 = vpop.xlane.xlu0 %2172
    %v2174 = vrcp.pop %v2170
    %v2175 = vmul.f32 %v2165, %v2174
    %v2176 = vrcp.pop %v2173
    %v2177 = vmul.f32 %v2167, %v2176
    %v2179 = vsel %vm535, %v2175, 0
    %v2182 = vsel %vm535, %v2177, 0
    %v2185 = vsel %vm565, %v2052, 0
    %2187 = vmatprep.subr.mxu0 0.0
    %2188 = vmatpush1.msra.mxu0 %v2046
    %2189 = vmatprep.subr.mxu0 0.0
    %2190 = vmatpush1.msra.mxu0 %v2185
    %2191 = vmatprep.subr.mxu0 0.0
    %2192 = vmatpush1.msra.mxu0 0.0
    %2193 = vmatprep.subr.mxu0 0.0
    %2194 = vmatpush1.msra.mxu0 0.0
    %2195 = vmatprep.subr.mxu0 0.0
    %2196 = vmatpush1.msra.mxu0 0.0
    %2197 = vmatprep.subr.mxu0 0.0
    %2198 = vmatpush1.msra.mxu0 0.0
    %2199 = vmatprep.subr.mxu0 0.0
    %2200 = vmatpush1.msra.mxu0 0.0
    %2201 = vmatprep.subr.mxu0 0.0
    %2202 = vmatpush1.msra.mxu0 0.0
    %2203 = vmatprep.subr.mxu0 0.0
    %2204 = vmatpush1.msra.mxu0 0.0
    %2205 = vmatprep.subr.mxu0 0.0
    %2206 = vmatpush1.msra.mxu0 0.0
    %2207 = vmatprep.subr.mxu0 0.0
    %2208 = vmatpush1.msra.mxu0 0.0
    %2209 = vmatprep.subr.mxu0 0.0
    %2210 = vmatpush1.msra.mxu0 0.0
    %2211 = vmatprep.subr.mxu0 0.0
    %2212 = vmatpush1.msra.mxu0 0.0
    %2213 = vmatprep.subr.mxu0 0.0
    %2214 = vmatpush1.msra.mxu0 0.0
    %2215 = vmatprep.subr.mxu0 0.0
    %2216 = vmatpush1.msra.mxu0 0.0
    %2217 = vmatprep.subr.mxu0 0.0
    %2218 = vmatpush1.msra.mxu0 0.0
    %2219 = vmatprep.subr.mxu0 0.0
    %2220 = vmatpush1.msra.mxu0 0.0
    %2221 = vmatprep.subr.mxu0 0.0
    %2222 = vmatpush1.msra.mxu0 0.0
    %2223 = vmatprep.subr.mxu0 0.0
    %2224 = vmatpush1.msra.mxu0 0.0
    %2225 = vmatprep.subr.mxu0 0.0
    %2226 = vmatpush1.msra.mxu0 0.0
    %2227 = vmatprep.subr.mxu0 0.0
    %2228 = vmatpush1.msra.mxu0 0.0
    %2229 = vmatprep.subr.mxu0 0.0
    %2230 = vmatpush1.msra.mxu0 0.0
    %2231 = vmatprep.subr.mxu0 0.0
    %2232 = vmatpush1.msra.mxu0 0.0
    %2233 = vmatprep.subr.mxu0 0.0
    %2234 = vmatpush1.msra.mxu0 0.0
    %2235 = vmatprep.subr.mxu0 0.0
    %2236 = vmatpush1.msra.mxu0 0.0
    %2237 = vmatprep.subr.mxu0 0.0
    %2238 = vmatpush1.msra.mxu0 0.0
    %2239 = vmatprep.subr.mxu0 0.0
    %2240 = vmatpush1.msra.mxu0 0.0
    %2241 = vmatprep.subr.mxu0 0.0
    %2242 = vmatpush1.msra.mxu0 0.0
    %2243 = vmatprep.subr.mxu0 0.0
    %2244 = vmatpush1.msra.mxu0 0.0
    %2245 = vmatprep.subr.mxu0 0.0
    %2246 = vmatpush1.msra.mxu0 0.0
    %2247 = vmatprep.subr.mxu0 0.0
    %2248 = vmatpush1.msra.mxu0 0.0
    %2249 = vmatprep.subr.mxu0 0.0
    %2250 = vmatpush1.msra.mxu0 0.0
    %2251 = vmatprep.mubr.f32.mxu0 0.0
    %2252 = vmatmul.mubr.f32.gmra.mrb[0].mxu0 %v2179
    %v2253 = vpop.f32.mrb[0].mxu0
    %v2254 = vadd.f32 0.0, %v2253
    %v2255 = vpop.f32.mrb[0].mxu0
    %2256 = vmatprep.mubr.f32.mxu0 0.0
    %2257 = vmatmul.mubr.f32.gmra.mrb[0].mxu0 %v2182
    %v2258 = vpop.f32.mrb[0].mxu0
    %v2259 = vadd.f32 0.0, %v2258
    %v2260 = vpop.f32.mrb[0].mxu0
    %2261 = vdwg.mxu0
    %2262 = vrot.lane.b32.xlu0 %v2044, 112
    %v2263 = vpop.permute.xlu0 %2262
    %2264 = vrot.lane.b32.xlu0 %v2050, 112
    %v2265 = vpop.permute.xlu0 %2264
    %2266 = vrot.lane.b32.xlu0 %v2044, 48
    %v2267 = vpop.permute.xlu0 %2266
    %2268 = vrot.lane.b32.xlu0 %v2050, 48
    %v2269 = vpop.permute.xlu0 %2268
    %v2270 = vsel %vm447, %v2263, 0
    %v2272 = vsel %vm447, %v2265, 0
    %v2274 = vsel %vm447, %v2267, 0
    %v2276 = vsel %vm447, %v2269, 0
    %2278 = vmatprep.subr.mxu0 0.0
    %2279 = vmatpush1.xpose.msra.mxu0 %v2274
    %2280 = vmatprep.subr.mxu0 0.0
    %2281 = vmatpush1.xpose.msra.mxu0 %v2276
    %2282 = vmatprep.subr.mxu0 0.0
    %2283 = vmatpush1.xpose.msra.mxu0 0.0
    %2284 = vmatprep.subr.mxu0 0.0
    %2285 = vmatpush1.xpose.msra.mxu0 0.0
    %2286 = vmatprep.subr.mxu0 0.0
    %2287 = vmatpush1.xpose.msra.mxu0 0.0
    %2288 = vmatprep.subr.mxu0 0.0
    %2289 = vmatpush1.xpose.msra.mxu0 0.0
    %2290 = vmatprep.subr.mxu0 0.0
    %2291 = vmatpush1.xpose.msra.mxu0 0.0
    %2292 = vmatprep.subr.mxu0 0.0
    %2293 = vmatpush1.xpose.msra.mxu0 0.0
    %2294 = vmatprep.subr.mxu0 0.0
    %2295 = vmatpush1.xpose.msra.mxu0 0.0
    %2296 = vmatprep.subr.mxu0 0.0
    %2297 = vmatpush1.xpose.msra.mxu0 0.0
    %2298 = vmatprep.subr.mxu0 0.0
    %2299 = vmatpush1.xpose.msra.mxu0 0.0
    %2300 = vmatprep.subr.mxu0 0.0
    %2301 = vmatpush1.xpose.msra.mxu0 0.0
    %2302 = vmatprep.subr.mxu0 0.0
    %2303 = vmatpush1.xpose.msra.mxu0 0.0
    %2304 = vmatprep.subr.mxu0 0.0
    %2305 = vmatpush1.xpose.msra.mxu0 0.0
    %2306 = vmatprep.subr.mxu0 0.0
    %2307 = vmatpush1.xpose.msra.mxu0 0.0
    %2308 = vmatprep.subr.mxu0 0.0
    %2309 = vmatpush1.xpose.msra.mxu0 0.0
    %2310 = vmatprep.subr.mxu0 0.0
    %2311 = vmatpush1.xpose.msra.mxu0 0.0
    %2312 = vmatprep.subr.mxu0 0.0
    %2313 = vmatpush1.xpose.msra.mxu0 0.0
    %2314 = vmatprep.subr.mxu0 0.0
    %2315 = vmatpush1.xpose.msra.mxu0 0.0
    %2316 = vmatprep.subr.mxu0 0.0
    %2317 = vmatpush1.xpose.msra.mxu0 0.0
    %2318 = vmatprep.subr.mxu0 0.0
    %2319 = vmatpush1.xpose.msra.mxu0 0.0
    %2320 = vmatprep.subr.mxu0 0.0
    %2321 = vmatpush1.xpose.msra.mxu0 0.0
    %2322 = vmatprep.subr.mxu0 0.0
    %2323 = vmatpush1.xpose.msra.mxu0 0.0
    %2324 = vmatprep.subr.mxu0 0.0
    %2325 = vmatpush1.xpose.msra.mxu0 0.0
    %2326 = vmatprep.subr.mxu0 0.0
    %2327 = vmatpush1.xpose.msra.mxu0 0.0
    %2328 = vmatprep.subr.mxu0 0.0
    %2329 = vmatpush1.xpose.msra.mxu0 0.0
    %2330 = vmatprep.subr.mxu0 0.0
    %2331 = vmatpush1.xpose.msra.mxu0 0.0
    %2332 = vmatprep.subr.mxu0 0.0
    %2333 = vmatpush1.xpose.msra.mxu0 0.0
    %2334 = vmatprep.subr.mxu0 0.0
    %2335 = vmatpush1.xpose.msra.mxu0 0.0
    %2336 = vmatprep.subr.mxu0 0.0
    %2337 = vmatpush1.xpose.msra.mxu0 0.0
    %2338 = vmatprep.subr.mxu0 0.0
    %2339 = vmatpush1.xpose.msra.mxu0 0.0
    %2340 = vmatprep.subr.mxu0 0.0
    %2341 = vmatpush1.xpose.msra.mxu0 0.0
    %2342 = vmatprep.mubr.f32.mxu0 0.0
    %2343 = vmatmul.mubr.f32.gmra.mrb[0].mxu0 %v2270
    %v2344 = vpop.f32.mrb[0].mxu0
    %v2345 = vadd.f32 0.0, %v2344
    %v2346 = vpop.f32.mrb[0].mxu0
    %2347 = vmatprep.mubr.f32.mxu0 0.0
    %2348 = vmatmul.mubr.f32.gmra.mrb[0].mxu0 %v2272
    %v2349 = vpop.f32.mrb[0].mxu0
    %v2350 = vadd.f32 0.0, %v2349
    %v2351 = vpop.f32.mrb[0].mxu0
    %2352 = vdwg.mxu0
    %v2353 = vmul.f32 %v2345, 0.25
    %v2354 = vmul.f32 %v2350, 0.25
    %v2355 = vadd.f32 %v2353, %v274
    %v2356 = vadd.f32 %v2354, %v275
    %v2357 = vsel %vm535, %v2355, -inf
    %2358 = vmax.xlane.f32.xlu0 %v2357
    %v2359 = vpop.xlane.xlu0 %2358
    %v2360 = vsel %vm539, %v2356, -inf
    %2361 = vmax.xlane.f32.xlu0 %v2360
    %v2362 = vpop.xlane.xlu0 %2361
    %v2363 = vsub.f32 %v2355, %v2359
    %v2364 = vsub.f32 %v2356, %v2362
    %v2365 = vmul.f32 %v2363, 1.442695
    %v2366 = vpow.pop %v2365
    %v2367 = vmul.f32 %v2364, 1.442695
    %v2368 = vpow.pop %v2367
    %v2369 = vsel %vm535, %v2366, 0.0
    %2370 = vadd.xlane.f32.xlu0 %v2369
    %v2371 = vpop.xlane.xlu0 %2370
    %v2372 = vsel %vm539, %v2368, 0.0
    %2373 = vadd.xlane.f32.xlu0 %v2372
    %v2374 = vpop.xlane.xlu0 %2373
    %v2375 = vrcp.pop %v2371
    %v2376 = vmul.f32 %v2366, %v2375
    %v2377 = vrcp.pop %v2374
    %v2378 = vmul.f32 %v2368, %v2377
    %2380 = vrot.lane.b32.xlu0 %v2046, 112
    %v2381 = vpop.permute.xlu0 %2380
    %2382 = vrot.lane.b32.xlu0 %v2052, 112
    %v2383 = vpop.permute.xlu0 %2382
    %v2386 = vsel %vm535, %v2376, 0
    %v2389 = vsel %vm535, %v2378, 0
    %v2391 = vsel %vm565, %v2383, 0
    %2393 = vmatprep.subr.mxu0 0.0
    %2394 = vmatpush1.msra.mxu0 %v2381
    %2395 = vmatprep.subr.mxu0 0.0
    %2396 = vmatpush1.msra.mxu0 %v2391
    %2397 = vmatprep.subr.mxu0 0.0
    %2398 = vmatpush1.msra.mxu0 0.0
    %2399 = vmatprep.subr.mxu0 0.0
    %2400 = vmatpush1.msra.mxu0 0.0
    %2401 = vmatprep.subr.mxu0 0.0
    %2402 = vmatpush1.msra.mxu0 0.0
    %2403 = vmatprep.subr.mxu0 0.0
    %2404 = vmatpush1.msra.mxu0 0.0
    %2405 = vmatprep.subr.mxu0 0.0
    %2406 = vmatpush1.msra.mxu0 0.0
    %2407 = vmatprep.subr.mxu0 0.0
    %2408 = vmatpush1.msra.mxu0 0.0
    %2409 = vmatprep.subr.mxu0 0.0
    %2410 = vmatpush1.msra.mxu0 0.0
    %2411 = vmatprep.subr.mxu0 0.0
    %2412 = vmatpush1.msra.mxu0 0.0
    %2413 = vmatprep.subr.mxu0 0.0
    %2414 = vmatpush1.msra.mxu0 0.0
    %2415 = vmatprep.subr.mxu0 0.0
    %2416 = vmatpush1.msra.mxu0 0.0
    %2417 = vmatprep.subr.mxu0 0.0
    %2418 = vmatpush1.msra.mxu0 0.0
    %2419 = vmatprep.subr.mxu0 0.0
    %2420 = vmatpush1.msra.mxu0 0.0
    %2421 = vmatprep.subr.mxu0 0.0
    %2422 = vmatpush1.msra.mxu0 0.0
    %2423 = vmatprep.subr.mxu0 0.0
    %2424 = vmatpush1.msra.mxu0 0.0
    %2425 = vmatprep.subr.mxu0 0.0
    %2426 = vmatpush1.msra.mxu0 0.0
    %2427 = vmatprep.subr.mxu0 0.0
    %2428 = vmatpush1.msra.mxu0 0.0
    %2429 = vmatprep.subr.mxu0 0.0
    %2430 = vmatpush1.msra.mxu0 0.0
    %2431 = vmatprep.subr.mxu0 0.0
    %2432 = vmatpush1.msra.mxu0 0.0
    %2433 = vmatprep.subr.mxu0 0.0
    %2434 = vmatpush1.msra.mxu0 0.0
    %2435 = vmatprep.subr.mxu0 0.0
    %2436 = vmatpush1.msra.mxu0 0.0
    %2437 = vmatprep.subr.mxu0 0.0
    %2438 = vmatpush1.msra.mxu0 0.0
    %2439 = vmatprep.subr.mxu0 0.0
    %2440 = vmatpush1.msra.mxu0 0.0
    %2441 = vmatprep.subr.mxu0 0.0
    %2442 = vmatpush1.msra.mxu0 0.0
    %2443 = vmatprep.subr.mxu0 0.0
    %2444 = vmatpush1.msra.mxu0 0.0
    %2445 = vmatprep.subr.mxu0 0.0
    %2446 = vmatpush1.msra.mxu0 0.0
    %2447 = vmatprep.subr.mxu0 0.0
    %2448 = vmatpush1.msra.mxu0 0.0
    %2449 = vmatprep.subr.mxu0 0.0
    %2450 = vmatpush1.msra.mxu0 0.0
    %2451 = vmatprep.subr.mxu0 0.0
    %2452 = vmatpush1.msra.mxu0 0.0
    %2453 = vmatprep.subr.mxu0 0.0
    %2454 = vmatpush1.msra.mxu0 0.0
    %2455 = vmatprep.subr.mxu0 0.0
    %2456 = vmatpush1.msra.mxu0 0.0
    %2457 = vmatprep.mubr.f32.mxu0 0.0
    %2458 = vmatmul.mubr.f32.gmra.mrb[0].mxu0 %v2386
    %v2459 = vpop.f32.mrb[0].mxu0
    %v2460 = vadd.f32 0.0, %v2459
    %v2461 = vpop.f32.mrb[0].mxu0
    %2462 = vmatprep.mubr.f32.mxu0 0.0
    %2463 = vmatmul.mubr.f32.gmra.mrb[0].mxu0 %v2389
    %v2464 = vpop.f32.mrb[0].mxu0
    %v2465 = vadd.f32 0.0, %v2464
    %v2466 = vpop.f32.mrb[0].mxu0
    %2467 = vdwg.mxu0
    %v2469 = vsel %vm447, %v2460, 0
    %v2472 = vsel %vm447, %v2465, 0
    %2474 = vmatprep.subr.mxu0 0.0
    %2475 = vmatpush1.msra.mxu0 %v2057
    %2476 = vmatprep.subr.mxu0 0.0
    %2477 = vmatpush1.msra.mxu0 %v2058
    %2478 = vmatprep.subr.mxu0 0.0
    %2479 = vmatpush1.msra.mxu0 0.0
    %2480 = vmatprep.subr.mxu0 0.0
    %2481 = vmatpush1.msra.mxu0 0.0
    %2482 = vmatprep.subr.mxu0 0.0
    %2483 = vmatpush1.msra.mxu0 0.0
    %2484 = vmatprep.subr.mxu0 0.0
    %2485 = vmatpush1.msra.mxu0 0.0
    %2486 = vmatprep.subr.mxu0 0.0
    %2487 = vmatpush1.msra.mxu0 0.0
    %2488 = vmatprep.subr.mxu0 0.0
    %2489 = vmatpush1.msra.mxu0 0.0
    %2490 = vmatprep.subr.mxu0 0.0
    %2491 = vmatpush1.msra.mxu0 0.0
    %2492 = vmatprep.subr.mxu0 0.0
    %2493 = vmatpush1.msra.mxu0 0.0
    %2494 = vmatprep.subr.mxu0 0.0
    %2495 = vmatpush1.msra.mxu0 0.0
    %2496 = vmatprep.subr.mxu0 0.0
    %2497 = vmatpush1.msra.mxu0 0.0
    %2498 = vmatprep.subr.mxu0 0.0
    %2499 = vmatpush1.msra.mxu0 0.0
    %2500 = vmatprep.subr.mxu0 0.0
    %2501 = vmatpush1.msra.mxu0 0.0
    %2502 = vmatprep.subr.mxu0 0.0
    %2503 = vmatpush1.msra.mxu0 0.0
    %2504 = vmatprep.subr.mxu0 0.0
    %2505 = vmatpush1.msra.mxu0 0.0
    %2506 = vmatprep.subr.mxu0 0.0
    %2507 = vmatpush1.msra.mxu0 0.0
    %2508 = vmatprep.subr.mxu0 0.0
    %2509 = vmatpush1.msra.mxu0 0.0
    %2510 = vmatprep.subr.mxu0 0.0
    %2511 = vmatpush1.msra.mxu0 0.0
    %2512 = vmatprep.subr.mxu0 0.0
    %2513 = vmatpush1.msra.mxu0 0.0
    %2514 = vmatprep.subr.mxu0 0.0
    %2515 = vmatpush1.msra.mxu0 0.0
    %2516 = vmatprep.subr.mxu0 0.0
    %2517 = vmatpush1.msra.mxu0 0.0
    %2518 = vmatprep.subr.mxu0 0.0
    %2519 = vmatpush1.msra.mxu0 0.0
    %2520 = vmatprep.subr.mxu0 0.0
    %2521 = vmatpush1.msra.mxu0 0.0
    %2522 = vmatprep.subr.mxu0 0.0
    %2523 = vmatpush1.msra.mxu0 0.0
    %2524 = vmatprep.subr.mxu0 0.0
    %2525 = vmatpush1.msra.mxu0 0.0
    %2526 = vmatprep.subr.mxu0 0.0
    %2527 = vmatpush1.msra.mxu0 0.0
    %2528 = vmatprep.subr.mxu0 0.0
    %2529 = vmatpush1.msra.mxu0 0.0
    %2530 = vmatprep.subr.mxu0 0.0
    %2531 = vmatpush1.msra.mxu0 0.0
    %2532 = vmatprep.subr.mxu0 0.0
    %2533 = vmatpush1.msra.mxu0 0.0
    %2534 = vmatprep.subr.mxu0 0.0
    %2535 = vmatpush1.msra.mxu0 0.0
    %2536 = vmatprep.subr.mxu0 0.0
    %2537 = vmatpush1.msra.mxu0 0.0
    %2538 = vmatprep.mubr.f32.mxu0 0.0
    %2539 = vmatmul.mubr.f32.gmra.mrb[0].mxu0 %v2469
    %v2540 = vpop.f32.mrb[0].mxu0
    %v2541 = vadd.f32 0.0, %v2540
    %v2542 = vpop.f32.mrb[0].mxu0
    %2543 = vmatprep.mubr.f32.mxu0 0.0
    %2544 = vmatmul.mubr.f32.gmra.mrb[0].mxu0 %v2472
    %v2545 = vpop.f32.mrb[0].mxu0
    %v2546 = vadd.f32 0.0, %v2545
    %v2547 = vpop.f32.mrb[0].mxu0
    %2548 = vdwg.mxu0
    %v2550 = vsel %vm447, %v2254, 0
    %v2553 = vsel %vm447, %v2259, 0
    %2555 = vmatprep.subr.mxu0 0.0
    %2556 = vmatpush1.msra.mxu0 %v2055
    %2557 = vmatprep.subr.mxu0 0.0
    %2558 = vmatpush1.msra.mxu0 %v2056
    %2559 = vmatprep.subr.mxu0 0.0
    %2560 = vmatpush1.msra.mxu0 0.0
    %2561 = vmatprep.subr.mxu0 0.0
    %2562 = vmatpush1.msra.mxu0 0.0
    %2563 = vmatprep.subr.mxu0 0.0
    %2564 = vmatpush1.msra.mxu0 0.0
    %2565 = vmatprep.subr.mxu0 0.0
    %2566 = vmatpush1.msra.mxu0 0.0
    %2567 = vmatprep.subr.mxu0 0.0
    %2568 = vmatpush1.msra.mxu0 0.0
    %2569 = vmatprep.subr.mxu0 0.0
    %2570 = vmatpush1.msra.mxu0 0.0
    %2571 = vmatprep.subr.mxu0 0.0
    %2572 = vmatpush1.msra.mxu0 0.0
    %2573 = vmatprep.subr.mxu0 0.0
    %2574 = vmatpush1.msra.mxu0 0.0
    %2575 = vmatprep.subr.mxu0 0.0
    %2576 = vmatpush1.msra.mxu0 0.0
    %2577 = vmatprep.subr.mxu0 0.0
    %2578 = vmatpush1.msra.mxu0 0.0
    %2579 = vmatprep.subr.mxu0 0.0
    %2580 = vmatpush1.msra.mxu0 0.0
    %2581 = vmatprep.subr.mxu0 0.0
    %2582 = vmatpush1.msra.mxu0 0.0
    %2583 = vmatprep.subr.mxu0 0.0
    %2584 = vmatpush1.msra.mxu0 0.0
    %2585 = vmatprep.subr.mxu0 0.0
    %2586 = vmatpush1.msra.mxu0 0.0
    %2587 = vmatprep.subr.mxu0 0.0
    %2588 = vmatpush1.msra.mxu0 0.0
    %2589 = vmatprep.subr.mxu0 0.0
    %2590 = vmatpush1.msra.mxu0 0.0
    %2591 = vmatprep.subr.mxu0 0.0
    %2592 = vmatpush1.msra.mxu0 0.0
    %2593 = vmatprep.subr.mxu0 0.0
    %2594 = vmatpush1.msra.mxu0 0.0
    %2595 = vmatprep.subr.mxu0 0.0
    %2596 = vmatpush1.msra.mxu0 0.0
    %2597 = vmatprep.subr.mxu0 0.0
    %2598 = vmatpush1.msra.mxu0 0.0
    %2599 = vmatprep.subr.mxu0 0.0
    %2600 = vmatpush1.msra.mxu0 0.0
    %2601 = vmatprep.subr.mxu0 0.0
    %2602 = vmatpush1.msra.mxu0 0.0
    %2603 = vmatprep.subr.mxu0 0.0
    %2604 = vmatpush1.msra.mxu0 0.0
    %2605 = vmatprep.subr.mxu0 0.0
    %2606 = vmatpush1.msra.mxu0 0.0
    %2607 = vmatprep.subr.mxu0 0.0
    %2608 = vmatpush1.msra.mxu0 0.0
    %2609 = vmatprep.subr.mxu0 0.0
    %2610 = vmatpush1.msra.mxu0 0.0
    %2611 = vmatprep.subr.mxu0 0.0
    %2612 = vmatpush1.msra.mxu0 0.0
    %2613 = vmatprep.subr.mxu0 0.0
    %2614 = vmatpush1.msra.mxu0 0.0
    %2615 = vmatprep.subr.mxu0 0.0
    %2616 = vmatpush1.msra.mxu0 0.0
    %2617 = vmatprep.subr.mxu0 0.0
    %2618 = vmatpush1.msra.mxu0 0.0
    %2619 = vmatprep.mubr.f32.mxu0 0.0
    %2620 = vmatmul.mubr.f32.gmra.mrb[0].mxu0 %v2550
    %v2621 = vpop.f32.mrb[0].mxu0
    %v2622 = vadd.f32 %v2541, %v2621
    %v2623 = vpop.f32.mrb[0].mxu0
    %2624 = vmatprep.mubr.f32.mxu0 0.0
    %2625 = vmatmul.mubr.f32.gmra.mrb[0].mxu0 %v2553
    %v2626 = vpop.f32.mrb[0].mxu0
    %v2627 = vadd.f32 %v2546, %v2626
    %v2628 = vpop.f32.mrb[0].mxu0
    %2629 = vdwg.mxu0
    %2630 = vrot.lane.b32.xlu0 %v2044, 96
    %v2631 = vpop.permute.xlu0 %2630
    %2632 = vrot.lane.b32.xlu0 %v2050, 96
    %v2633 = vpop.permute.xlu0 %2632
    %2634 = vrot.lane.b32.xlu0 %v2044, 32
    %v2635 = vpop.permute.xlu0 %2634
    %2636 = vrot.lane.b32.xlu0 %v2050, 32
    %v2637 = vpop.permute.xlu0 %2636
    %v2638 = vsel %vm447, %v2631, 0
    %v2640 = vsel %vm447, %v2633, 0
    %v2642 = vsel %vm447, %v2635, 0
    %v2644 = vsel %vm447, %v2637, 0
    %2646 = vmatprep.subr.mxu0 0.0
    %2647 = vmatpush1.xpose.msra.mxu0 %v2642
    %2648 = vmatprep.subr.mxu0 0.0
    %2649 = vmatpush1.xpose.msra.mxu0 %v2644
    %2650 = vmatprep.subr.mxu0 0.0
    %2651 = vmatpush1.xpose.msra.mxu0 0.0
    %2652 = vmatprep.subr.mxu0 0.0
    %2653 = vmatpush1.xpose.msra.mxu0 0.0
    %2654 = vmatprep.subr.mxu0 0.0
    %2655 = vmatpush1.xpose.msra.mxu0 0.0
    %2656 = vmatprep.subr.mxu0 0.0
    %2657 = vmatpush1.xpose.msra.mxu0 0.0
    %2658 = vmatprep.subr.mxu0 0.0
    %2659 = vmatpush1.xpose.msra.mxu0 0.0
    %2660 = vmatprep.subr.mxu0 0.0
    %2661 = vmatpush1.xpose.msra.mxu0 0.0
    %2662 = vmatprep.subr.mxu0 0.0
    %2663 = vmatpush1.xpose.msra.mxu0 0.0
    %2664 = vmatprep.subr.mxu0 0.0
    %2665 = vmatpush1.xpose.msra.mxu0 0.0
    %2666 = vmatprep.subr.mxu0 0.0
    %2667 = vmatpush1.xpose.msra.mxu0 0.0
    %2668 = vmatprep.subr.mxu0 0.0
    %2669 = vmatpush1.xpose.msra.mxu0 0.0
    %2670 = vmatprep.subr.mxu0 0.0
    %2671 = vmatpush1.xpose.msra.mxu0 0.0
    %2672 = vmatprep.subr.mxu0 0.0
    %2673 = vmatpush1.xpose.msra.mxu0 0.0
    %2674 = vmatprep.subr.mxu0 0.0
    %2675 = vmatpush1.xpose.msra.mxu0 0.0
    %2676 = vmatprep.subr.mxu0 0.0
    %2677 = vmatpush1.xpose.msra.mxu0 0.0
    %2678 = vmatprep.subr.mxu0 0.0
    %2679 = vmatpush1.xpose.msra.mxu0 0.0
    %2680 = vmatprep.subr.mxu0 0.0
    %2681 = vmatpush1.xpose.msra.mxu0 0.0
    %2682 = vmatprep.subr.mxu0 0.0
    %2683 = vmatpush1.xpose.msra.mxu0 0.0
    %2684 = vmatprep.subr.mxu0 0.0
    %2685 = vmatpush1.xpose.msra.mxu0 0.0
    %2686 = vmatprep.subr.mxu0 0.0
    %2687 = vmatpush1.xpose.msra.mxu0 0.0
    %2688 = vmatprep.subr.mxu0 0.0
    %2689 = vmatpush1.xpose.msra.mxu0 0.0
    %2690 = vmatprep.subr.mxu0 0.0
    %2691 = vmatpush1.xpose.msra.mxu0 0.0
    %2692 = vmatprep.subr.mxu0 0.0
    %2693 = vmatpush1.xpose.msra.mxu0 0.0
    %2694 = vmatprep.subr.mxu0 0.0
    %2695 = vmatpush1.xpose.msra.mxu0 0.0
    %2696 = vmatprep.subr.mxu0 0.0
    %2697 = vmatpush1.xpose.msra.mxu0 0.0
    %2698 = vmatprep.subr.mxu0 0.0
    %2699 = vmatpush1.xpose.msra.mxu0 0.0
    %2700 = vmatprep.subr.mxu0 0.0
    %2701 = vmatpush1.xpose.msra.mxu0 0.0
    %2702 = vmatprep.subr.mxu0 0.0
    %2703 = vmatpush1.xpose.msra.mxu0 0.0
    %2704 = vmatprep.subr.mxu0 0.0
    %2705 = vmatpush1.xpose.msra.mxu0 0.0
    %2706 = vmatprep.subr.mxu0 0.0
    %2707 = vmatpush1.xpose.msra.mxu0 0.0
    %2708 = vmatprep.subr.mxu0 0.0
    %2709 = vmatpush1.xpose.msra.mxu0 0.0
    %2710 = vmatprep.mubr.f32.mxu0 0.0
    %2711 = vmatmul.mubr.f32.gmra.mrb[0].mxu0 %v2638
    %v2712 = vpop.f32.mrb[0].mxu0
    %v2713 = vadd.f32 0.0, %v2712
    %v2714 = vpop.f32.mrb[0].mxu0
    %2715 = vmatprep.mubr.f32.mxu0 0.0
    %2716 = vmatmul.mubr.f32.gmra.mrb[0].mxu0 %v2640
    %v2717 = vpop.f32.mrb[0].mxu0
    %v2718 = vadd.f32 0.0, %v2717
    %v2719 = vpop.f32.mrb[0].mxu0
    %2720 = vdwg.mxu0
    %v2721 = vmul.f32 %v2713, 0.25
    %v2722 = vmul.f32 %v2718, 0.25
    %v2723 = vadd.f32 %v2721, %v274
    %v2724 = vadd.f32 %v2722, %v275
    %v2725 = vsel %vm535, %v2723, -inf
    %2726 = vmax.xlane.f32.xlu0 %v2725
    %v2727 = vpop.xlane.xlu0 %2726
    %v2728 = vsel %vm539, %v2724, -inf
    %2729 = vmax.xlane.f32.xlu0 %v2728
    %v2730 = vpop.xlane.xlu0 %2729
    %v2731 = vsub.f32 %v2723, %v2727
    %v2732 = vsub.f32 %v2724, %v2730
    %v2733 = vmul.f32 %v2731, 1.442695
    %v2734 = vpow.pop %v2733
    %v2735 = vmul.f32 %v2732, 1.442695
    %v2736 = vpow.pop %v2735
    %v2737 = vsel %vm535, %v2734, 0.0
    %2738 = vadd.xlane.f32.xlu0 %v2737
    %v2739 = vpop.xlane.xlu0 %2738
    %v2740 = vsel %vm539, %v2736, 0.0
    %2741 = vadd.xlane.f32.xlu0 %v2740
    %v2742 = vpop.xlane.xlu0 %2741
    %v2743 = vrcp.pop %v2739
    %v2744 = vmul.f32 %v2734, %v2743
    %v2745 = vrcp.pop %v2742
    %v2746 = vmul.f32 %v2736, %v2745
    %2747 = vrot.lane.b32.xlu0 %v2046, 96
    %v2748 = vpop.permute.xlu0 %2747
    %2749 = vrot.lane.b32.xlu0 %v2052, 96
    %v2750 = vpop.permute.xlu0 %2749
    %v2753 = vsel %vm535, %v2744, 0
    %v2756 = vsel %vm535, %v2746, 0
    %v2758 = vsel %vm565, %v2750, 0
    %2760 = vmatprep.subr.mxu0 0.0
    %2761 = vmatpush1.msra.mxu0 %v2748
    %2762 = vmatprep.subr.mxu0 0.0
    %2763 = vmatpush1.msra.mxu0 %v2758
    %2764 = vmatprep.subr.mxu0 0.0
    %2765 = vmatpush1.msra.mxu0 0.0
    %2766 = vmatprep.subr.mxu0 0.0
    %2767 = vmatpush1.msra.mxu0 0.0
    %2768 = vmatprep.subr.mxu0 0.0
    %2769 = vmatpush1.msra.mxu0 0.0
    %2770 = vmatprep.subr.mxu0 0.0
    %2771 = vmatpush1.msra.mxu0 0.0
    %2772 = vmatprep.subr.mxu0 0.0
    %2773 = vmatpush1.msra.mxu0 0.0
    %2774 = vmatprep.subr.mxu0 0.0
    %2775 = vmatpush1.msra.mxu0 0.0
    %2776 = vmatprep.subr.mxu0 0.0
    %2777 = vmatpush1.msra.mxu0 0.0
    %2778 = vmatprep.subr.mxu0 0.0
    %2779 = vmatpush1.msra.mxu0 0.0
    %2780 = vmatprep.subr.mxu0 0.0
    %2781 = vmatpush1.msra.mxu0 0.0
    %2782 = vmatprep.subr.mxu0 0.0
    %2783 = vmatpush1.msra.mxu0 0.0
    %2784 = vmatprep.subr.mxu0 0.0
    %2785 = vmatpush1.msra.mxu0 0.0
    %2786 = vmatprep.subr.mxu0 0.0
    %2787 = vmatpush1.msra.mxu0 0.0
    %2788 = vmatprep.subr.mxu0 0.0
    %2789 = vmatpush1.msra.mxu0 0.0
    %2790 = vmatprep.subr.mxu0 0.0
    %2791 = vmatpush1.msra.mxu0 0.0
    %2792 = vmatprep.subr.mxu0 0.0
    %2793 = vmatpush1.msra.mxu0 0.0
    %2794 = vmatprep.subr.mxu0 0.0
    %2795 = vmatpush1.msra.mxu0 0.0
    %2796 = vmatprep.subr.mxu0 0.0
    %2797 = vmatpush1.msra.mxu0 0.0
    %2798 = vmatprep.subr.mxu0 0.0
    %2799 = vmatpush1.msra.mxu0 0.0
    %2800 = vmatprep.subr.mxu0 0.0
    %2801 = vmatpush1.msra.mxu0 0.0
    %2802 = vmatprep.subr.mxu0 0.0
    %2803 = vmatpush1.msra.mxu0 0.0
    %2804 = vmatprep.subr.mxu0 0.0
    %2805 = vmatpush1.msra.mxu0 0.0
    %2806 = vmatprep.subr.mxu0 0.0
    %2807 = vmatpush1.msra.mxu0 0.0
    %2808 = vmatprep.subr.mxu0 0.0
    %2809 = vmatpush1.msra.mxu0 0.0
    %2810 = vmatprep.subr.mxu0 0.0
    %2811 = vmatpush1.msra.mxu0 0.0
    %2812 = vmatprep.subr.mxu0 0.0
    %2813 = vmatpush1.msra.mxu0 0.0
    %2814 = vmatprep.subr.mxu0 0.0
    %2815 = vmatpush1.msra.mxu0 0.0
    %2816 = vmatprep.subr.mxu0 0.0
    %2817 = vmatpush1.msra.mxu0 0.0
    %2818 = vmatprep.subr.mxu0 0.0
    %2819 = vmatpush1.msra.mxu0 0.0
    %2820 = vmatprep.subr.mxu0 0.0
    %2821 = vmatpush1.msra.mxu0 0.0
    %2822 = vmatprep.subr.mxu0 0.0
    %2823 = vmatpush1.msra.mxu0 0.0
    %2824 = vmatprep.mubr.f32.mxu0 0.0
    %2825 = vmatmul.mubr.f32.gmra.mrb[0].mxu0 %v2753
    %v2826 = vpop.f32.mrb[0].mxu0
    %v2827 = vadd.f32 0.0, %v2826
    %v2828 = vpop.f32.mrb[0].mxu0
    %2829 = vmatprep.mubr.f32.mxu0 0.0
    %2830 = vmatmul.mubr.f32.gmra.mrb[0].mxu0 %v2756
    %v2831 = vpop.f32.mrb[0].mxu0
    %v2832 = vadd.f32 0.0, %v2831
    %v2833 = vpop.f32.mrb[0].mxu0
    %2834 = vdwg.mxu0
    %v2836 = vsel %vm447, %v2827, 0
    %v2839 = vsel %vm447, %v2832, 0
    %2841 = vmatprep.subr.mxu0 0.0
    %2842 = vmatpush1.msra.mxu0 %v2059
    %2843 = vmatprep.subr.mxu0 0.0
    %2844 = vmatpush1.msra.mxu0 %v2060
    %2845 = vmatprep.subr.mxu0 0.0
    %2846 = vmatpush1.msra.mxu0 0.0
    %2847 = vmatprep.subr.mxu0 0.0
    %2848 = vmatpush1.msra.mxu0 0.0
    %2849 = vmatprep.subr.mxu0 0.0
    %2850 = vmatpush1.msra.mxu0 0.0
    %2851 = vmatprep.subr.mxu0 0.0
    %2852 = vmatpush1.msra.mxu0 0.0
    %2853 = vmatprep.subr.mxu0 0.0
    %2854 = vmatpush1.msra.mxu0 0.0
    %2855 = vmatprep.subr.mxu0 0.0
    %2856 = vmatpush1.msra.mxu0 0.0
    %2857 = vmatprep.subr.mxu0 0.0
    %2858 = vmatpush1.msra.mxu0 0.0
    %2859 = vmatprep.subr.mxu0 0.0
    %2860 = vmatpush1.msra.mxu0 0.0
    %2861 = vmatprep.subr.mxu0 0.0
    %2862 = vmatpush1.msra.mxu0 0.0
    %2863 = vmatprep.subr.mxu0 0.0
    %2864 = vmatpush1.msra.mxu0 0.0
    %2865 = vmatprep.subr.mxu0 0.0
    %2866 = vmatpush1.msra.mxu0 0.0
    %2867 = vmatprep.subr.mxu0 0.0
    %2868 = vmatpush1.msra.mxu0 0.0
    %2869 = vmatprep.subr.mxu0 0.0
    %2870 = vmatpush1.msra.mxu0 0.0
    %2871 = vmatprep.subr.mxu0 0.0
    %2872 = vmatpush1.msra.mxu0 0.0
    %2873 = vmatprep.subr.mxu0 0.0
    %2874 = vmatpush1.msra.mxu0 0.0
    %2875 = vmatprep.subr.mxu0 0.0
    %2876 = vmatpush1.msra.mxu0 0.0
    %2877 = vmatprep.subr.mxu0 0.0
    %2878 = vmatpush1.msra.mxu0 0.0
    %2879 = vmatprep.subr.mxu0 0.0
    %2880 = vmatpush1.msra.mxu0 0.0
    %2881 = vmatprep.subr.mxu0 0.0
    %2882 = vmatpush1.msra.mxu0 0.0
    %2883 = vmatprep.subr.mxu0 0.0
    %2884 = vmatpush1.msra.mxu0 0.0
    %2885 = vmatprep.subr.mxu0 0.0
    %2886 = vmatpush1.msra.mxu0 0.0
    %2887 = vmatprep.subr.mxu0 0.0
    %2888 = vmatpush1.msra.mxu0 0.0
    %2889 = vmatprep.subr.mxu0 0.0
    %2890 = vmatpush1.msra.mxu0 0.0
    %2891 = vmatprep.subr.mxu0 0.0
    %2892 = vmatpush1.msra.mxu0 0.0
    %2893 = vmatprep.subr.mxu0 0.0
    %2894 = vmatpush1.msra.mxu0 0.0
    %2895 = vmatprep.subr.mxu0 0.0
    %2896 = vmatpush1.msra.mxu0 0.0
    %2897 = vmatprep.subr.mxu0 0.0
    %2898 = vmatpush1.msra.mxu0 0.0
    %2899 = vmatprep.subr.mxu0 0.0
    %2900 = vmatpush1.msra.mxu0 0.0
    %2901 = vmatprep.subr.mxu0 0.0
    %2902 = vmatpush1.msra.mxu0 0.0
    %2903 = vmatprep.subr.mxu0 0.0
    %2904 = vmatpush1.msra.mxu0 0.0
    %2905 = vmatprep.mubr.f32.mxu0 0.0
    %2906 = vmatmul.mubr.f32.gmra.mrb[0].mxu0 %v2836
    %v2907 = vpop.f32.mrb[0].mxu0
    %v2908 = vadd.f32 0.0, %v2907
    %v2909 = vpop.f32.mrb[0].mxu0
    %2910 = vmatprep.mubr.f32.mxu0 0.0
    %2911 = vmatmul.mubr.f32.gmra.mrb[0].mxu0 %v2839
    %v2912 = vpop.f32.mrb[0].mxu0
    %v2913 = vadd.f32 0.0, %v2912
    %v2914 = vpop.f32.mrb[0].mxu0
    %2915 = vdwg.mxu0
    %v2916 = vadd.f32 %v2622, %v2908
    %v2917 = vadd.f32 %v2627, %v2913
    %2918 = vrot.lane.b32.xlu0 %v2044, 80
    %v2919 = vpop.permute.xlu0 %2918
    %2920 = vrot.lane.b32.xlu0 %v2050, 80
    %v2921 = vpop.permute.xlu0 %2920
    %2922 = vrot.lane.b32.xlu0 %v2044, 16
    %v2923 = vpop.permute.xlu0 %2922
    %2924 = vrot.lane.b32.xlu0 %v2050, 16
    %v2925 = vpop.permute.xlu0 %2924
    %v2926 = vsel %vm447, %v2919, 0
    %v2928 = vsel %vm447, %v2921, 0
    %v2930 = vsel %vm447, %v2923, 0
    %v2932 = vsel %vm447, %v2925, 0
    %2934 = vmatprep.subr.mxu0 0.0
    %2935 = vmatpush1.xpose.msra.mxu0 %v2930
    %2936 = vmatprep.subr.mxu0 0.0
    %2937 = vmatpush1.xpose.msra.mxu0 %v2932
    %2938 = vmatprep.subr.mxu0 0.0
    %2939 = vmatpush1.xpose.msra.mxu0 0.0
    %2940 = vmatprep.subr.mxu0 0.0
    %2941 = vmatpush1.xpose.msra.mxu0 0.0
    %2942 = vmatprep.subr.mxu0 0.0
    %2943 = vmatpush1.xpose.msra.mxu0 0.0
    %2944 = vmatprep.subr.mxu0 0.0
    %2945 = vmatpush1.xpose.msra.mxu0 0.0
    %2946 = vmatprep.subr.mxu0 0.0
    %2947 = vmatpush1.xpose.msra.mxu0 0.0
    %2948 = vmatprep.subr.mxu0 0.0
    %2949 = vmatpush1.xpose.msra.mxu0 0.0
    %2950 = vmatprep.subr.mxu0 0.0
    %2951 = vmatpush1.xpose.msra.mxu0 0.0
    %2952 = vmatprep.subr.mxu0 0.0
    %2953 = vmatpush1.xpose.msra.mxu0 0.0
    %2954 = vmatprep.subr.mxu0 0.0
    %2955 = vmatpush1.xpose.msra.mxu0 0.0
    %2956 = vmatprep.subr.mxu0 0.0
    %2957 = vmatpush1.xpose.msra.mxu0 0.0
    %2958 = vmatprep.subr.mxu0 0.0
    %2959 = vmatpush1.xpose.msra.mxu0 0.0
    %2960 = vmatprep.subr.mxu0 0.0
    %2961 = vmatpush1.xpose.msra.mxu0 0.0
    %2962 = vmatprep.subr.mxu0 0.0
    %2963 = vmatpush1.xpose.msra.mxu0 0.0
    %2964 = vmatprep.subr.mxu0 0.0
    %2965 = vmatpush1.xpose.msra.mxu0 0.0
    %2966 = vmatprep.subr.mxu0 0.0
    %2967 = vmatpush1.xpose.msra.mxu0 0.0
    %2968 = vmatprep.subr.mxu0 0.0
    %2969 = vmatpush1.xpose.msra.mxu0 0.0
    %2970 = vmatprep.subr.mxu0 0.0
    %2971 = vmatpush1.xpose.msra.mxu0 0.0
    %2972 = vmatprep.subr.mxu0 0.0
    %2973 = vmatpush1.xpose.msra.mxu0 0.0
    %2974 = vmatprep.subr.mxu0 0.0
    %2975 = vmatpush1.xpose.msra.mxu0 0.0
    %2976 = vmatprep.subr.mxu0 0.0
    %2977 = vmatpush1.xpose.msra.mxu0 0.0
    %2978 = vmatprep.subr.mxu0 0.0
    %2979 = vmatpush1.xpose.msra.mxu0 0.0
    %2980 = vmatprep.subr.mxu0 0.0
    %2981 = vmatpush1.xpose.msra.mxu0 0.0
    %2982 = vmatprep.subr.mxu0 0.0
    %2983 = vmatpush1.xpose.msra.mxu0 0.0
    %2984 = vmatprep.subr.mxu0 0.0
    %2985 = vmatpush1.xpose.msra.mxu0 0.0
    %2986 = vmatprep.subr.mxu0 0.0
    %2987 = vmatpush1.xpose.msra.mxu0 0.0
    %2988 = vmatprep.subr.mxu0 0.0
    %2989 = vmatpush1.xpose.msra.mxu0 0.0
    %2990 = vmatprep.subr.mxu0 0.0
    %2991 = vmatpush1.xpose.msra.mxu0 0.0
    %2992 = vmatprep.subr.mxu0 0.0
    %2993 = vmatpush1.xpose.msra.mxu0 0.0
    %2994 = vmatprep.subr.mxu0 0.0
    %2995 = vmatpush1.xpose.msra.mxu0 0.0
    %2996 = vmatprep.subr.mxu0 0.0
    %2997 = vmatpush1.xpose.msra.mxu0 0.0
    %2998 = vmatprep.mubr.f32.mxu0 0.0
    %2999 = vmatmul.mubr.f32.gmra.mrb[0].mxu0 %v2926
    %v3000 = vpop.f32.mrb[0].mxu0
    %v3001 = vadd.f32 0.0, %v3000
    %v3002 = vpop.f32.mrb[0].mxu0
    %3003 = vmatprep.mubr.f32.mxu0 0.0
    %3004 = vmatmul.mubr.f32.gmra.mrb[0].mxu0 %v2928
    %v3005 = vpop.f32.mrb[0].mxu0
    %v3006 = vadd.f32 0.0, %v3005
    %v3007 = vpop.f32.mrb[0].mxu0
    %3008 = vdwg.mxu0
    %v3009 = vmul.f32 %v3001, 0.25
    %v3010 = vmul.f32 %v3006, 0.25
    %v3011 = vadd.f32 %v3009, %v274
    %v3012 = vadd.f32 %v3010, %v275
    %v3013 = vsel %vm535, %v3011, -inf
    %3014 = vmax.xlane.f32.xlu0 %v3013
    %v3015 = vpop.xlane.xlu0 %3014
    %v3016 = vsel %vm539, %v3012, -inf
    %3017 = vmax.xlane.f32.xlu0 %v3016
    %v3018 = vpop.xlane.xlu0 %3017
    %v3019 = vsub.f32 %v3011, %v3015
    %v3020 = vsub.f32 %v3012, %v3018
    %v3021 = vmul.f32 %v3019, 1.442695
    %v3022 = vpow.pop %v3021
    %v3023 = vmul.f32 %v3020, 1.442695
    %v3024 = vpow.pop %v3023
    %v3025 = vsel %vm535, %v3022, 0.0
    %3026 = vadd.xlane.f32.xlu0 %v3025
    %v3027 = vpop.xlane.xlu0 %3026
    %v3028 = vsel %vm539, %v3024, 0.0
    %3029 = vadd.xlane.f32.xlu0 %v3028
    %v3030 = vpop.xlane.xlu0 %3029
    %v3031 = vrcp.pop %v3027
    %v3032 = vmul.f32 %v3022, %v3031
    %v3033 = vrcp.pop %v3030
    %v3034 = vmul.f32 %v3024, %v3033
    %3035 = vrot.lane.b32.xlu0 %v2046, 80
    %v3036 = vpop.permute.xlu0 %3035
    %3037 = vrot.lane.b32.xlu0 %v2052, 80
    %v3038 = vpop.permute.xlu0 %3037
    %v3041 = vsel %vm535, %v3032, 0
    %v3044 = vsel %vm535, %v3034, 0
    %v3046 = vsel %vm565, %v3038, 0
    %3048 = vmatprep.subr.mxu0 0.0
    %3049 = vmatpush1.msra.mxu0 %v3036
    %3050 = vmatprep.subr.mxu0 0.0
    %3051 = vmatpush1.msra.mxu0 %v3046
    %3052 = vmatprep.subr.mxu0 0.0
    %3053 = vmatpush1.msra.mxu0 0.0
    %3054 = vmatprep.subr.mxu0 0.0
    %3055 = vmatpush1.msra.mxu0 0.0
    %3056 = vmatprep.subr.mxu0 0.0
    %3057 = vmatpush1.msra.mxu0 0.0
    %3058 = vmatprep.subr.mxu0 0.0
    %3059 = vmatpush1.msra.mxu0 0.0
    %3060 = vmatprep.subr.mxu0 0.0
    %3061 = vmatpush1.msra.mxu0 0.0
    %3062 = vmatprep.subr.mxu0 0.0
    %3063 = vmatpush1.msra.mxu0 0.0
    %3064 = vmatprep.subr.mxu0 0.0
    %3065 = vmatpush1.msra.mxu0 0.0
    %3066 = vmatprep.subr.mxu0 0.0
    %3067 = vmatpush1.msra.mxu0 0.0
    %3068 = vmatprep.subr.mxu0 0.0
    %3069 = vmatpush1.msra.mxu0 0.0
    %3070 = vmatprep.subr.mxu0 0.0
    %3071 = vmatpush1.msra.mxu0 0.0
    %3072 = vmatprep.subr.mxu0 0.0
    %3073 = vmatpush1.msra.mxu0 0.0
    %3074 = vmatprep.subr.mxu0 0.0
    %3075 = vmatpush1.msra.mxu0 0.0
    %3076 = vmatprep.subr.mxu0 0.0
    %3077 = vmatpush1.msra.mxu0 0.0
    %3078 = vmatprep.subr.mxu0 0.0
    %3079 = vmatpush1.msra.mxu0 0.0
    %3080 = vmatprep.subr.mxu0 0.0
    %3081 = vmatpush1.msra.mxu0 0.0
    %3082 = vmatprep.subr.mxu0 0.0
    %3083 = vmatpush1.msra.mxu0 0.0
    %3084 = vmatprep.subr.mxu0 0.0
    %3085 = vmatpush1.msra.mxu0 0.0
    %3086 = vmatprep.subr.mxu0 0.0
    %3087 = vmatpush1.msra.mxu0 0.0
    %3088 = vmatprep.subr.mxu0 0.0
    %3089 = vmatpush1.msra.mxu0 0.0
    %3090 = vmatprep.subr.mxu0 0.0
    %3091 = vmatpush1.msra.mxu0 0.0
    %3092 = vmatprep.subr.mxu0 0.0
    %3093 = vmatpush1.msra.mxu0 0.0
    %3094 = vmatprep.subr.mxu0 0.0
    %3095 = vmatpush1.msra.mxu0 0.0
    %3096 = vmatprep.subr.mxu0 0.0
    %3097 = vmatpush1.msra.mxu0 0.0
    %3098 = vmatprep.subr.mxu0 0.0
    %3099 = vmatpush1.msra.mxu0 0.0
    %3100 = vmatprep.subr.mxu0 0.0
    %3101 = vmatpush1.msra.mxu0 0.0
    %3102 = vmatprep.subr.mxu0 0.0
    %3103 = vmatpush1.msra.mxu0 0.0
    %3104 = vmatprep.subr.mxu0 0.0
    %3105 = vmatpush1.msra.mxu0 0.0
    %3106 = vmatprep.subr.mxu0 0.0
    %3107 = vmatpush1.msra.mxu0 0.0
    %3108 = vmatprep.subr.mxu0 0.0
    %3109 = vmatpush1.msra.mxu0 0.0
    %3110 = vmatprep.subr.mxu0 0.0
    %3111 = vmatpush1.msra.mxu0 0.0
    %3112 = vmatprep.mubr.f32.mxu0 0.0
    %3113 = vmatmul.mubr.f32.gmra.mrb[0].mxu0 %v3041
    %v3114 = vpop.f32.mrb[0].mxu0
    %v3115 = vadd.f32 0.0, %v3114
    %v3116 = vpop.f32.mrb[0].mxu0
    %3117 = vmatprep.mubr.f32.mxu0 0.0
    %3118 = vmatmul.mubr.f32.gmra.mrb[0].mxu0 %v3044
    %v3119 = vpop.f32.mrb[0].mxu0
    %v3120 = vadd.f32 0.0, %v3119
    %v3121 = vpop.f32.mrb[0].mxu0
    %3122 = vdwg.mxu0
    %v3124 = vsel %vm447, %v3115, 0
    %v3127 = vsel %vm447, %v3120, 0
    %3129 = vmatprep.subr.mxu0 0.0
    %3130 = vmatpush1.msra.mxu0 %v2061
    %3131 = vmatprep.subr.mxu0 0.0
    %3132 = vmatpush1.msra.mxu0 %v2062
    %3133 = vmatprep.subr.mxu0 0.0
    %3134 = vmatpush1.msra.mxu0 0.0
    %3135 = vmatprep.subr.mxu0 0.0
    %3136 = vmatpush1.msra.mxu0 0.0
    %3137 = vmatprep.subr.mxu0 0.0
    %3138 = vmatpush1.msra.mxu0 0.0
    %3139 = vmatprep.subr.mxu0 0.0
    %3140 = vmatpush1.msra.mxu0 0.0
    %3141 = vmatprep.subr.mxu0 0.0
    %3142 = vmatpush1.msra.mxu0 0.0
    %3143 = vmatprep.subr.mxu0 0.0
    %3144 = vmatpush1.msra.mxu0 0.0
    %3145 = vmatprep.subr.mxu0 0.0
    %3146 = vmatpush1.msra.mxu0 0.0
    %3147 = vmatprep.subr.mxu0 0.0
    %3148 = vmatpush1.msra.mxu0 0.0
    %3149 = vmatprep.subr.mxu0 0.0
    %3150 = vmatpush1.msra.mxu0 0.0
    %3151 = vmatprep.subr.mxu0 0.0
    %3152 = vmatpush1.msra.mxu0 0.0
    %3153 = vmatprep.subr.mxu0 0.0
    %3154 = vmatpush1.msra.mxu0 0.0
    %3155 = vmatprep.subr.mxu0 0.0
    %3156 = vmatpush1.msra.mxu0 0.0
    %3157 = vmatprep.subr.mxu0 0.0
    %3158 = vmatpush1.msra.mxu0 0.0
    %3159 = vmatprep.subr.mxu0 0.0
    %3160 = vmatpush1.msra.mxu0 0.0
    %3161 = vmatprep.subr.mxu0 0.0
    %3162 = vmatpush1.msra.mxu0 0.0
    %3163 = vmatprep.subr.mxu0 0.0
    %3164 = vmatpush1.msra.mxu0 0.0
    %3165 = vmatprep.subr.mxu0 0.0
    %3166 = vmatpush1.msra.mxu0 0.0
    %3167 = vmatprep.subr.mxu0 0.0
    %3168 = vmatpush1.msra.mxu0 0.0
    %3169 = vmatprep.subr.mxu0 0.0
    %3170 = vmatpush1.msra.mxu0 0.0
    %3171 = vmatprep.subr.mxu0 0.0
    %3172 = vmatpush1.msra.mxu0 0.0
    %3173 = vmatprep.subr.mxu0 0.0
    %3174 = vmatpush1.msra.mxu0 0.0
    %3175 = vmatprep.subr.mxu0 0.0
    %3176 = vmatpush1.msra.mxu0 0.0
    %3177 = vmatprep.subr.mxu0 0.0
    %3178 = vmatpush1.msra.mxu0 0.0
    %3179 = vmatprep.subr.mxu0 0.0
    %3180 = vmatpush1.msra.mxu0 0.0
    %3181 = vmatprep.subr.mxu0 0.0
    %3182 = vmatpush1.msra.mxu0 0.0
    %3183 = vmatprep.subr.mxu0 0.0
    %3184 = vmatpush1.msra.mxu0 0.0
    %3185 = vmatprep.subr.mxu0 0.0
    %3186 = vmatpush1.msra.mxu0 0.0
    %3187 = vmatprep.subr.mxu0 0.0
    %3188 = vmatpush1.msra.mxu0 0.0
    %3189 = vmatprep.subr.mxu0 0.0
    %3190 = vmatpush1.msra.mxu0 0.0
    %3191 = vmatprep.subr.mxu0 0.0
    %3192 = vmatpush1.msra.mxu0 0.0
    %3193 = vmatprep.mubr.f32.mxu0 0.0
    %3194 = vmatmul.mubr.f32.gmra.mrb[0].mxu0 %v3124
    %v3195 = vpop.f32.mrb[0].mxu0
    %v3196 = vadd.f32 0.0, %v3195
    %v3197 = vpop.f32.mrb[0].mxu0
    %3198 = vmatprep.mubr.f32.mxu0 0.0
    %3199 = vmatmul.mubr.f32.gmra.mrb[0].mxu0 %v3127
    %v3200 = vpop.f32.mrb[0].mxu0
    %v3201 = vadd.f32 0.0, %v3200
    %v3202 = vpop.f32.mrb[0].mxu0
    %3203 = vdwg.mxu0
    %v3204 = vadd.f32 %v2916, %v3196
    %v3205 = vadd.f32 %v2917, %v3201
    %v3206 = vadd.f32 %v1893, %v3204
    %v3207 = vadd.f32 %v1894, %v3205
    %s3208 = scalar_lea.vmem %s12, 1
    %v3209 = vld [vmem:[%s3208] sm:$0x1]
    %v3211 = vlaneseq
    %v3212 = vshrl.u32 %v3211, 7
    %v3213 = vsub.s32 0, %v3212
    %v3214 = vrot.slane %v3209, %v3213
    %v3216 = vadd.f32 %v3206, %v3214
    %v3217 = vadd.f32 %v3207, %v3214
    %s3218 = scalar_lea.vmem %s13, 1
    %v3219 = vld [vmem:[%s3218] sm:$0x1]
    %s3220 = scalar_lea.vmem %s14, 1
    %v3221 = vld [vmem:[%s3220] sm:$0x1]
    %v3222 = vsel %vm114, %v3216, 0.0
    %3223 = vadd.xlane.f32.xlu0 %v3222
    %v3224 = vpop.xlane.xlu0 %3223
    %v3225 = vsel %vm281, %v3217, 0.0
    %3226 = vadd.xlane.f32.xlu0 %v3225
    %v3227 = vpop.xlane.xlu0 %3226
    %v3228 = vmul.f32 %v3224, %v285
    %v3229 = vmul.f32 %v3227, %v285
    %v3230 = vsub.f32 %v3216, %v3228
    %v3231 = vsub.f32 %v3217, %v3229
    %v3232 = vmul.f32 %v3230, %v3230
    %v3233 = vmul.f32 %v3231, %v3231
    %v3234 = vsel %vm114, %v3232, 0.0
    %3235 = vadd.xlane.f32.xlu0 %v3234
    %v3236 = vpop.xlane.xlu0 %3235
    %v3237 = vsel %vm281, %v3233, 0.0
    %3238 = vadd.xlane.f32.xlu0 %v3237
    %v3239 = vpop.xlane.xlu0 %3238
    %v3240 = vmul.f32 %v3236, %v285
    %v3241 = vmul.f32 %v3239, %v285
    %v3242 = vadd.f32 %v3240, 1e-12
    %v3243 = vadd.f32 %v3241, 1e-12
    %v3244 = vrsqrt.pop %v3242
    %v3245 = vrsqrt.pop %v3243
    %v3246 = vmul.f32 %v3230, %v3244
    %v3247 = vmul.f32 %v3231, %v3245
    %v3249 = vlaneseq
    %v3250 = vshrl.u32 %v3249, 7
    %v3251 = vsub.s32 0, %v3250
    %v3252 = vrot.slane %v3219, %v3251
    %v3254 = vmul.f32 %v3246, %v3252
    %v3255 = vmul.f32 %v3247, %v3252
    %v3257 = vlaneseq
    %v3258 = vshrl.u32 %v3257, 7
    %v3259 = vsub.s32 0, %v3258
    %v3260 = vrot.slane %v3221, %v3259
    %v3262 = vadd.f32 %v3254, %v3260
    %v3263 = vadd.f32 %v3255, %v3260
    %s3264 = scalar_lea.vmem %s15, 64
    %v3265 = vld [vmem:[%s3264] sm:$0xff]
    %v3266 = vld [vmem:[%s3264 + $0x8] sm:$0xff]
    %v3267 = vld [vmem:[%s3264 + $0x10] sm:$0xff]
    %v3268 = vld [vmem:[%s3264 + $0x18] sm:$0xff]
    %v3269 = vld [vmem:[%s3264 + $0x20] sm:$0xff]
    %v3270 = vld [vmem:[%s3264 + $0x28] sm:$0xff]
    %v3271 = vld [vmem:[%s3264 + $0x30] sm:$0xff]
    %v3272 = vld [vmem:[%s3264 + $0x38] sm:$0xff]
    %s3273 = scalar_lea.vmem %s16, 1
    %v3274 = vld [vmem:[%s3273] sm:$0x1]
    %v3276 = vlaneseq
    %v3277 = vshrl.u32 %v3276, 7
    %v3278 = vsub.s32 0, %v3277
    %v3279 = vrot.slane %v3274, %v3278
    %v3282 = vsel %vm114, %v3262, 0
    %v3285 = vsel %vm114, %v3263, 0
    %3287 = vmatprep.subr.mxu0 0.0
    %3288 = vmatpush1.msra.mxu0 %v3265
    %3289 = vmatprep.subr.mxu0 0.0
    %3290 = vmatpush1.msra.mxu0 %v3266
    %3291 = vmatprep.subr.mxu0 0.0
    %3292 = vmatpush1.msra.mxu0 %v3267
    %3293 = vmatprep.subr.mxu0 0.0
    %3294 = vmatpush1.msra.mxu0 %v3268
    %3295 = vmatprep.subr.mxu0 0.0
    %3296 = vmatpush1.msra.mxu0 %v3269
    %3297 = vmatprep.subr.mxu0 0.0
    %3298 = vmatpush1.msra.mxu0 %v3270
    %3299 = vmatprep.subr.mxu0 0.0
    %3300 = vmatpush1.msra.mxu0 %v3271
    %3301 = vmatprep.subr.mxu0 0.0
    %3302 = vmatpush1.msra.mxu0 %v3272
    %3303 = vmatprep.subr.mxu0 0.0
    %3304 = vmatpush1.msra.mxu0 0.0
    %3305 = vmatprep.subr.mxu0 0.0
    %3306 = vmatpush1.msra.mxu0 0.0
    %3307 = vmatprep.subr.mxu0 0.0
    %3308 = vmatpush1.msra.mxu0 0.0
    %3309 = vmatprep.subr.mxu0 0.0
    %3310 = vmatpush1.msra.mxu0 0.0
    %3311 = vmatprep.subr.mxu0 0.0
    %3312 = vmatpush1.msra.mxu0 0.0
    %3313 = vmatprep.subr.mxu0 0.0
    %3314 = vmatpush1.msra.mxu0 0.0
    %3315 = vmatprep.subr.mxu0 0.0
    %3316 = vmatpush1.msra.mxu0 0.0
    %3317 = vmatprep.subr.mxu0 0.0
    %3318 = vmatpush1.msra.mxu0 0.0
    %3319 = vmatprep.subr.mxu0 0.0
    %3320 = vmatpush1.msra.mxu0 0.0
    %3321 = vmatprep.subr.mxu0 0.0
    %3322 = vmatpush1.msra.mxu0 0.0
    %3323 = vmatprep.subr.mxu0 0.0
    %3324 = vmatpush1.msra.mxu0 0.0
    %3325 = vmatprep.subr.mxu0 0.0
    %3326 = vmatpush1.msra.mxu0 0.0
    %3327 = vmatprep.subr.mxu0 0.0
    %3328 = vmatpush1.msra.mxu0 0.0
    %3329 = vmatprep.subr.mxu0 0.0
    %3330 = vmatpush1.msra.mxu0 0.0
    %3331 = vmatprep.subr.mxu0 0.0
    %3332 = vmatpush1.msra.mxu0 0.0
    %3333 = vmatprep.subr.mxu0 0.0
    %3334 = vmatpush1.msra.mxu0 0.0
    %3335 = vmatprep.subr.mxu0 0.0
    %3336 = vmatpush1.msra.mxu0 0.0
    %3337 = vmatprep.subr.mxu0 0.0
    %3338 = vmatpush1.msra.mxu0 0.0
    %3339 = vmatprep.subr.mxu0 0.0
    %3340 = vmatpush1.msra.mxu0 0.0
    %3341 = vmatprep.subr.mxu0 0.0
    %3342 = vmatpush1.msra.mxu0 0.0
    %3343 = vmatprep.subr.mxu0 0.0
    %3344 = vmatpush1.msra.mxu0 0.0
    %3345 = vmatprep.subr.mxu0 0.0
    %3346 = vmatpush1.msra.mxu0 0.0
    %3347 = vmatprep.subr.mxu0 0.0
    %3348 = vmatpush1.msra.mxu0 0.0
    %3349 = vmatprep.subr.mxu0 0.0
    %3350 = vmatpush1.msra.mxu0 0.0
    %3351 = vmatprep.mubr.f32.mxu0 0.0
    %3352 = vmatmul.mubr.f32.gmra.mrb[0].mxu0 %v3282
    %v3353 = vpop.f32.mrb[0].mxu0
    %v3354 = vadd.f32 %v3279, %v3353
    %v3355 = vpop.f32.mrb[0].mxu0
    %3356 = vmatprep.mubr.f32.mxu0 0.0
    %3357 = vmatmul.mubr.f32.gmra.mrb[0].mxu0 %v3285
    %v3358 = vpop.f32.mrb[0].mxu0
    %v3359 = vadd.f32 %v3279, %v3358
    %v3360 = vpop.f32.mrb[0].mxu0
    %3361 = vdwg.mxu0
    %v3362 = vmul.f32 %v3354, 0.5
    %v3363 = vmul.f32 %v3359, 0.5
    %v3364 = vmul.f32 %v3354, 0.70710677
    %v3365 = vmul.f32 %v3359, 0.70710677
    %v3366 = vand.u32 2147483647, %v3364
    %v3367 = vand.u32 2147483647, %v3365
    %v3368 = vmul.f32 %v3366, 0.3275911
    %v3369 = vmul.f32 %v3367, 0.3275911
    %v3370 = vadd.f32 %v3368, 1.0
    %v3371 = vadd.f32 %v3369, 1.0
    %v3372 = vrcp.pop %v3370
    %v3373 = vmul.f32 1.0, %v3372
    %v3374 = vrcp.pop %v3371
    %v3375 = vmul.f32 1.0, %v3374
    %v3376 = vmul.f32 %v3373, 1.0614054
    %v3377 = vmul.f32 %v3375, 1.0614054
    %v3378 = vadd.f32 %v3376, -1.4531521
    %v3379 = vadd.f32 %v3377, -1.4531521
    %v3380 = vmul.f32 %v3378, %v3373
    %v3381 = vmul.f32 %v3379, %v3375
    %v3382 = vadd.f32 %v3380, 1.4214138
    %v3383 = vadd.f32 %v3381, 1.4214138
    %v3384 = vmul.f32 %v3382, %v3373
    %v3385 = vmul.f32 %v3383, %v3375
    %v3386 = vadd.f32 %v3384, -0.28449672
    %v3387 = vadd.f32 %v3385, -0.28449672
    %v3388 = vmul.f32 %v3386, %v3373
    %v3389 = vmul.f32 %v3387, %v3375
    %v3390 = vadd.f32 %v3388, 0.2548296
    %v3391 = vadd.f32 %v3389, 0.2548296
    %v3392 = vmul.f32 %v3390, %v3373
    %v3393 = vmul.f32 %v3391, %v3375
    %v3394 = vsub.f32 0.0, %v3366
    %v3395 = vsub.f32 0.0, %v3367
    %v3396 = vmul.f32 %v3394, %v3366
    %v3397 = vmul.f32 %v3395, %v3367
    %v3398 = vmul.f32 %v3396, 1.442695
    %v3399 = vpow.pop %v3398
    %v3400 = vmul.f32 %v3397, 1.442695
    %v3401 = vpow.pop %v3400
    %v3402 = vmul.f32 %v3392, %v3399
    %v3403 = vmul.f32 %v3393, %v3401
    %v3404 = vsub.f32 1.0, %v3402
    %v3405 = vsub.f32 1.0, %v3403
    %vm3406 = vcmp.ge.f32.partialorder %v3364, 0.0
    %vm3407 = vcmp.ge.f32.partialorder %v3365, 0.0
    %v3408 = vsub.f32 0.0, %v3404
    %v3409 = vsub.f32 0.0, %v3405
    %v3410 = vsel %vm3406, %v3404, %v3408
    %v3411 = vsel %vm3407, %v3405, %v3409
    %v3412 = vadd.f32 %v3410, 1.0
    %v3413 = vadd.f32 %v3411, 1.0
    %v3414 = vmul.f32 %v3362, %v3412
    %v3415 = vmul.f32 %v3363, %v3413
    %s3416 = scalar_lea.vmem %s17, 128
    %v3417 = vld [vmem:[%s3416] sm:$0xff]
    %v3418 = vld [vmem:[%s3416 + $0x8] sm:$0xff]
    %v3419 = vld [vmem:[%s3416 + $0x10] sm:$0xff]
    %v3420 = vld [vmem:[%s3416 + $0x18] sm:$0xff]
    %v3421 = vld [vmem:[%s3416 + $0x20] sm:$0xff]
    %v3422 = vld [vmem:[%s3416 + $0x28] sm:$0xff]
    %v3423 = vld [vmem:[%s3416 + $0x30] sm:$0xff]
    %v3424 = vld [vmem:[%s3416 + $0x38] sm:$0xff]
    %v3425 = vld [vmem:[%s3416 + $0x40] sm:$0xff]
    %v3426 = vld [vmem:[%s3416 + $0x48] sm:$0xff]
    %v3427 = vld [vmem:[%s3416 + $0x50] sm:$0xff]
    %v3428 = vld [vmem:[%s3416 + $0x58] sm:$0xff]
    %v3429 = vld [vmem:[%s3416 + $0x60] sm:$0xff]
    %v3430 = vld [vmem:[%s3416 + $0x68] sm:$0xff]
    %v3431 = vld [vmem:[%s3416 + $0x70] sm:$0xff]
    %v3432 = vld [vmem:[%s3416 + $0x78] sm:$0xff]
    %3433 = vmatprep.subr.mxu0 0.0
    %3434 = vmatpush1.msra.mxu0 %v3417
    %3435 = vmatprep.subr.mxu0 0.0
    %3436 = vmatpush1.msra.mxu0 %v3418
    %3437 = vmatprep.subr.mxu0 0.0
    %3438 = vmatpush1.msra.mxu0 %v3419
    %3439 = vmatprep.subr.mxu0 0.0
    %3440 = vmatpush1.msra.mxu0 %v3420
    %3441 = vmatprep.subr.mxu0 0.0
    %3442 = vmatpush1.msra.mxu0 %v3421
    %3443 = vmatprep.subr.mxu0 0.0
    %3444 = vmatpush1.msra.mxu0 %v3422
    %3445 = vmatprep.subr.mxu0 0.0
    %3446 = vmatpush1.msra.mxu0 %v3423
    %3447 = vmatprep.subr.mxu0 0.0
    %3448 = vmatpush1.msra.mxu0 %v3424
    %3449 = vmatprep.subr.mxu0 0.0
    %3450 = vmatpush1.msra.mxu0 %v3425
    %3451 = vmatprep.subr.mxu0 0.0
    %3452 = vmatpush1.msra.mxu0 %v3426
    %3453 = vmatprep.subr.mxu0 0.0
    %3454 = vmatpush1.msra.mxu0 %v3427
    %3455 = vmatprep.subr.mxu0 0.0
    %3456 = vmatpush1.msra.mxu0 %v3428
    %3457 = vmatprep.subr.mxu0 0.0
    %3458 = vmatpush1.msra.mxu0 %v3429
    %3459 = vmatprep.subr.mxu0 0.0
    %3460 = vmatpush1.msra.mxu0 %v3430
    %3461 = vmatprep.subr.mxu0 0.0
    %3462 = vmatpush1.msra.mxu0 %v3431
    %3463 = vmatprep.subr.mxu0 0.0
    %3464 = vmatpush1.msra.mxu0 %v3432
    %3465 = vmatprep.subr.mxu0 0.0
    %3466 = vmatpush1.msra.mxu0 0.0
    %3467 = vmatprep.subr.mxu0 0.0
    %3468 = vmatpush1.msra.mxu0 0.0
    %3469 = vmatprep.subr.mxu0 0.0
    %3470 = vmatpush1.msra.mxu0 0.0
    %3471 = vmatprep.subr.mxu0 0.0
    %3472 = vmatpush1.msra.mxu0 0.0
    %3473 = vmatprep.subr.mxu0 0.0
    %3474 = vmatpush1.msra.mxu0 0.0
    %3475 = vmatprep.subr.mxu0 0.0
    %3476 = vmatpush1.msra.mxu0 0.0
    %3477 = vmatprep.subr.mxu0 0.0
    %3478 = vmatpush1.msra.mxu0 0.0
    %3479 = vmatprep.subr.mxu0 0.0
    %3480 = vmatpush1.msra.mxu0 0.0
    %3481 = vmatprep.subr.mxu0 0.0
    %3482 = vmatpush1.msra.mxu0 0.0
    %3483 = vmatprep.subr.mxu0 0.0
    %3484 = vmatpush1.msra.mxu0 0.0
    %3485 = vmatprep.subr.mxu0 0.0
    %3486 = vmatpush1.msra.mxu0 0.0
    %3487 = vmatprep.subr.mxu0 0.0
    %3488 = vmatpush1.msra.mxu0 0.0
    %3489 = vmatprep.subr.mxu0 0.0
    %3490 = vmatpush1.msra.mxu0 0.0
    %3491 = vmatprep.subr.mxu0 0.0
    %3492 = vmatpush1.msra.mxu0 0.0
    %3493 = vmatprep.subr.mxu0 0.0
    %3494 = vmatpush1.msra.mxu0 0.0
    %3495 = vmatprep.subr.mxu0 0.0
    %3496 = vmatpush1.msra.mxu0 0.0
    %3497 = vmatprep.mubr.f32.mxu0 0.0
    %3498 = vmatmul.mubr.f32.gmra.mrb[0].mxu0 %v3414
    %v3499 = vpop.f32.mrb[0].mxu0
    %v3500 = vadd.f32 0.0, %v3499
    %v3501 = vpop.f32.mrb[0].mxu0
    %3502 = vmatprep.mubr.f32.mxu0 0.0
    %3503 = vmatmul.mubr.f32.gmra.mrb[0].mxu0 %v3415
    %v3504 = vpop.f32.mrb[0].mxu0
    %v3505 = vadd.f32 0.0, %v3504
    %v3506 = vpop.f32.mrb[0].mxu0
    %3507 = vdwg.mxu0
    %v3508 = vadd.f32 %v3216, %v3500
    %v3509 = vadd.f32 %v3217, %v3505
    %s3510 = scalar_lea.vmem %s18, 1
    %v3511 = vld [vmem:[%s3510] sm:$0x1]
    %v3513 = vlaneseq
    %v3514 = vshrl.u32 %v3513, 7
    %v3515 = vsub.s32 0, %v3514
    %v3516 = vrot.slane %v3511, %v3515
    %v3518 = vadd.f32 %v3508, %v3516
    %v3519 = vadd.f32 %v3509, %v3516
    %v3520 = vld [vmem:[%s19] sm:$0x1]
    %v3521 = vld [vmem:[%s20] sm:$0x1]
    %v3522 = vsel %vm114, %v3518, 0.0
    %3523 = vadd.xlane.f32.xlu0 %v3522
    %v3524 = vpop.xlane.xlu0 %3523
    %v3525 = vsel %vm281, %v3519, 0.0
    %3526 = vadd.xlane.f32.xlu0 %v3525
    %v3527 = vpop.xlane.xlu0 %3526
    %v3528 = vmul.f32 %v3524, %v285
    %v3529 = vmul.f32 %v3527, %v285
    %v3530 = vsub.f32 %v3518, %v3528
    %v3531 = vsub.f32 %v3519, %v3529
    %v3532 = vmul.f32 %v3530, %v3530
    %v3533 = vmul.f32 %v3531, %v3531
    %v3534 = vsel %vm114, %v3532, 0.0
    %3535 = vadd.xlane.f32.xlu0 %v3534
    %v3536 = vpop.xlane.xlu0 %3535
    %v3537 = vsel %vm281, %v3533, 0.0
    %3538 = vadd.xlane.f32.xlu0 %v3537
    %v3539 = vpop.xlane.xlu0 %3538
    %v3540 = vmul.f32 %v3536, %v285
    %v3541 = vmul.f32 %v3539, %v285
    %v3542 = vadd.f32 %v3540, 1e-12
    %v3543 = vadd.f32 %v3541, 1e-12
    %v3544 = vrsqrt.pop %v3542
    %v3545 = vrsqrt.pop %v3543
    %v3546 = vmul.f32 %v3530, %v3544
    %v3547 = vmul.f32 %v3531, %v3545
    %v3549 = vlaneseq
    %v3550 = vshrl.u32 %v3549, 7
    %v3551 = vsub.s32 0, %v3550
    %v3552 = vrot.slane %v3520, %v3551
    %v3554 = vmul.f32 %v3546, %v3552
    %v3555 = vmul.f32 %v3547, %v3552
    %v3557 = vlaneseq
    %v3558 = vshrl.u32 %v3557, 7
    %v3559 = vsub.s32 0, %v3558
    %v3560 = vrot.slane %v3521, %v3559
    %v3562 = vadd.f32 %v3554, %v3560
    %v3563 = vadd.f32 %v3555, %v3560
    %v3564 = vld [vmem:[%s6] sm:$0x3]
    %v3566 = vsel %vm535, %v3564, 0
    %v3569 = vsel %vm565, %v3563, 0
    %3571 = vmatprep.subr.mxu0 0.0
    %3572 = vmatpush1.msra.mxu0 %v3562
    %3573 = vmatprep.subr.mxu0 0.0
    %3574 = vmatpush1.msra.mxu0 %v3569
    %3575 = vmatprep.subr.mxu0 0.0
    %3576 = vmatpush1.msra.mxu0 0.0
    %3577 = vmatprep.subr.mxu0 0.0
    %3578 = vmatpush1.msra.mxu0 0.0
    %3579 = vmatprep.subr.mxu0 0.0
    %3580 = vmatpush1.msra.mxu0 0.0
    %3581 = vmatprep.subr.mxu0 0.0
    %3582 = vmatpush1.msra.mxu0 0.0
    %3583 = vmatprep.subr.mxu0 0.0
    %3584 = vmatpush1.msra.mxu0 0.0
    %3585 = vmatprep.subr.mxu0 0.0
    %3586 = vmatpush1.msra.mxu0 0.0
    %3587 = vmatprep.subr.mxu0 0.0
    %3588 = vmatpush1.msra.mxu0 0.0
    %3589 = vmatprep.subr.mxu0 0.0
    %3590 = vmatpush1.msra.mxu0 0.0
    %3591 = vmatprep.subr.mxu0 0.0
    %3592 = vmatpush1.msra.mxu0 0.0
    %3593 = vmatprep.subr.mxu0 0.0
    %3594 = vmatpush1.msra.mxu0 0.0
    %3595 = vmatprep.subr.mxu0 0.0
    %3596 = vmatpush1.msra.mxu0 0.0
    %3597 = vmatprep.subr.mxu0 0.0
    %3598 = vmatpush1.msra.mxu0 0.0
    %3599 = vmatprep.subr.mxu0 0.0
    %3600 = vmatpush1.msra.mxu0 0.0
    %3601 = vmatprep.subr.mxu0 0.0
    %3602 = vmatpush1.msra.mxu0 0.0
    %3603 = vmatprep.subr.mxu0 0.0
    %3604 = vmatpush1.msra.mxu0 0.0
    %3605 = vmatprep.subr.mxu0 0.0
    %3606 = vmatpush1.msra.mxu0 0.0
    %3607 = vmatprep.subr.mxu0 0.0
    %3608 = vmatpush1.msra.mxu0 0.0
    %3609 = vmatprep.subr.mxu0 0.0
    %3610 = vmatpush1.msra.mxu0 0.0
    %3611 = vmatprep.subr.mxu0 0.0
    %3612 = vmatpush1.msra.mxu0 0.0
    %3613 = vmatprep.subr.mxu0 0.0
    %3614 = vmatpush1.msra.mxu0 0.0
    %3615 = vmatprep.subr.mxu0 0.0
    %3616 = vmatpush1.msra.mxu0 0.0
    %3617 = vmatprep.subr.mxu0 0.0
    %3618 = vmatpush1.msra.mxu0 0.0
    %3619 = vmatprep.subr.mxu0 0.0
    %3620 = vmatpush1.msra.mxu0 0.0
    %3621 = vmatprep.subr.mxu0 0.0
    %3622 = vmatpush1.msra.mxu0 0.0
    %3623 = vmatprep.subr.mxu0 0.0
    %3624 = vmatpush1.msra.mxu0 0.0
    %3625 = vmatprep.subr.mxu0 0.0
    %3626 = vmatpush1.msra.mxu0 0.0
    %3627 = vmatprep.subr.mxu0 0.0
    %3628 = vmatpush1.msra.mxu0 0.0
    %3629 = vmatprep.subr.mxu0 0.0
    %3630 = vmatpush1.msra.mxu0 0.0
    %3631 = vmatprep.subr.mxu0 0.0
    %3632 = vmatpush1.msra.mxu0 0.0
    %3633 = vmatprep.subr.mxu0 0.0
    %3634 = vmatpush1.msra.mxu0 0.0
    %3635 = vmatprep.mubr.f32.mxu0 0.0
    %3636 = vmatmul.mubr.f32.gmra.mrb[0].mxu0 %v3566
    %v3637 = vpop.f32.mrb[0].mxu0
    %v3638 = vadd.f32 0.0, %v3637
    %v3639 = vpop.f32.mrb[0].mxu0
    %3640 = vdwg.mxu0
    %v3641 = vld [vmem:[%s21] sm:$0xff]
    %v3642 = vld [vmem:[%s21 + $0x8] sm:$0xff]
    %v3643 = vld [vmem:[%s21 + $0x10] sm:$0xff]
    %v3644 = vld [vmem:[%s21 + $0x18] sm:$0xff]
    %v3645 = vld [vmem:[%s21 + $0x20] sm:$0xff]
    %v3646 = vld [vmem:[%s21 + $0x28] sm:$0xff]
    %v3647 = vld [vmem:[%s21 + $0x30] sm:$0xff]
    %v3648 = vld [vmem:[%s21 + $0x38] sm:$0xff]
    %v3649 = vld [vmem:[%s22] sm:$0x1]
    %v3651 = vlaneseq
    %v3652 = vshrl.u32 %v3651, 7
    %v3653 = vsub.s32 0, %v3652
    %v3654 = vrot.slane %v3649, %v3653
    %v3657 = vsel %vm114, %v3638, 0
    %3659 = vmatprep.subr.mxu0 0.0
    %3660 = vmatpush1.msra.mxu0 %v3641
    %3661 = vmatprep.subr.mxu0 0.0
    %3662 = vmatpush1.msra.mxu0 %v3642
    %3663 = vmatprep.subr.mxu0 0.0
    %3664 = vmatpush1.msra.mxu0 %v3643
    %3665 = vmatprep.subr.mxu0 0.0
    %3666 = vmatpush1.msra.mxu0 %v3644
    %3667 = vmatprep.subr.mxu0 0.0
    %3668 = vmatpush1.msra.mxu0 %v3645
    %3669 = vmatprep.subr.mxu0 0.0
    %3670 = vmatpush1.msra.mxu0 %v3646
    %3671 = vmatprep.subr.mxu0 0.0
    %3672 = vmatpush1.msra.mxu0 %v3647
    %3673 = vmatprep.subr.mxu0 0.0
    %3674 = vmatpush1.msra.mxu0 %v3648
    %3675 = vmatprep.subr.mxu0 0.0
    %3676 = vmatpush1.msra.mxu0 0.0
    %3677 = vmatprep.subr.mxu0 0.0
    %3678 = vmatpush1.msra.mxu0 0.0
    %3679 = vmatprep.subr.mxu0 0.0
    %3680 = vmatpush1.msra.mxu0 0.0
    %3681 = vmatprep.subr.mxu0 0.0
    %3682 = vmatpush1.msra.mxu0 0.0
    %3683 = vmatprep.subr.mxu0 0.0
    %3684 = vmatpush1.msra.mxu0 0.0
    %3685 = vmatprep.subr.mxu0 0.0
    %3686 = vmatpush1.msra.mxu0 0.0
    %3687 = vmatprep.subr.mxu0 0.0
    %3688 = vmatpush1.msra.mxu0 0.0
    %3689 = vmatprep.subr.mxu0 0.0
    %3690 = vmatpush1.msra.mxu0 0.0
    %3691 = vmatprep.subr.mxu0 0.0
    %3692 = vmatpush1.msra.mxu0 0.0
    %3693 = vmatprep.subr.mxu0 0.0
    %3694 = vmatpush1.msra.mxu0 0.0
    %3695 = vmatprep.subr.mxu0 0.0
    %3696 = vmatpush1.msra.mxu0 0.0
    %3697 = vmatprep.subr.mxu0 0.0
    %3698 = vmatpush1.msra.mxu0 0.0
    %3699 = vmatprep.subr.mxu0 0.0
    %3700 = vmatpush1.msra.mxu0 0.0
    %3701 = vmatprep.subr.mxu0 0.0
    %3702 = vmatpush1.msra.mxu0 0.0
    %3703 = vmatprep.subr.mxu0 0.0
    %3704 = vmatpush1.msra.mxu0 0.0
    %3705 = vmatprep.subr.mxu0 0.0
    %3706 = vmatpush1.msra.mxu0 0.0
    %3707 = vmatprep.subr.mxu0 0.0
    %3708 = vmatpush1.msra.mxu0 0.0
    %3709 = vmatprep.subr.mxu0 0.0
    %3710 = vmatpush1.msra.mxu0 0.0
    %3711 = vmatprep.subr.mxu0 0.0
    %3712 = vmatpush1.msra.mxu0 0.0
    %3713 = vmatprep.subr.mxu0 0.0
    %3714 = vmatpush1.msra.mxu0 0.0
    %3715 = vmatprep.subr.mxu0 0.0
    %3716 = vmatpush1.msra.mxu0 0.0
    %3717 = vmatprep.subr.mxu0 0.0
    %3718 = vmatpush1.msra.mxu0 0.0
    %3719 = vmatprep.subr.mxu0 0.0
    %3720 = vmatpush1.msra.mxu0 0.0
    %3721 = vmatprep.subr.mxu0 0.0
    %3722 = vmatpush1.msra.mxu0 0.0
    %3723 = vmatprep.mubr.f32.mxu0 0.0
    %3724 = vmatmul.mubr.f32.gmra.mrb[0].mxu0 %v3657
    %v3725 = vpop.f32.mrb[0].mxu0
    %v3726 = vadd.f32 %v3654, %v3725
    %v3727 = vpop.f32.mrb[0].mxu0
    %3728 = vdwg.mxu0
    %v3729 = vtanh.pop %v3726
    %v3730 = vld [vmem:[%s23] sm:$0xff]
    %v3731 = vld [vmem:[%s23 + $0x8] sm:$0xff]
    %v3732 = vld [vmem:[%s23 + $0x10] sm:$0xff]
    %v3733 = vld [vmem:[%s23 + $0x18] sm:$0xff]
    %v3734 = vld [vmem:[%s23 + $0x20] sm:$0xff]
    %v3735 = vld [vmem:[%s23 + $0x28] sm:$0xff]
    %v3736 = vld [vmem:[%s23 + $0x30] sm:$0xff]
    %v3737 = vld [vmem:[%s23 + $0x38] sm:$0xff]
    %v3738 = vld [vmem:[%s24] sm:$0x1]
    %v3740 = vlaneseq
    %v3741 = vshrl.u32 %v3740, 7
    %v3742 = vsub.s32 0, %v3741
    %v3743 = vrot.slane %v3738, %v3742
    %v3746 = vsel %vm114, %v3729, 0
    %3748 = vmatprep.subr.mxu0 0.0
    %3749 = vmatpush1.msra.mxu0 %v3730
    %3750 = vmatprep.subr.mxu0 0.0
    %3751 = vmatpush1.msra.mxu0 %v3731
    %3752 = vmatprep.subr.mxu0 0.0
    %3753 = vmatpush1.msra.mxu0 %v3732
    %3754 = vmatprep.subr.mxu0 0.0
    %3755 = vmatpush1.msra.mxu0 %v3733
    %3756 = vmatprep.subr.mxu0 0.0
    %3757 = vmatpush1.msra.mxu0 %v3734
    %3758 = vmatprep.subr.mxu0 0.0
    %3759 = vmatpush1.msra.mxu0 %v3735
    %3760 = vmatprep.subr.mxu0 0.0
    %3761 = vmatpush1.msra.mxu0 %v3736
    %3762 = vmatprep.subr.mxu0 0.0
    %3763 = vmatpush1.msra.mxu0 %v3737
    %3764 = vmatprep.subr.mxu0 0.0
    %3765 = vmatpush1.msra.mxu0 0.0
    %3766 = vmatprep.subr.mxu0 0.0
    %3767 = vmatpush1.msra.mxu0 0.0
    %3768 = vmatprep.subr.mxu0 0.0
    %3769 = vmatpush1.msra.mxu0 0.0
    %3770 = vmatprep.subr.mxu0 0.0
    %3771 = vmatpush1.msra.mxu0 0.0
    %3772 = vmatprep.subr.mxu0 0.0
    %3773 = vmatpush1.msra.mxu0 0.0
    %3774 = vmatprep.subr.mxu0 0.0
    %3775 = vmatpush1.msra.mxu0 0.0
    %3776 = vmatprep.subr.mxu0 0.0
    %3777 = vmatpush1.msra.mxu0 0.0
    %3778 = vmatprep.subr.mxu0 0.0
    %3779 = vmatpush1.msra.mxu0 0.0
    %3780 = vmatprep.subr.mxu0 0.0
    %3781 = vmatpush1.msra.mxu0 0.0
    %3782 = vmatprep.subr.mxu0 0.0
    %3783 = vmatpush1.msra.mxu0 0.0
    %3784 = vmatprep.subr.mxu0 0.0
    %3785 = vmatpush1.msra.mxu0 0.0
    %3786 = vmatprep.subr.mxu0 0.0
    %3787 = vmatpush1.msra.mxu0 0.0
    %3788 = vmatprep.subr.mxu0 0.0
    %3789 = vmatpush1.msra.mxu0 0.0
    %3790 = vmatprep.subr.mxu0 0.0
    %3791 = vmatpush1.msra.mxu0 0.0
    %3792 = vmatprep.subr.mxu0 0.0
    %3793 = vmatpush1.msra.mxu0 0.0
    %3794 = vmatprep.subr.mxu0 0.0
    %3795 = vmatpush1.msra.mxu0 0.0
    %3796 = vmatprep.subr.mxu0 0.0
    %3797 = vmatpush1.msra.mxu0 0.0
    %3798 = vmatprep.subr.mxu0 0.0
    %3799 = vmatpush1.msra.mxu0 0.0
    %3800 = vmatprep.subr.mxu0 0.0
    %3801 = vmatpush1.msra.mxu0 0.0
    %3802 = vmatprep.subr.mxu0 0.0
    %3803 = vmatpush1.msra.mxu0 0.0
    %3804 = vmatprep.subr.mxu0 0.0
    %3805 = vmatpush1.msra.mxu0 0.0
    %3806 = vmatprep.subr.mxu0 0.0
    %3807 = vmatpush1.msra.mxu0 0.0
    %3808 = vmatprep.subr.mxu0 0.0
    %3809 = vmatpush1.msra.mxu0 0.0
    %3810 = vmatprep.subr.mxu0 0.0
    %3811 = vmatpush1.msra.mxu0 0.0
    %3812 = vmatprep.mubr.f32.mxu0 0.0
    %3813 = vmatmul.mubr.f32.gmra.mrb[0].mxu0 %v3746
    %v3814 = vpop.f32.mrb[0].mxu0
    %v3815 = vadd.f32 %v3743, %v3814
    %v3816 = vpop.f32.mrb[0].mxu0
    %3817 = vdwg.mxu0
    %vm3818 = vcmask 17408
    %3819 = vst.msk [vmem:[#allocation2] sm:$0x3] %vm3818, %v3815
    // Predicated region
    $region102: #{vit_classifier_forward.1} parent=1 // pred_check
      _
    $region103: #{vit_classifier_forward.1} parent=1 // pred_check_branch
      %3821 = sbr.rel (0) target = $region105
    $region104: #{vit_classifier_forward.1} parent=1 // pred_region
      %s3823 = ssub.s32 32, 32
      %3824 = vsyncadd [#allocation3], %s3823
      %s3826 = sshll.u32 [#allocation2], 4
      %s3827 = int_to_ptr.vmem [resolvable:$true] %s3826
      %3829 = dma.vmem_to_hbm [thread:$0]  %s3827, 32, %s25, [#allocation3]
    $region105: #{vit_classifier_forward.1} parent=1 // pred_fallthru
      _
    // Predicated region
    $region106: #{vit_classifier_forward.1} parent=1 // pred_check
      _
    $region107: #{vit_classifier_forward.1} parent=1 // pred_check_branch
      %3831 = sbr.rel (0) target = $region109
    $region108: #{vit_classifier_forward.1} parent=1 // pred_region
      %3832 = dma.done [#allocation3], 32
    $region109: #{vit_classifier_forward.1} parent=1 // pred_fallthru
      _
    %3833 = vsyncpa [#allocation3], 1

</llo_original>
